<compile_context>
chip_gen: v6e
topology: v6e:2x2x1
jax: 0.10.0
libtpu: 0.0.40
codegen_flags: <defaults>
</compile_context>

<pallas_src>
import jax
import jax.numpy as jnp
from jax.experimental import pallas as pl
from jax.experimental.pallas import tpu as pltpu


_NEG_SLOPE = 0.01  # PyTorch nn.LeakyReLU default negative_slope


def _vmem_limits():
    """(block_budget_bytes, vmem_limit_bytes) sized per chip generation."""
    try:
        cap = int(pltpu.get_tpu_info().vmem_capacity_bytes)   # 128 MiB v5e/v6e, 64 MiB v7x
    except Exception:
        cap = 64 << 20  # conservative fallback (v7x physical per-core VMEM)
    limit = min((cap * 3) // 4, 96 << 20)          # scoped-VMEM request, with headroom
    block_budget = max(limit - (8 << 20), 4 << 20)  # leave room for internal scratch/temps
    return block_budget, limit


def _pick_row_tile(N, C, H, W, r, block_budget):
    """Largest row tile th (th == H, or th | H with th % 8 == 0 for f32 sublane tiling)
    whose double-buffered input + output blocks (plus a temporary allowance) fit the
    budget.  Also keeps >= 2 parallel grid steps so a 2-TC chip (v7x) isn't half idle."""
    def blk_bytes(th):
        x_blk = C * th * W                 # (1, C, th, W)        input block
        o_blk = C * th * W * r * r         # (1, C, th, r*W*r)    output block
        tmp = 8 * th * W * r               # padded stage-1/2 interleave temporaries
        return 4 * (2 * (x_blk + o_blk) + tmp)

    cands = [H] + [d for d in range(H - 1, 0, -1) if H % d == 0 and d % 8 == 0]
    fitting = [d for d in cands if blk_bytes(d) <= block_budget]
    if not fitting:                        # best effort: smallest legal tile
        fitting = [cands[-1]]
    th = fitting[0]
    if N * (H // th) < 2:                  # v7x: feed both TensorCores when possible
        smaller = [d for d in fitting if H // d >= 2]
        if smaller:
            th = smaller[0]
    return th


def pixel_shuffle_head(x_nchw, w, b, upscale_factor):
    """Forward pass of PixelShuffleHead: 1x1 Conv2d -> LeakyReLU -> PixelShuffle.

    x_nchw: (N, C, H, W) float32
    w:      (C*r^2, C) or (C*r^2, C, 1, 1)  -- torch Conv2d weight layout
    b:      (C*r^2,)
    returns (N, C, H*r, W*r) float32, matching the PyTorch module exactly.
    """
    r = int(upscale_factor)
    N, C, H, W = (int(d) for d in x_nchw.shape)
    cout = C * r * r

    x32 = jnp.asarray(x_nchw, dtype=jnp.float32)
    w2 = jnp.asarray(w, dtype=jnp.float32)
    if w2.ndim == 4:  # torch Conv2d weight (Cout, Cin, 1, 1)
        w2 = w2.reshape(w2.shape[0], w2.shape[1])
    assert w2.shape == (cout, C), w2.shape
    w_flat = w2.reshape(cout * C)                      # 1-D SMEM layout: w_flat[o*C + k]
    b1 = jnp.asarray(b, dtype=jnp.float32).reshape(cout)

    block_budget, vmem_limit = _vmem_limits()
    # NOTE: th % 8 constraint assumes float32 inputs (we cast above); bf16 would need 16.
    th = _pick_row_tile(N, C, H, W, r, block_budget)
    grid = (N, H // th)

    def kernel(w_ref, b_ref, x_ref, o_ref):
        _, Ck, thk, Wk = x_ref.shape
        # Hoist + transpose the C input-channel tiles once; the transposed orientation
        # (W, th) turns the PixelShuffle column interleave into a sublane merge.
        # (Fine for small C; see TODO(synk) above for the large-C MXU path.)
        xT = [x_ref[0, k].T for k in range(Ck)]
        for c in range(Ck):
            z_parts = []
            for i in range(r):
                yT_phases = []
                for j in range(r):
                    o_idx = (c * r + i) * r + j
                    # 1x1 conv for output channel o_idx: VPU weighted sum, scalar
                    # weights/bias read from 1-D SMEM.
                    acc = xT[0] * w_ref[o_idx * Ck + 0]
                    for k in range(1, Ck):
                        acc = acc + xT[k] * w_ref[o_idx * Ck + k]
                    acc = acc + b_ref[o_idx]
                    # LeakyReLU (negative_slope = 0.01, torch default).
                    yT_phases.append(jnp.where(acc >= 0, acc, _NEG_SLOPE * acc))
                # Column interleave over j (transposed domain => sublane merge):
                #   zT[w*r + j, h] = y_{i,j}[h, w]
                zT = jnp.stack(yT_phases, axis=1).reshape(Wk * r, thk)
                # Back to row-major: z_i[h, w*r + j]  (small XLU transpose).
                z_parts.append(zT.T)
            # Row interleave over i is just lane concatenation in the (N, C, H, r*W*r)
            # output view: V[h, i*(W*r) + w*r + j] = y_{i,j}[h, w].  One contiguous,
            # wide store per channel.
            o_ref[0, c] = jnp.concatenate(z_parts, axis=1).astype(o_ref.dtype)

    out4 = pl.pallas_call(
        kernel,
        out_shape=jax.ShapeDtypeStruct((N, C, H, r * W * r), jnp.float32),
        grid_spec=pltpu.PrefetchScalarGridSpec(
            num_scalar_prefetch=0,
            grid=grid,
            in_specs=[
                pl.BlockSpec(memory_space=pltpu.MemorySpace.SMEM),            # w_flat (Cout*C,)
                pl.BlockSpec(memory_space=pltpu.MemorySpace.SMEM),            # b (Cout,)
                pl.BlockSpec((1, C, th, W), lambda n, hb: (n, 0, hb, 0)),     # x block
            ],
            out_specs=pl.BlockSpec((1, C, th, r * W * r), lambda n, hb: (n, 0, hb, 0)),
        ),
        compiler_params=pltpu.CompilerParams(
            dimension_semantics=("parallel", "parallel"),
            vmem_limit_bytes=int(vmem_limit),
        ),
        cost_estimate=pl.CostEstimate(
            flops=2 * N * H * W * C * cout + N * H * W * cout,
            transcendentals=0,
            bytes_accessed=4 * (N * C * H * W + cout * C + cout + N * C * H * W * r * r),
        ),
    )(w_flat, b1, x32)

    # (N, C, H, r*W*r) is exactly NCHW (N, C, H*r, W*r) with the trailing dims flattened
    # per input row, so this reshape is a free contiguous view (no HBM pass).
    return out4.reshape(N, C, H * r, W * r)


def _reference(x, w, b, r):
    """Pure-JAX reference mirroring the PyTorch module."""
    N, C, H, W = x.shape
    w2 = jnp.asarray(w, dtype=jnp.float32)
    if w2.ndim == 4:
        w2 = w2.reshape(w2.shape[0], w2.shape[1])
    y = jnp.einsum("nchw,oc->nohw", x, w2) + b[None, :, None, None]
    y = jnp.where(y >= 0, y, _NEG_SLOPE * y)
    # PixelShuffle: out[n, c, h*r+i, w*r+j] = y[n, c*r^2 + i*r + j, h, w]
    y = y.reshape(N, C, r, r, H, W)
    y = jnp.transpose(y, (0, 1, 4, 2, 5, 3))
    return y.reshape(N, C, H * r, W * r)


if __name__ == "__main__":
    # Module-consistent small shapes: dim=4, upscale_factor=2, input (2, 4, 16, 16).
    dim = 4
    upscale = 2
    N, H, W = 2, 16, 16
    cout = dim * upscale * upscale

    key = jax.random.PRNGKey(0)
    kx, kw, kb = jax.random.split(key, 3)

    x = jax.random.normal(kx, (N, dim, H, W), dtype=jnp.float32)
    # torch Conv2d weight layout (Cout, Cin, 1, 1); bias (Cout,)
    w = jax.random.normal(kw, (cout, dim, 1, 1), dtype=jnp.float32) * 0.1
    b = jax.random.normal(kb, (cout,), dtype=jnp.float32) * 0.1

    out = pixel_shuffle_head(x, w, b, upscale)
    out = jax.block_until_ready(out)

    ref = _reference(x, w, b, upscale)
    assert out.shape == (N, dim, H * upscale, W * upscale), out.shape
    assert jnp.allclose(out, ref, atol=1e-5, rtol=1e-5), float(jnp.max(jnp.abs(out - ref)))

    print("KERNEL_OK")
</pallas_src>

<mosaic_0001>
module attributes {stable_mosaic.version = 11 : i64} {
  func.func @kernel(%arg0: i32, %arg1: i32, %arg2: memref<64xf32, #tpu.memory_space<smem>>, %arg3: memref<16xf32, #tpu.memory_space<smem>>, %arg4: memref<1x4x16x16xf32, #tpu.memory_space<vmem>>, %arg5: memref<1x4x16x64xf32, #tpu.memory_space<vmem>>) attributes {dimension_semantics = [#tpu.dimension_semantics<parallel>, #tpu.dimension_semantics<parallel>], iteration_bounds = array<i64: 2, 1>, scalar_prefetch = 0 : i64, scratch_operands = 0 : i64, tpu.core_type = #tpu.core_type<tc>, window_params = [{transform_indices = @transform_0, window_bounds = array<i64: 64>}, {transform_indices = @transform_1, window_bounds = array<i64: 16>}, {transform_indices = @transform_2, window_bounds = array<i64: 1, 4, 16, 16>}, {transform_indices = @transform_3, window_bounds = array<i64: 1, 4, 16, 64>}]} {
    %c0 = arith.constant 0 : index
    %c0_0 = arith.constant 0 : index
    %c0_1 = arith.constant 0 : index
    %c0_2 = arith.constant 0 : index
    %0 = vector.load %arg4[%c0, %c0_0, %c0_1, %c0_2] : memref<1x4x16x16xf32, #tpu.memory_space<vmem>>, vector<1x1x16x16xf32>
    %1 = vector.shape_cast %0 : vector<1x1x16x16xf32> to vector<16x16xf32>
    %2 = tpu.transpose %1, [1, 0] : vector<16x16xf32> -> vector<16x16xf32>
    %c0_3 = arith.constant 0 : index
    %c1 = arith.constant 1 : index
    %c0_4 = arith.constant 0 : index
    %c0_5 = arith.constant 0 : index
    %3 = vector.load %arg4[%c0_3, %c1, %c0_4, %c0_5] : memref<1x4x16x16xf32, #tpu.memory_space<vmem>>, vector<1x1x16x16xf32>
    %4 = vector.shape_cast %3 : vector<1x1x16x16xf32> to vector<16x16xf32>
    %5 = tpu.transpose %4, [1, 0] : vector<16x16xf32> -> vector<16x16xf32>
    %c0_6 = arith.constant 0 : index
    %c2 = arith.constant 2 : index
    %c0_7 = arith.constant 0 : index
    %c0_8 = arith.constant 0 : index
    %6 = vector.load %arg4[%c0_6, %c2, %c0_7, %c0_8] : memref<1x4x16x16xf32, #tpu.memory_space<vmem>>, vector<1x1x16x16xf32>
    %7 = vector.shape_cast %6 : vector<1x1x16x16xf32> to vector<16x16xf32>
    %8 = tpu.transpose %7, [1, 0] : vector<16x16xf32> -> vector<16x16xf32>
    %c0_9 = arith.constant 0 : index
    %c3 = arith.constant 3 : index
    %c0_10 = arith.constant 0 : index
    %c0_11 = arith.constant 0 : index
    %9 = vector.load %arg4[%c0_9, %c3, %c0_10, %c0_11] : memref<1x4x16x16xf32, #tpu.memory_space<vmem>>, vector<1x1x16x16xf32>
    %10 = vector.shape_cast %9 : vector<1x1x16x16xf32> to vector<16x16xf32>
    %11 = tpu.transpose %10, [1, 0] : vector<16x16xf32> -> vector<16x16xf32>
    %c0_12 = arith.constant 0 : index
    %12 = memref.load %arg2[%c0_12] : memref<64xf32, #tpu.memory_space<smem>>
    %13 = vector.broadcast %12 : f32 to vector<16x16xf32>
    %14 = arith.mulf %2, %13 : vector<16x16xf32>
    %c1_13 = arith.constant 1 : index
    %15 = memref.load %arg2[%c1_13] : memref<64xf32, #tpu.memory_space<smem>>
    %16 = vector.broadcast %15 : f32 to vector<16x16xf32>
    %17 = arith.mulf %5, %16 : vector<16x16xf32>
    %18 = arith.addf %14, %17 : vector<16x16xf32>
    %c2_14 = arith.constant 2 : index
    %19 = memref.load %arg2[%c2_14] : memref<64xf32, #tpu.memory_space<smem>>
    %20 = vector.broadcast %19 : f32 to vector<16x16xf32>
    %21 = arith.mulf %8, %20 : vector<16x16xf32>
    %22 = arith.addf %18, %21 : vector<16x16xf32>
    %c3_15 = arith.constant 3 : index
    %23 = memref.load %arg2[%c3_15] : memref<64xf32, #tpu.memory_space<smem>>
    %24 = vector.broadcast %23 : f32 to vector<16x16xf32>
    %25 = arith.mulf %11, %24 : vector<16x16xf32>
    %26 = arith.addf %22, %25 : vector<16x16xf32>
    %c0_16 = arith.constant 0 : index
    %27 = memref.load %arg3[%c0_16] : memref<16xf32, #tpu.memory_space<smem>>
    %28 = vector.broadcast %27 : f32 to vector<16x16xf32>
    %29 = arith.addf %26, %28 : vector<16x16xf32>
    %cst = arith.constant 0.000000e+00 : f32
    %30 = vector.broadcast %cst : f32 to vector<16x16xf32>
    %31 = arith.cmpf oge, %29, %30 : vector<16x16xf32>
    %cst_17 = arith.constant 0.00999999977 : f32
    %32 = vector.broadcast %cst_17 : f32 to vector<16x16xf32>
    %33 = arith.mulf %32, %29 : vector<16x16xf32>
    %34 = arith.select %31, %29, %33 : vector<16x16xi1>, vector<16x16xf32>
    %c4 = arith.constant 4 : index
    %35 = memref.load %arg2[%c4] : memref<64xf32, #tpu.memory_space<smem>>
    %36 = vector.broadcast %35 : f32 to vector<16x16xf32>
    %37 = arith.mulf %2, %36 : vector<16x16xf32>
    %c5 = arith.constant 5 : index
    %38 = memref.load %arg2[%c5] : memref<64xf32, #tpu.memory_space<smem>>
    %39 = vector.broadcast %38 : f32 to vector<16x16xf32>
    %40 = arith.mulf %5, %39 : vector<16x16xf32>
    %41 = arith.addf %37, %40 : vector<16x16xf32>
    %c6 = arith.constant 6 : index
    %42 = memref.load %arg2[%c6] : memref<64xf32, #tpu.memory_space<smem>>
    %43 = vector.broadcast %42 : f32 to vector<16x16xf32>
    %44 = arith.mulf %8, %43 : vector<16x16xf32>
    %45 = arith.addf %41, %44 : vector<16x16xf32>
    %c7 = arith.constant 7 : index
    %46 = memref.load %arg2[%c7] : memref<64xf32, #tpu.memory_space<smem>>
    %47 = vector.broadcast %46 : f32 to vector<16x16xf32>
    %48 = arith.mulf %11, %47 : vector<16x16xf32>
    %49 = arith.addf %45, %48 : vector<16x16xf32>
    %c1_18 = arith.constant 1 : index
    %50 = memref.load %arg3[%c1_18] : memref<16xf32, #tpu.memory_space<smem>>
    %51 = vector.broadcast %50 : f32 to vector<16x16xf32>
    %52 = arith.addf %49, %51 : vector<16x16xf32>
    %cst_19 = arith.constant 0.000000e+00 : f32
    %53 = vector.broadcast %cst_19 : f32 to vector<16x16xf32>
    %54 = arith.cmpf oge, %52, %53 : vector<16x16xf32>
    %cst_20 = arith.constant 0.00999999977 : f32
    %55 = vector.broadcast %cst_20 : f32 to vector<16x16xf32>
    %56 = arith.mulf %55, %52 : vector<16x16xf32>
    %57 = arith.select %54, %52, %56 : vector<16x16xi1>, vector<16x16xf32>
    %58 = vector.shape_cast %34 : vector<16x16xf32> to vector<16x1x16xf32>
    %59 = vector.shape_cast %57 : vector<16x16xf32> to vector<16x1x16xf32>
    %60 = tpu.concatenate %58, %59 in 1 : vector<16x1x16xf32>, vector<16x1x16xf32> -> vector<16x2x16xf32>
    %61 = vector.shape_cast %60 : vector<16x2x16xf32> to vector<32x16xf32>
    %62 = tpu.transpose %61, [1, 0] : vector<32x16xf32> -> vector<16x32xf32>
    %c8 = arith.constant 8 : index
    %63 = memref.load %arg2[%c8] : memref<64xf32, #tpu.memory_space<smem>>
    %64 = vector.broadcast %63 : f32 to vector<16x16xf32>
    %65 = arith.mulf %2, %64 : vector<16x16xf32>
    %c9 = arith.constant 9 : index
    %66 = memref.load %arg2[%c9] : memref<64xf32, #tpu.memory_space<smem>>
    %67 = vector.broadcast %66 : f32 to vector<16x16xf32>
    %68 = arith.mulf %5, %67 : vector<16x16xf32>
    %69 = arith.addf %65, %68 : vector<16x16xf32>
    %c10 = arith.constant 10 : index
    %70 = memref.load %arg2[%c10] : memref<64xf32, #tpu.memory_space<smem>>
    %71 = vector.broadcast %70 : f32 to vector<16x16xf32>
    %72 = arith.mulf %8, %71 : vector<16x16xf32>
    %73 = arith.addf %69, %72 : vector<16x16xf32>
    %c11 = arith.constant 11 : index
    %74 = memref.load %arg2[%c11] : memref<64xf32, #tpu.memory_space<smem>>
    %75 = vector.broadcast %74 : f32 to vector<16x16xf32>
    %76 = arith.mulf %11, %75 : vector<16x16xf32>
    %77 = arith.addf %73, %76 : vector<16x16xf32>
    %c2_21 = arith.constant 2 : index
    %78 = memref.load %arg3[%c2_21] : memref<16xf32, #tpu.memory_space<smem>>
    %79 = vector.broadcast %78 : f32 to vector<16x16xf32>
    %80 = arith.addf %77, %79 : vector<16x16xf32>
    %cst_22 = arith.constant 0.000000e+00 : f32
    %81 = vector.broadcast %cst_22 : f32 to vector<16x16xf32>
    %82 = arith.cmpf oge, %80, %81 : vector<16x16xf32>
    %cst_23 = arith.constant 0.00999999977 : f32
    %83 = vector.broadcast %cst_23 : f32 to vector<16x16xf32>
    %84 = arith.mulf %83, %80 : vector<16x16xf32>
    %85 = arith.select %82, %80, %84 : vector<16x16xi1>, vector<16x16xf32>
    %c12 = arith.constant 12 : index
    %86 = memref.load %arg2[%c12] : memref<64xf32, #tpu.memory_space<smem>>
    %87 = vector.broadcast %86 : f32 to vector<16x16xf32>
    %88 = arith.mulf %2, %87 : vector<16x16xf32>
    %c13 = arith.constant 13 : index
    %89 = memref.load %arg2[%c13] : memref<64xf32, #tpu.memory_space<smem>>
    %90 = vector.broadcast %89 : f32 to vector<16x16xf32>
    %91 = arith.mulf %5, %90 : vector<16x16xf32>
    %92 = arith.addf %88, %91 : vector<16x16xf32>
    %c14 = arith.constant 14 : index
    %93 = memref.load %arg2[%c14] : memref<64xf32, #tpu.memory_space<smem>>
    %94 = vector.broadcast %93 : f32 to vector<16x16xf32>
    %95 = arith.mulf %8, %94 : vector<16x16xf32>
    %96 = arith.addf %92, %95 : vector<16x16xf32>
    %c15 = arith.constant 15 : index
    %97 = memref.load %arg2[%c15] : memref<64xf32, #tpu.memory_space<smem>>
    %98 = vector.broadcast %97 : f32 to vector<16x16xf32>
    %99 = arith.mulf %11, %98 : vector<16x16xf32>
    %100 = arith.addf %96, %99 : vector<16x16xf32>
    %c3_24 = arith.constant 3 : index
    %101 = memref.load %arg3[%c3_24] : memref<16xf32, #tpu.memory_space<smem>>
    %102 = vector.broadcast %101 : f32 to vector<16x16xf32>
    %103 = arith.addf %100, %102 : vector<16x16xf32>
    %cst_25 = arith.constant 0.000000e+00 : f32
    %104 = vector.broadcast %cst_25 : f32 to vector<16x16xf32>
    %105 = arith.cmpf oge, %103, %104 : vector<16x16xf32>
    %cst_26 = arith.constant 0.00999999977 : f32
    %106 = vector.broadcast %cst_26 : f32 to vector<16x16xf32>
    %107 = arith.mulf %106, %103 : vector<16x16xf32>
    %108 = arith.select %105, %103, %107 : vector<16x16xi1>, vector<16x16xf32>
    %109 = vector.shape_cast %85 : vector<16x16xf32> to vector<16x1x16xf32>
    %110 = vector.shape_cast %108 : vector<16x16xf32> to vector<16x1x16xf32>
    %111 = tpu.concatenate %109, %110 in 1 : vector<16x1x16xf32>, vector<16x1x16xf32> -> vector<16x2x16xf32>
    %112 = vector.shape_cast %111 : vector<16x2x16xf32> to vector<32x16xf32>
    %113 = tpu.transpose %112, [1, 0] : vector<32x16xf32> -> vector<16x32xf32>
    %114 = tpu.concatenate %62, %113 in 1 : vector<16x32xf32>, vector<16x32xf32> -> vector<16x64xf32>
    %c0_27 = arith.constant 0 : index
    %c0_28 = arith.constant 0 : index
    %c0_29 = arith.constant 0 : index
    %c0_30 = arith.constant 0 : index
    %115 = vector.load %arg5[%c0_27, %c0_28, %c0_29, %c0_30] : memref<1x4x16x64xf32, #tpu.memory_space<vmem>>, vector<1x1x16x64xf32>
    %116 = vector.shape_cast %115 : vector<1x1x16x64xf32> to vector<16x64xf32>
    %117 = vector.shape_cast %114 : vector<16x64xf32> to vector<1x1x16x64xf32>
    tpu.vector_store %arg5[%c0_27, %c0_28, %c0_29, %c0_30], %117 {strides = array<i32>} : memref<1x4x16x64xf32, #tpu.memory_space<vmem>>, vector<1x1x16x64xf32>,
    %c16 = arith.constant 16 : index
    %118 = memref.load %arg2[%c16] : memref<64xf32, #tpu.memory_space<smem>>
    %119 = vector.broadcast %118 : f32 to vector<16x16xf32>
    %120 = arith.mulf %2, %119 : vector<16x16xf32>
    %c17 = arith.constant 17 : index
    %121 = memref.load %arg2[%c17] : memref<64xf32, #tpu.memory_space<smem>>
    %122 = vector.broadcast %121 : f32 to vector<16x16xf32>
    %123 = arith.mulf %5, %122 : vector<16x16xf32>
    %124 = arith.addf %120, %123 : vector<16x16xf32>
    %c18 = arith.constant 18 : index
    %125 = memref.load %arg2[%c18] : memref<64xf32, #tpu.memory_space<smem>>
    %126 = vector.broadcast %125 : f32 to vector<16x16xf32>
    %127 = arith.mulf %8, %126 : vector<16x16xf32>
    %128 = arith.addf %124, %127 : vector<16x16xf32>
    %c19 = arith.constant 19 : index
    %129 = memref.load %arg2[%c19] : memref<64xf32, #tpu.memory_space<smem>>
    %130 = vector.broadcast %129 : f32 to vector<16x16xf32>
    %131 = arith.mulf %11, %130 : vector<16x16xf32>
    %132 = arith.addf %128, %131 : vector<16x16xf32>
    %c4_31 = arith.constant 4 : index
    %133 = memref.load %arg3[%c4_31] : memref<16xf32, #tpu.memory_space<smem>>
    %134 = vector.broadcast %133 : f32 to vector<16x16xf32>
    %135 = arith.addf %132, %134 : vector<16x16xf32>
    %cst_32 = arith.constant 0.000000e+00 : f32
    %136 = vector.broadcast %cst_32 : f32 to vector<16x16xf32>
    %137 = arith.cmpf oge, %135, %136 : vector<16x16xf32>
    %cst_33 = arith.constant 0.00999999977 : f32
    %138 = vector.broadcast %cst_33 : f32 to vector<16x16xf32>
    %139 = arith.mulf %138, %135 : vector<16x16xf32>
    %140 = arith.select %137, %135, %139 : vector<16x16xi1>, vector<16x16xf32>
    %c20 = arith.constant 20 : index
    %141 = memref.load %arg2[%c20] : memref<64xf32, #tpu.memory_space<smem>>
    %142 = vector.broadcast %141 : f32 to vector<16x16xf32>
    %143 = arith.mulf %2, %142 : vector<16x16xf32>
    %c21 = arith.constant 21 : index
    %144 = memref.load %arg2[%c21] : memref<64xf32, #tpu.memory_space<smem>>
    %145 = vector.broadcast %144 : f32 to vector<16x16xf32>
    %146 = arith.mulf %5, %145 : vector<16x16xf32>
    %147 = arith.addf %143, %146 : vector<16x16xf32>
    %c22 = arith.constant 22 : index
    %148 = memref.load %arg2[%c22] : memref<64xf32, #tpu.memory_space<smem>>
    %149 = vector.broadcast %148 : f32 to vector<16x16xf32>
    %150 = arith.mulf %8, %149 : vector<16x16xf32>
    %151 = arith.addf %147, %150 : vector<16x16xf32>
    %c23 = arith.constant 23 : index
    %152 = memref.load %arg2[%c23] : memref<64xf32, #tpu.memory_space<smem>>
    %153 = vector.broadcast %152 : f32 to vector<16x16xf32>
    %154 = arith.mulf %11, %153 : vector<16x16xf32>
    %155 = arith.addf %151, %154 : vector<16x16xf32>
    %c5_34 = arith.constant 5 : index
    %156 = memref.load %arg3[%c5_34] : memref<16xf32, #tpu.memory_space<smem>>
    %157 = vector.broadcast %156 : f32 to vector<16x16xf32>
    %158 = arith.addf %155, %157 : vector<16x16xf32>
    %cst_35 = arith.constant 0.000000e+00 : f32
    %159 = vector.broadcast %cst_35 : f32 to vector<16x16xf32>
    %160 = arith.cmpf oge, %158, %159 : vector<16x16xf32>
    %cst_36 = arith.constant 0.00999999977 : f32
    %161 = vector.broadcast %cst_36 : f32 to vector<16x16xf32>
    %162 = arith.mulf %161, %158 : vector<16x16xf32>
    %163 = arith.select %160, %158, %162 : vector<16x16xi1>, vector<16x16xf32>
    %164 = vector.shape_cast %140 : vector<16x16xf32> to vector<16x1x16xf32>
    %165 = vector.shape_cast %163 : vector<16x16xf32> to vector<16x1x16xf32>
    %166 = tpu.concatenate %164, %165 in 1 : vector<16x1x16xf32>, vector<16x1x16xf32> -> vector<16x2x16xf32>
    %167 = vector.shape_cast %166 : vector<16x2x16xf32> to vector<32x16xf32>
    %168 = tpu.transpose %167, [1, 0] : vector<32x16xf32> -> vector<16x32xf32>
    %c24 = arith.constant 24 : index
    %169 = memref.load %arg2[%c24] : memref<64xf32, #tpu.memory_space<smem>>
    %170 = vector.broadcast %169 : f32 to vector<16x16xf32>
    %171 = arith.mulf %2, %170 : vector<16x16xf32>
    %c25 = arith.constant 25 : index
    %172 = memref.load %arg2[%c25] : memref<64xf32, #tpu.memory_space<smem>>
    %173 = vector.broadcast %172 : f32 to vector<16x16xf32>
    %174 = arith.mulf %5, %173 : vector<16x16xf32>
    %175 = arith.addf %171, %174 : vector<16x16xf32>
    %c26 = arith.constant 26 : index
    %176 = memref.load %arg2[%c26] : memref<64xf32, #tpu.memory_space<smem>>
    %177 = vector.broadcast %176 : f32 to vector<16x16xf32>
    %178 = arith.mulf %8, %177 : vector<16x16xf32>
    %179 = arith.addf %175, %178 : vector<16x16xf32>
    %c27 = arith.constant 27 : index
    %180 = memref.load %arg2[%c27] : memref<64xf32, #tpu.memory_space<smem>>
    %181 = vector.broadcast %180 : f32 to vector<16x16xf32>
    %182 = arith.mulf %11, %181 : vector<16x16xf32>
    %183 = arith.addf %179, %182 : vector<16x16xf32>
    %c6_37 = arith.constant 6 : index
    %184 = memref.load %arg3[%c6_37] : memref<16xf32, #tpu.memory_space<smem>>
    %185 = vector.broadcast %184 : f32 to vector<16x16xf32>
    %186 = arith.addf %183, %185 : vector<16x16xf32>
    %cst_38 = arith.constant 0.000000e+00 : f32
    %187 = vector.broadcast %cst_38 : f32 to vector<16x16xf32>
    %188 = arith.cmpf oge, %186, %187 : vector<16x16xf32>
    %cst_39 = arith.constant 0.00999999977 : f32
    %189 = vector.broadcast %cst_39 : f32 to vector<16x16xf32>
    %190 = arith.mulf %189, %186 : vector<16x16xf32>
    %191 = arith.select %188, %186, %190 : vector<16x16xi1>, vector<16x16xf32>
    %c28 = arith.constant 28 : index
    %192 = memref.load %arg2[%c28] : memref<64xf32, #tpu.memory_space<smem>>
    %193 = vector.broadcast %192 : f32 to vector<16x16xf32>
    %194 = arith.mulf %2, %193 : vector<16x16xf32>
    %c29 = arith.constant 29 : index
    %195 = memref.load %arg2[%c29] : memref<64xf32, #tpu.memory_space<smem>>
    %196 = vector.broadcast %195 : f32 to vector<16x16xf32>
    %197 = arith.mulf %5, %196 : vector<16x16xf32>
    %198 = arith.addf %194, %197 : vector<16x16xf32>
    %c30 = arith.constant 30 : index
    %199 = memref.load %arg2[%c30] : memref<64xf32, #tpu.memory_space<smem>>
    %200 = vector.broadcast %199 : f32 to vector<16x16xf32>
    %201 = arith.mulf %8, %200 : vector<16x16xf32>
    %202 = arith.addf %198, %201 : vector<16x16xf32>
    %c31 = arith.constant 31 : index
    %203 = memref.load %arg2[%c31] : memref<64xf32, #tpu.memory_space<smem>>
    %204 = vector.broadcast %203 : f32 to vector<16x16xf32>
    %205 = arith.mulf %11, %204 : vector<16x16xf32>
    %206 = arith.addf %202, %205 : vector<16x16xf32>
    %c7_40 = arith.constant 7 : index
    %207 = memref.load %arg3[%c7_40] : memref<16xf32, #tpu.memory_space<smem>>
    %208 = vector.broadcast %207 : f32 to vector<16x16xf32>
    %209 = arith.addf %206, %208 : vector<16x16xf32>
    %cst_41 = arith.constant 0.000000e+00 : f32
    %210 = vector.broadcast %cst_41 : f32 to vector<16x16xf32>
    %211 = arith.cmpf oge, %209, %210 : vector<16x16xf32>
    %cst_42 = arith.constant 0.00999999977 : f32
    %212 = vector.broadcast %cst_42 : f32 to vector<16x16xf32>
    %213 = arith.mulf %212, %209 : vector<16x16xf32>
    %214 = arith.select %211, %209, %213 : vector<16x16xi1>, vector<16x16xf32>
    %215 = vector.shape_cast %191 : vector<16x16xf32> to vector<16x1x16xf32>
    %216 = vector.shape_cast %214 : vector<16x16xf32> to vector<16x1x16xf32>
    %217 = tpu.concatenate %215, %216 in 1 : vector<16x1x16xf32>, vector<16x1x16xf32> -> vector<16x2x16xf32>
    %218 = vector.shape_cast %217 : vector<16x2x16xf32> to vector<32x16xf32>
    %219 = tpu.transpose %218, [1, 0] : vector<32x16xf32> -> vector<16x32xf32>
    %220 = tpu.concatenate %168, %219 in 1 : vector<16x32xf32>, vector<16x32xf32> -> vector<16x64xf32>
    %c0_43 = arith.constant 0 : index
    %c1_44 = arith.constant 1 : index
    %c0_45 = arith.constant 0 : index
    %c0_46 = arith.constant 0 : index
    %221 = vector.load %arg5[%c0_43, %c1_44, %c0_45, %c0_46] : memref<1x4x16x64xf32, #tpu.memory_space<vmem>>, vector<1x1x16x64xf32>
    %222 = vector.shape_cast %221 : vector<1x1x16x64xf32> to vector<16x64xf32>
    %223 = vector.shape_cast %220 : vector<16x64xf32> to vector<1x1x16x64xf32>
    tpu.vector_store %arg5[%c0_43, %c1_44, %c0_45, %c0_46], %223 {strides = array<i32>} : memref<1x4x16x64xf32, #tpu.memory_space<vmem>>, vector<1x1x16x64xf32>,
    %c32 = arith.constant 32 : index
    %224 = memref.load %arg2[%c32] : memref<64xf32, #tpu.memory_space<smem>>
    %225 = vector.broadcast %224 : f32 to vector<16x16xf32>
    %226 = arith.mulf %2, %225 : vector<16x16xf32>
    %c33 = arith.constant 33 : index
    %227 = memref.load %arg2[%c33] : memref<64xf32, #tpu.memory_space<smem>>
    %228 = vector.broadcast %227 : f32 to vector<16x16xf32>
    %229 = arith.mulf %5, %228 : vector<16x16xf32>
    %230 = arith.addf %226, %229 : vector<16x16xf32>
    %c34 = arith.constant 34 : index
    %231 = memref.load %arg2[%c34] : memref<64xf32, #tpu.memory_space<smem>>
    %232 = vector.broadcast %231 : f32 to vector<16x16xf32>
    %233 = arith.mulf %8, %232 : vector<16x16xf32>
    %234 = arith.addf %230, %233 : vector<16x16xf32>
    %c35 = arith.constant 35 : index
    %235 = memref.load %arg2[%c35] : memref<64xf32, #tpu.memory_space<smem>>
    %236 = vector.broadcast %235 : f32 to vector<16x16xf32>
    %237 = arith.mulf %11, %236 : vector<16x16xf32>
    %238 = arith.addf %234, %237 : vector<16x16xf32>
    %c8_47 = arith.constant 8 : index
    %239 = memref.load %arg3[%c8_47] : memref<16xf32, #tpu.memory_space<smem>>
    %240 = vector.broadcast %239 : f32 to vector<16x16xf32>
    %241 = arith.addf %238, %240 : vector<16x16xf32>
    %cst_48 = arith.constant 0.000000e+00 : f32
    %242 = vector.broadcast %cst_48 : f32 to vector<16x16xf32>
    %243 = arith.cmpf oge, %241, %242 : vector<16x16xf32>
    %cst_49 = arith.constant 0.00999999977 : f32
    %244 = vector.broadcast %cst_49 : f32 to vector<16x16xf32>
    %245 = arith.mulf %244, %241 : vector<16x16xf32>
    %246 = arith.select %243, %241, %245 : vector<16x16xi1>, vector<16x16xf32>
    %c36 = arith.constant 36 : index
    %247 = memref.load %arg2[%c36] : memref<64xf32, #tpu.memory_space<smem>>
    %248 = vector.broadcast %247 : f32 to vector<16x16xf32>
    %249 = arith.mulf %2, %248 : vector<16x16xf32>
    %c37 = arith.constant 37 : index
    %250 = memref.load %arg2[%c37] : memref<64xf32, #tpu.memory_space<smem>>
    %251 = vector.broadcast %250 : f32 to vector<16x16xf32>
    %252 = arith.mulf %5, %251 : vector<16x16xf32>
    %253 = arith.addf %249, %252 : vector<16x16xf32>
    %c38 = arith.constant 38 : index
    %254 = memref.load %arg2[%c38] : memref<64xf32, #tpu.memory_space<smem>>
    %255 = vector.broadcast %254 : f32 to vector<16x16xf32>
    %256 = arith.mulf %8, %255 : vector<16x16xf32>
    %257 = arith.addf %253, %256 : vector<16x16xf32>
    %c39 = arith.constant 39 : index
    %258 = memref.load %arg2[%c39] : memref<64xf32, #tpu.memory_space<smem>>
    %259 = vector.broadcast %258 : f32 to vector<16x16xf32>
    %260 = arith.mulf %11, %259 : vector<16x16xf32>
    %261 = arith.addf %257, %260 : vector<16x16xf32>
    %c9_50 = arith.constant 9 : index
    %262 = memref.load %arg3[%c9_50] : memref<16xf32, #tpu.memory_space<smem>>
    %263 = vector.broadcast %262 : f32 to vector<16x16xf32>
    %264 = arith.addf %261, %263 : vector<16x16xf32>
    %cst_51 = arith.constant 0.000000e+00 : f32
    %265 = vector.broadcast %cst_51 : f32 to vector<16x16xf32>
    %266 = arith.cmpf oge, %264, %265 : vector<16x16xf32>
    %cst_52 = arith.constant 0.00999999977 : f32
    %267 = vector.broadcast %cst_52 : f32 to vector<16x16xf32>
    %268 = arith.mulf %267, %264 : vector<16x16xf32>
    %269 = arith.select %266, %264, %268 : vector<16x16xi1>, vector<16x16xf32>
    %270 = vector.shape_cast %246 : vector<16x16xf32> to vector<16x1x16xf32>
    %271 = vector.shape_cast %269 : vector<16x16xf32> to vector<16x1x16xf32>
    %272 = tpu.concatenate %270, %271 in 1 : vector<16x1x16xf32>, vector<16x1x16xf32> -> vector<16x2x16xf32>
    %273 = vector.shape_cast %272 : vector<16x2x16xf32> to vector<32x16xf32>
    %274 = tpu.transpose %273, [1, 0] : vector<32x16xf32> -> vector<16x32xf32>
    %c40 = arith.constant 40 : index
    %275 = memref.load %arg2[%c40] : memref<64xf32, #tpu.memory_space<smem>>
    %276 = vector.broadcast %275 : f32 to vector<16x16xf32>
    %277 = arith.mulf %2, %276 : vector<16x16xf32>
    %c41 = arith.constant 41 : index
    %278 = memref.load %arg2[%c41] : memref<64xf32, #tpu.memory_space<smem>>
    %279 = vector.broadcast %278 : f32 to vector<16x16xf32>
    %280 = arith.mulf %5, %279 : vector<16x16xf32>
    %281 = arith.addf %277, %280 : vector<16x16xf32>
    %c42 = arith.constant 42 : index
    %282 = memref.load %arg2[%c42] : memref<64xf32, #tpu.memory_space<smem>>
    %283 = vector.broadcast %282 : f32 to vector<16x16xf32>
    %284 = arith.mulf %8, %283 : vector<16x16xf32>
    %285 = arith.addf %281, %284 : vector<16x16xf32>
    %c43 = arith.constant 43 : index
    %286 = memref.load %arg2[%c43] : memref<64xf32, #tpu.memory_space<smem>>
    %287 = vector.broadcast %286 : f32 to vector<16x16xf32>
    %288 = arith.mulf %11, %287 : vector<16x16xf32>
    %289 = arith.addf %285, %288 : vector<16x16xf32>
    %c10_53 = arith.constant 10 : index
    %290 = memref.load %arg3[%c10_53] : memref<16xf32, #tpu.memory_space<smem>>
    %291 = vector.broadcast %290 : f32 to vector<16x16xf32>
    %292 = arith.addf %289, %291 : vector<16x16xf32>
    %cst_54 = arith.constant 0.000000e+00 : f32
    %293 = vector.broadcast %cst_54 : f32 to vector<16x16xf32>
    %294 = arith.cmpf oge, %292, %293 : vector<16x16xf32>
    %cst_55 = arith.constant 0.00999999977 : f32
    %295 = vector.broadcast %cst_55 : f32 to vector<16x16xf32>
    %296 = arith.mulf %295, %292 : vector<16x16xf32>
    %297 = arith.select %294, %292, %296 : vector<16x16xi1>, vector<16x16xf32>
    %c44 = arith.constant 44 : index
    %298 = memref.load %arg2[%c44] : memref<64xf32, #tpu.memory_space<smem>>
    %299 = vector.broadcast %298 : f32 to vector<16x16xf32>
    %300 = arith.mulf %2, %299 : vector<16x16xf32>
    %c45 = arith.constant 45 : index
    %301 = memref.load %arg2[%c45] : memref<64xf32, #tpu.memory_space<smem>>
    %302 = vector.broadcast %301 : f32 to vector<16x16xf32>
    %303 = arith.mulf %5, %302 : vector<16x16xf32>
    %304 = arith.addf %300, %303 : vector<16x16xf32>
    %c46 = arith.constant 46 : index
    %305 = memref.load %arg2[%c46] : memref<64xf32, #tpu.memory_space<smem>>
    %306 = vector.broadcast %305 : f32 to vector<16x16xf32>
    %307 = arith.mulf %8, %306 : vector<16x16xf32>
    %308 = arith.addf %304, %307 : vector<16x16xf32>
    %c47 = arith.constant 47 : index
    %309 = memref.load %arg2[%c47] : memref<64xf32, #tpu.memory_space<smem>>
    %310 = vector.broadcast %309 : f32 to vector<16x16xf32>
    %311 = arith.mulf %11, %310 : vector<16x16xf32>
    %312 = arith.addf %308, %311 : vector<16x16xf32>
    %c11_56 = arith.constant 11 : index
    %313 = memref.load %arg3[%c11_56] : memref<16xf32, #tpu.memory_space<smem>>
    %314 = vector.broadcast %313 : f32 to vector<16x16xf32>
    %315 = arith.addf %312, %314 : vector<16x16xf32>
    %cst_57 = arith.constant 0.000000e+00 : f32
    %316 = vector.broadcast %cst_57 : f32 to vector<16x16xf32>
    %317 = arith.cmpf oge, %315, %316 : vector<16x16xf32>
    %cst_58 = arith.constant 0.00999999977 : f32
    %318 = vector.broadcast %cst_58 : f32 to vector<16x16xf32>
    %319 = arith.mulf %318, %315 : vector<16x16xf32>
    %320 = arith.select %317, %315, %319 : vector<16x16xi1>, vector<16x16xf32>
    %321 = vector.shape_cast %297 : vector<16x16xf32> to vector<16x1x16xf32>
    %322 = vector.shape_cast %320 : vector<16x16xf32> to vector<16x1x16xf32>
    %323 = tpu.concatenate %321, %322 in 1 : vector<16x1x16xf32>, vector<16x1x16xf32> -> vector<16x2x16xf32>
    %324 = vector.shape_cast %323 : vector<16x2x16xf32> to vector<32x16xf32>
    %325 = tpu.transpose %324, [1, 0] : vector<32x16xf32> -> vector<16x32xf32>
    %326 = tpu.concatenate %274, %325 in 1 : vector<16x32xf32>, vector<16x32xf32> -> vector<16x64xf32>
    %c0_59 = arith.constant 0 : index
    %c2_60 = arith.constant 2 : index
    %c0_61 = arith.constant 0 : index
    %c0_62 = arith.constant 0 : index
    %327 = vector.load %arg5[%c0_59, %c2_60, %c0_61, %c0_62] : memref<1x4x16x64xf32, #tpu.memory_space<vmem>>, vector<1x1x16x64xf32>
    %328 = vector.shape_cast %327 : vector<1x1x16x64xf32> to vector<16x64xf32>
    %329 = vector.shape_cast %326 : vector<16x64xf32> to vector<1x1x16x64xf32>
    tpu.vector_store %arg5[%c0_59, %c2_60, %c0_61, %c0_62], %329 {strides = array<i32>} : memref<1x4x16x64xf32, #tpu.memory_space<vmem>>, vector<1x1x16x64xf32>,
    %c48 = arith.constant 48 : index
    %330 = memref.load %arg2[%c48] : memref<64xf32, #tpu.memory_space<smem>>
    %331 = vector.broadcast %330 : f32 to vector<16x16xf32>
    %332 = arith.mulf %2, %331 : vector<16x16xf32>
    %c49 = arith.constant 49 : index
    %333 = memref.load %arg2[%c49] : memref<64xf32, #tpu.memory_space<smem>>
    %334 = vector.broadcast %333 : f32 to vector<16x16xf32>
    %335 = arith.mulf %5, %334 : vector<16x16xf32>
    %336 = arith.addf %332, %335 : vector<16x16xf32>
    %c50 = arith.constant 50 : index
    %337 = memref.load %arg2[%c50] : memref<64xf32, #tpu.memory_space<smem>>
    %338 = vector.broadcast %337 : f32 to vector<16x16xf32>
    %339 = arith.mulf %8, %338 : vector<16x16xf32>
    %340 = arith.addf %336, %339 : vector<16x16xf32>
    %c51 = arith.constant 51 : index
    %341 = memref.load %arg2[%c51] : memref<64xf32, #tpu.memory_space<smem>>
    %342 = vector.broadcast %341 : f32 to vector<16x16xf32>
    %343 = arith.mulf %11, %342 : vector<16x16xf32>
    %344 = arith.addf %340, %343 : vector<16x16xf32>
    %c12_63 = arith.constant 12 : index
    %345 = memref.load %arg3[%c12_63] : memref<16xf32, #tpu.memory_space<smem>>
    %346 = vector.broadcast %345 : f32 to vector<16x16xf32>
    %347 = arith.addf %344, %346 : vector<16x16xf32>
    %cst_64 = arith.constant 0.000000e+00 : f32
    %348 = vector.broadcast %cst_64 : f32 to vector<16x16xf32>
    %349 = arith.cmpf oge, %347, %348 : vector<16x16xf32>
    %cst_65 = arith.constant 0.00999999977 : f32
    %350 = vector.broadcast %cst_65 : f32 to vector<16x16xf32>
    %351 = arith.mulf %350, %347 : vector<16x16xf32>
    %352 = arith.select %349, %347, %351 : vector<16x16xi1>, vector<16x16xf32>
    %c52 = arith.constant 52 : index
    %353 = memref.load %arg2[%c52] : memref<64xf32, #tpu.memory_space<smem>>
    %354 = vector.broadcast %353 : f32 to vector<16x16xf32>
    %355 = arith.mulf %2, %354 : vector<16x16xf32>
    %c53 = arith.constant 53 : index
    %356 = memref.load %arg2[%c53] : memref<64xf32, #tpu.memory_space<smem>>
    %357 = vector.broadcast %356 : f32 to vector<16x16xf32>
    %358 = arith.mulf %5, %357 : vector<16x16xf32>
    %359 = arith.addf %355, %358 : vector<16x16xf32>
    %c54 = arith.constant 54 : index
    %360 = memref.load %arg2[%c54] : memref<64xf32, #tpu.memory_space<smem>>
    %361 = vector.broadcast %360 : f32 to vector<16x16xf32>
    %362 = arith.mulf %8, %361 : vector<16x16xf32>
    %363 = arith.addf %359, %362 : vector<16x16xf32>
    %c55 = arith.constant 55 : index
    %364 = memref.load %arg2[%c55] : memref<64xf32, #tpu.memory_space<smem>>
    %365 = vector.broadcast %364 : f32 to vector<16x16xf32>
    %366 = arith.mulf %11, %365 : vector<16x16xf32>
    %367 = arith.addf %363, %366 : vector<16x16xf32>
    %c13_66 = arith.constant 13 : index
    %368 = memref.load %arg3[%c13_66] : memref<16xf32, #tpu.memory_space<smem>>
    %369 = vector.broadcast %368 : f32 to vector<16x16xf32>
    %370 = arith.addf %367, %369 : vector<16x16xf32>
    %cst_67 = arith.constant 0.000000e+00 : f32
    %371 = vector.broadcast %cst_67 : f32 to vector<16x16xf32>
    %372 = arith.cmpf oge, %370, %371 : vector<16x16xf32>
    %cst_68 = arith.constant 0.00999999977 : f32
    %373 = vector.broadcast %cst_68 : f32 to vector<16x16xf32>
    %374 = arith.mulf %373, %370 : vector<16x16xf32>
    %375 = arith.select %372, %370, %374 : vector<16x16xi1>, vector<16x16xf32>
    %376 = vector.shape_cast %352 : vector<16x16xf32> to vector<16x1x16xf32>
    %377 = vector.shape_cast %375 : vector<16x16xf32> to vector<16x1x16xf32>
    %378 = tpu.concatenate %376, %377 in 1 : vector<16x1x16xf32>, vector<16x1x16xf32> -> vector<16x2x16xf32>
    %379 = vector.shape_cast %378 : vector<16x2x16xf32> to vector<32x16xf32>
    %380 = tpu.transpose %379, [1, 0] : vector<32x16xf32> -> vector<16x32xf32>
    %c56 = arith.constant 56 : index
    %381 = memref.load %arg2[%c56] : memref<64xf32, #tpu.memory_space<smem>>
    %382 = vector.broadcast %381 : f32 to vector<16x16xf32>
    %383 = arith.mulf %2, %382 : vector<16x16xf32>
    %c57 = arith.constant 57 : index
    %384 = memref.load %arg2[%c57] : memref<64xf32, #tpu.memory_space<smem>>
    %385 = vector.broadcast %384 : f32 to vector<16x16xf32>
    %386 = arith.mulf %5, %385 : vector<16x16xf32>
    %387 = arith.addf %383, %386 : vector<16x16xf32>
    %c58 = arith.constant 58 : index
    %388 = memref.load %arg2[%c58] : memref<64xf32, #tpu.memory_space<smem>>
    %389 = vector.broadcast %388 : f32 to vector<16x16xf32>
    %390 = arith.mulf %8, %389 : vector<16x16xf32>
    %391 = arith.addf %387, %390 : vector<16x16xf32>
    %c59 = arith.constant 59 : index
    %392 = memref.load %arg2[%c59] : memref<64xf32, #tpu.memory_space<smem>>
    %393 = vector.broadcast %392 : f32 to vector<16x16xf32>
    %394 = arith.mulf %11, %393 : vector<16x16xf32>
    %395 = arith.addf %391, %394 : vector<16x16xf32>
    %c14_69 = arith.constant 14 : index
    %396 = memref.load %arg3[%c14_69] : memref<16xf32, #tpu.memory_space<smem>>
    %397 = vector.broadcast %396 : f32 to vector<16x16xf32>
    %398 = arith.addf %395, %397 : vector<16x16xf32>
    %cst_70 = arith.constant 0.000000e+00 : f32
    %399 = vector.broadcast %cst_70 : f32 to vector<16x16xf32>
    %400 = arith.cmpf oge, %398, %399 : vector<16x16xf32>
    %cst_71 = arith.constant 0.00999999977 : f32
    %401 = vector.broadcast %cst_71 : f32 to vector<16x16xf32>
    %402 = arith.mulf %401, %398 : vector<16x16xf32>
    %403 = arith.select %400, %398, %402 : vector<16x16xi1>, vector<16x16xf32>
    %c60 = arith.constant 60 : index
    %404 = memref.load %arg2[%c60] : memref<64xf32, #tpu.memory_space<smem>>
    %405 = vector.broadcast %404 : f32 to vector<16x16xf32>
    %406 = arith.mulf %2, %405 : vector<16x16xf32>
    %c61 = arith.constant 61 : index
    %407 = memref.load %arg2[%c61] : memref<64xf32, #tpu.memory_space<smem>>
    %408 = vector.broadcast %407 : f32 to vector<16x16xf32>
    %409 = arith.mulf %5, %408 : vector<16x16xf32>
    %410 = arith.addf %406, %409 : vector<16x16xf32>
    %c62 = arith.constant 62 : index
    %411 = memref.load %arg2[%c62] : memref<64xf32, #tpu.memory_space<smem>>
    %412 = vector.broadcast %411 : f32 to vector<16x16xf32>
    %413 = arith.mulf %8, %412 : vector<16x16xf32>
    %414 = arith.addf %410, %413 : vector<16x16xf32>
    %c63 = arith.constant 63 : index
    %415 = memref.load %arg2[%c63] : memref<64xf32, #tpu.memory_space<smem>>
    %416 = vector.broadcast %415 : f32 to vector<16x16xf32>
    %417 = arith.mulf %11, %416 : vector<16x16xf32>
    %418 = arith.addf %414, %417 : vector<16x16xf32>
    %c15_72 = arith.constant 15 : index
    %419 = memref.load %arg3[%c15_72] : memref<16xf32, #tpu.memory_space<smem>>
    %420 = vector.broadcast %419 : f32 to vector<16x16xf32>
    %421 = arith.addf %418, %420 : vector<16x16xf32>
    %cst_73 = arith.constant 0.000000e+00 : f32
    %422 = vector.broadcast %cst_73 : f32 to vector<16x16xf32>
    %423 = arith.cmpf oge, %421, %422 : vector<16x16xf32>
    %cst_74 = arith.constant 0.00999999977 : f32
    %424 = vector.broadcast %cst_74 : f32 to vector<16x16xf32>
    %425 = arith.mulf %424, %421 : vector<16x16xf32>
    %426 = arith.select %423, %421, %425 : vector<16x16xi1>, vector<16x16xf32>
    %427 = vector.shape_cast %403 : vector<16x16xf32> to vector<16x1x16xf32>
    %428 = vector.shape_cast %426 : vector<16x16xf32> to vector<16x1x16xf32>
    %429 = tpu.concatenate %427, %428 in 1 : vector<16x1x16xf32>, vector<16x1x16xf32> -> vector<16x2x16xf32>
    %430 = vector.shape_cast %429 : vector<16x2x16xf32> to vector<32x16xf32>
    %431 = tpu.transpose %430, [1, 0] : vector<32x16xf32> -> vector<16x32xf32>
    %432 = tpu.concatenate %380, %431 in 1 : vector<16x32xf32>, vector<16x32xf32> -> vector<16x64xf32>
    %c0_75 = arith.constant 0 : index
    %c3_76 = arith.constant 3 : index
    %c0_77 = arith.constant 0 : index
    %c0_78 = arith.constant 0 : index
    %433 = vector.load %arg5[%c0_75, %c3_76, %c0_77, %c0_78] : memref<1x4x16x64xf32, #tpu.memory_space<vmem>>, vector<1x1x16x64xf32>
    %434 = vector.shape_cast %433 : vector<1x1x16x64xf32> to vector<16x64xf32>
    %435 = vector.shape_cast %432 : vector<16x64xf32> to vector<1x1x16x64xf32>
    tpu.vector_store %arg5[%c0_75, %c3_76, %c0_77, %c0_78], %435 {strides = array<i32>} : memref<1x4x16x64xf32, #tpu.memory_space<vmem>>, vector<1x1x16x64xf32>,
    return
  }
  func.func @transform_0(%arg0: i32, %arg1: i32) -> i32 {
    %c0_i32 = arith.constant 0 : i32
    %c0_i32_0 = arith.constant 0 : i32
    return %c0_i32 : i32
  }
  func.func @transform_1(%arg0: i32, %arg1: i32) -> i32 {
    %c0_i32 = arith.constant 0 : i32
    %c0_i32_0 = arith.constant 0 : i32
    return %c0_i32 : i32
  }
  func.func @transform_2(%arg0: i32, %arg1: i32) -> (i32, i32, i32, i32) {
    %c0_i32 = arith.constant 0 : i32
    %c0_i32_0 = arith.constant 0 : i32
    %c0_i32_1 = arith.constant 0 : i32
    return %arg0, %c0_i32, %arg1, %c0_i32_0 : i32, i32, i32, i32
  }
  func.func @transform_3(%arg0: i32, %arg1: i32) -> (i32, i32, i32, i32) {
    %c0_i32 = arith.constant 0 : i32
    %c0_i32_0 = arith.constant 0 : i32
    %c0_i32_1 = arith.constant 0 : i32
    return %arg0, %c0_i32, %arg1, %c0_i32_0 : i32, i32, i32, i32
  }
}

</mosaic_0001>

<llo_original>
// kernel: tpu_custom_call.1
$region0: #{tpu_custom_call.1}
  #allocation0 [shape = 'u32[]', space=smem, size = 0x4, offset = 0x4, fixed_abs, tag = 'smem constant byte address 0x4 - core index']
  #allocation1 [shape = 'u32[144,128]{1,0:T(1,128)}', space=vmem, size = 0x12000, scoped, tag = 'internal scratch']
  %s0 = inlined_call_operand.hbm [shape: f32[64], index: 0, kind: input, shape index: {}]
  %s1 = inlined_call_operand.vmem [shape: f32[16], index: 1, kind: input, shape index: {}]
  %s2 = inlined_call_operand.hbm [shape: f32[2,4,16,16], index: 2, kind: input, shape index: {}]
  %s3 = inlined_call_operand.hbm [shape: f32[2,4,16,64], index: 3, kind: output, shape index: {}]
  %s4 = sld [smem:[#allocation0]]
  $region57: #{tpu_custom_call.1} parent=0
    _
  %s6 = ssub.s32 1, %s4
  %s7 = scalar_select 0, %s6, %s4
  $region1: #{tpu_custom_call.1} parent=0
    #allocation2 [shape = 'u8[512]{0}', space=smem, size = 0x200, scoped, tag = 'input window, operand 0, single buffered']
    #allocation3 [shape = 's32[2]{0}', space=sflag, size = 0x8, scoped, tag = 'scoped memory for tpu_custom_call.1']
    #allocation4 [shape = 's32[2]{0}', space=sflag, size = 0x8, scoped, tag = 'scoped memory for tpu_custom_call.1']
    #allocation5 [shape = 's32[2]{0}', space=sflag, size = 0x8, scoped, tag = 'scoped memory for tpu_custom_call.1']
    #allocation6 [shape = 's32[2]{0}', space=sflag, size = 0x8, scoped, tag = 'scoped memory for tpu_custom_call.1']
    #allocation7 [shape = 'u8[512]{0}', space=smem, size = 0x200, scoped, tag = 'input window, operand 1, single buffered']
    #allocation8 [shape = 'u8[65536]{0}', space=vmem, size = 0x10000, scoped, tag = 'input window, operand 2']
    #allocation9 [shape = 'u8[65536]{0}', space=vmem, size = 0x10000, scoped, tag = 'output window, operand 0']
    %8 = vsyncpa [#allocation5], 0
    %9 = vsyncpa [#allocation6], 0
    %10 = vsyncpa [#allocation3], 0
    %s11 = scalar_lea.sflag [#allocation3], 1
    %12 = vsyncpa %s11, 0
    %13 = vsyncpa [#allocation4], 0
    %s14 = scalar_lea.sflag [#allocation4], 1
    %15 = vsyncpa %s14, 0
    loop: start=0, step=1, limit=4
    $region2: #{tpu_custom_call.1} parent=1 // loop_pre_header
      _
    $region3: #{tpu_custom_call.1} parent=1 // loop_header
      %s17 = sphi 0, %s21
      %p18 = scmp.ge.s32.totalorder %s17, 4
      %s24 = sphi 0, %s36
      %s25 = sphi 0, %s32
      %s26 = sphi 0, %s24
      %s27 = sphi 0, %s25
      %s28 = sphi 0, %s26
      %s29 = sphi 0, %s27
      %s37 = sphi 0, %s37
      %s39 = sphi 0, %s37
      %s40 = sphi 0, %s39
      %s54 = sphi 0, %s40
      %s58 = sphi 0, %s58
      %s60 = sphi 0, %s58
      %s61 = sphi 0, %s60
      %s75 = sphi 0, %s61
      %s83 = sphi 0, %s85
      %s86 = sphi 0, %s83
      %s87 = sphi 0, %s86
      %s103 = sphi 0, %s87
      %s111 = sphi 0, %s113
      %s114 = sphi 0, %s111
      %s115 = sphi 0, %s114
      %s131 = sphi 0, %s115
    $region4: #{tpu_custom_call.1} parent=1 // loop_header_branch
      %20 = sbr.rel (%p18) target = $region8
    $region5: #{tpu_custom_call.1} parent=1 // loop_body
      %s22 = ssub.s32 %s17, 1
      %s23 = ssub.s32 %s17, 2
      %s30 = sadd.s32 1, %s25
      %p31 = scmp.ge.s32.totalorder %s30, 1
      %s32 = scalar_select %p31, 0, %s30
      %s33 = sadd.s32 1, %s24
      %s34 = scalar_select %p31, %s33, %s24
      %p35 = scmp.ge.s32.totalorder %s34, 2
      %s36 = scalar_select %p35, 0, %s34
      %s38 = sadd.s32 %s37, 1
      %p41 = scmp.eq.s32.totalorder %s17, 1
      %p42 = scmp.ne.s32.totalorder %s37, %s39
      %p43 = scmp.eq.s32.totalorder %s17, 0
      %p44 = por %p42, %p43
      %p45 = scmp.ne.s32.totalorder %s37, %s39
      %p46 = scmp.eq.s32.totalorder %s22, 1
      %p47 = por %p45, %p46
      %p48 = scmp.ne.s32.totalorder %s39, %s40
      %p49 = scmp.eq.s32.totalorder %s22, 0
      %p50 = por %p48, %p49
      %p51 = scmp.ne.s32.totalorder %s39, %s40
      %p52 = scmp.eq.s32.totalorder %s23, 1
      %p53 = por %p51, %p52
      %p55 = scmp.ne.s32.totalorder %s40, %s54
      %p56 = scmp.eq.s32.totalorder %s23, 0
      %p57 = por %p55, %p56
      %s59 = sadd.s32 %s58, 1
      %p62 = scmp.eq.s32.totalorder %s17, 1
      %p63 = scmp.ne.s32.totalorder %s58, %s60
      %p64 = scmp.eq.s32.totalorder %s17, 0
      %p65 = por %p63, %p64
      %p66 = scmp.ne.s32.totalorder %s58, %s60
      %p67 = scmp.eq.s32.totalorder %s22, 1
      %p68 = por %p66, %p67
      %p69 = scmp.ne.s32.totalorder %s60, %s61
      %p70 = scmp.eq.s32.totalorder %s22, 0
      %p71 = por %p69, %p70
      %p72 = scmp.ne.s32.totalorder %s60, %s61
      %p73 = scmp.eq.s32.totalorder %s23, 1
      %p74 = por %p72, %p73
      %p76 = scmp.ne.s32.totalorder %s61, %s75
      %p77 = scmp.eq.s32.totalorder %s23, 0
      %p78 = por %p76, %p77
      %s79 = ssub.s32 %s24, %s36
      %s80 = ssub.s32 %s25, %s32
      %s81 = sor.u32 %s79, %s80
      %p82 = scmp.eq.s32.totalorder %s81, 0
      %s84 = sadd.s32 %s83, 1
      %s85 = scalar_select %p82, %s83, %s84
      %p88 = pneg %p82
      %p89 = scmp.eq.s32.totalorder %s17, 1
      %p90 = por %p88, %p89
      %p91 = scmp.ne.s32.totalorder %s83, %s86
      %p92 = scmp.eq.s32.totalorder %s17, 0
      %p93 = por %p91, %p92
      %p94 = scmp.ne.s32.totalorder %s83, %s86
      %p95 = scmp.eq.s32.totalorder %s22, 1
      %p96 = por %p94, %p95
      %p97 = scmp.ne.s32.totalorder %s86, %s87
      %p98 = scmp.eq.s32.totalorder %s22, 0
      %p99 = por %p97, %p98
      %p100 = scmp.ne.s32.totalorder %s86, %s87
      %p101 = scmp.eq.s32.totalorder %s23, 1
      %p102 = por %p100, %p101
      %p104 = scmp.ne.s32.totalorder %s87, %s103
      %p105 = scmp.eq.s32.totalorder %s23, 0
      %p106 = por %p104, %p105
      %s107 = ssub.s32 %s24, %s36
      %s108 = ssub.s32 %s25, %s32
      %s109 = sor.u32 %s107, %s108
      %p110 = scmp.eq.s32.totalorder %s109, 0
      %s112 = sadd.s32 %s111, 1
      %s113 = scalar_select %p110, %s111, %s112
      %p116 = pneg %p110
      %p117 = scmp.eq.s32.totalorder %s17, 1
      %p118 = por %p116, %p117
      %p119 = scmp.ne.s32.totalorder %s111, %s114
      %p120 = scmp.eq.s32.totalorder %s17, 0
      %p121 = por %p119, %p120
      %p122 = scmp.ne.s32.totalorder %s111, %s114
      %p123 = scmp.eq.s32.totalorder %s22, 1
      %p124 = por %p122, %p123
      %p125 = scmp.ne.s32.totalorder %s114, %s115
      %p126 = scmp.eq.s32.totalorder %s22, 0
      %p127 = por %p125, %p126
      %p128 = scmp.ne.s32.totalorder %s114, %s115
      %p129 = scmp.eq.s32.totalorder %s23, 1
      %p130 = por %p128, %p129
      %p132 = scmp.ne.s32.totalorder %s115, %s131
      %p133 = scmp.eq.s32.totalorder %s23, 0
      %p134 = por %p132, %p133
      %p135 = scmp.le.s32.totalorder 1, %s17
      %p136 = scmp.lt.s32.totalorder %s17, 3
      %p137 = pnand %p135, %p136
      %p138 = pneg %p137
      // Predicated region
      $region9: #{tpu_custom_call.1} parent=5 // pred_check
        _
      $region10: #{tpu_custom_call.1} parent=5 // pred_check_branch
        %140 = sbr.rel (%p137) target = $region12
      $region11: #{tpu_custom_call.1} parent=5 // pred_region
        %s141 = ssub.s32 %s17, 1
        // Predicated region
        $region13: #{tpu_custom_call.1} parent=11 // pred_check
          %p142 = pneg %p50
        $region14: #{tpu_custom_call.1} parent=11 // pred_check_branch
          %144 = sbr.rel (%p142) target = $region16
        $region15: #{tpu_custom_call.1} parent=11 // pred_region
          %s146 = ssub.s32 16, 16
          %147 = vsyncadd [#allocation5], %s146
          %150 = dma.hbm_to_smem %s0, 16, [#allocation2], [#allocation5]
        $region16: #{tpu_custom_call.1} parent=11 // pred_fallthru
          _
        // Predicated region
        $region17: #{tpu_custom_call.1} parent=11 // pred_check
          %p151 = pneg %p71
        $region18: #{tpu_custom_call.1} parent=11 // pred_check_branch
          %153 = sbr.rel (%p151) target = $region20
        $region19: #{tpu_custom_call.1} parent=11 // pred_region
          %s155 = ssub.s32 16, 16
          %156 = vsyncadd [#allocation6], %s155
          %s158 = sshll.u32 %s1, 4
          %s159 = int_to_ptr.vmem [resolvable:$true] %s158
          %161 = dma.vmem_to_smem %s159, 16, [#allocation7], [#allocation6]
        $region20: #{tpu_custom_call.1} parent=11 // pred_fallthru
          _
      $region12: #{tpu_custom_call.1} parent=5 // pred_fallthru
        _
      %p162 = scmp.lt.s32.totalorder %s17, 2
      // Predicated region
      $region21: #{tpu_custom_call.1} parent=5 // pred_check
        %p163 = pneg %p162
      $region22: #{tpu_custom_call.1} parent=5 // pred_check_branch
        %165 = sbr.rel (%p163) target = $region24
      $region23: #{tpu_custom_call.1} parent=5 // pred_region
        // Predicated region
        $region25: #{tpu_custom_call.1} parent=23 // pred_check
          %p166 = pneg %p93
        $region26: #{tpu_custom_call.1} parent=23 // pred_check_branch
          %168 = sbr.rel (%p166) target = $region28
        $region27: #{tpu_custom_call.1} parent=23 // pred_region
          %s169 = sand.u32 %s83, 1
          %s170 = scalar_lea.sflag [#allocation3], %s169
          %s171 = sand.u32 %s83, 1
          %s172 = smul.addr %s171, 64
          %s173 = scalar_lea.vmem [#allocation8], %s172
          %s174 = smul.u32 2, %s25
          %s176 = ssub.s32 1024, 1024
          %177 = vsyncadd %s170, %s176
          %s178 = smul.addr %s24, 8
          %s179 = sadd.s32 %s174, %s178
          %s180 = smul.addr %s179, 128
          %s181 = scalar_lea.hbm %s2, %s180
          %s182 = sshll.u32 %s173, 4
          %s183 = int_to_ptr.vmem [resolvable:$true] %s182
          %188 = dma.hbm_to_vmem [thread:$0]  %s181, 1024, %s183, %s170, 128, 128, 8
        $region28: #{tpu_custom_call.1} parent=23 // pred_fallthru
          _
      $region24: #{tpu_custom_call.1} parent=5 // pred_fallthru
        _
      %p189 = scmp.le.s32.totalorder 1, %s17
      %p190 = scmp.lt.s32.totalorder %s17, 3
      %p191 = pnand %p189, %p190
      %p192 = pneg %p191
      // Predicated region
      $region29: #{tpu_custom_call.1} parent=5 // pred_check
        _
      $region30: #{tpu_custom_call.1} parent=5 // pred_check_branch
        %194 = sbr.rel (%p191) target = $region32
      $region31: #{tpu_custom_call.1} parent=5 // pred_region
        %s195 = ssub.s32 %s17, 1
        // Predicated region
        $region33: #{tpu_custom_call.1} parent=31 // pred_check
          %p196 = pneg %p50
        $region34: #{tpu_custom_call.1} parent=31 // pred_check_branch
          %198 = sbr.rel (%p196) target = $region36
        $region35: #{tpu_custom_call.1} parent=31 // pred_region
          %199 = dma.done [#allocation5], 16
        $region36: #{tpu_custom_call.1} parent=31 // pred_fallthru
          _
        // Predicated region
        $region37: #{tpu_custom_call.1} parent=31 // pred_check
          %p200 = pneg %p71
        $region38: #{tpu_custom_call.1} parent=31 // pred_check_branch
          %202 = sbr.rel (%p200) target = $region40
        $region39: #{tpu_custom_call.1} parent=31 // pred_region
          %203 = dma.done [#allocation6], 16
        $region40: #{tpu_custom_call.1} parent=31 // pred_fallthru
          _
        %s204 = sand.u32 %s86, 1
        %s205 = scalar_lea.sflag [#allocation3], %s204
        %s206 = sand.u32 %s86, 1
        %s207 = smul.addr %s206, 64
        %s208 = scalar_lea.vmem [#allocation8], %s207
        // Predicated region
        $region41: #{tpu_custom_call.1} parent=31 // pred_check
          %p209 = pneg %p99
        $region42: #{tpu_custom_call.1} parent=31 // pred_check_branch
          %211 = sbr.rel (%p209) target = $region44
        $region43: #{tpu_custom_call.1} parent=31 // pred_region
          %212 = dma.done %s205, 1024
        $region44: #{tpu_custom_call.1} parent=31 // pred_fallthru
          _
        %213 = sfence
        %p214 = pneg %p50
        %p215 = pneg %p47
        %p216 = pneg %p71
        %p217 = pneg %p68
        %s218 = sand.u32 %s86, 1
        %s219 = scalar_lea.sflag [#allocation3], %s218
        %s220 = sand.u32 %s86, 1
        %s221 = smul.addr %s220, 64
        %s222 = scalar_lea.vmem [#allocation8], %s221
        %p223 = pneg %p99
        %p224 = pneg %p96
        %p225 = pneg %p127
        %p226 = pneg %p124
        %s227 = sand.u32 %s114, 1
        %s228 = scalar_lea.sflag [#allocation4], %s227
        %s229 = sand.u32 %s114, 1
        %s230 = smul.addr %s229, 64
        %s231 = scalar_lea.vmem [#allocation9], %s230
        %s232 = smul.u32 2, %s27
        %s233 = smul.u32 2, %s27
        %v234 = vld [vmem:[%s208] sm:$0xff]
        %v235 = vld [vmem:[%s208 + $0x8] sm:$0xff]
        %236 = vxpose.xlu0.b32.start [1/16] %v234, 128
        %237 = vxpose.xlu0.b32.cont [2/16] %v235, 128
        %238 = vxpose.xlu0.b32.cont [3/16] 0.0, 128
        %239 = vxpose.xlu0.b32.cont [4/16] 0.0, 128
        %240 = vxpose.xlu0.b32.cont [5/16] 0.0, 128
        %241 = vxpose.xlu0.b32.cont [6/16] 0.0, 128
        %242 = vxpose.xlu0.b32.cont [7/16] 0.0, 128
        %243 = vxpose.xlu0.b32.cont [8/16] 0.0, 128
        %244 = vxpose.xlu0.b32.cont [9/16] 0.0, 128
        %245 = vxpose.xlu0.b32.cont [10/16] 0.0, 128
        %246 = vxpose.xlu0.b32.cont [11/16] 0.0, 128
        %247 = vxpose.xlu0.b32.cont [12/16] 0.0, 128
        %248 = vxpose.xlu0.b32.cont [13/16] 0.0, 128
        %249 = vxpose.xlu0.b32.cont [14/16] 0.0, 128
        %250 = vxpose.xlu0.b32.cont [15/16] 0.0, 128
        %251 = vxpose.xlu0.b32.end [16/16] 0.0, 128
        %v252 = vpop.trf.xlu0
        %v253 = vpop.trf.xlu0
        %v254 = vpop.trf.xlu0
        %v255 = vpop.trf.xlu0
        %v256 = vpop.trf.xlu0
        %v257 = vpop.trf.xlu0
        %v258 = vpop.trf.xlu0
        %v259 = vpop.trf.xlu0
        %v260 = vpop.trf.xlu0
        %v261 = vpop.trf.xlu0
        %v262 = vpop.trf.xlu0
        %v263 = vpop.trf.xlu0
        %v264 = vpop.trf.xlu0
        %v265 = vpop.trf.xlu0
        %v266 = vpop.trf.xlu0
        %v267 = vpop.trf.xlu0
        %s268 = scalar_lea.vmem %s208, 16 [#allocation8]
        %v269 = vld [vmem:[%s268] sm:$0xff]
        %v270 = vld [vmem:[%s268 + $0x8] sm:$0xff]
        %271 = vxpose.xlu0.b32.start [1/16] %v269, 128
        %272 = vxpose.xlu0.b32.cont [2/16] %v270, 128
        %273 = vxpose.xlu0.b32.cont [3/16] 0.0, 128
        %274 = vxpose.xlu0.b32.cont [4/16] 0.0, 128
        %275 = vxpose.xlu0.b32.cont [5/16] 0.0, 128
        %276 = vxpose.xlu0.b32.cont [6/16] 0.0, 128
        %277 = vxpose.xlu0.b32.cont [7/16] 0.0, 128
        %278 = vxpose.xlu0.b32.cont [8/16] 0.0, 128
        %279 = vxpose.xlu0.b32.cont [9/16] 0.0, 128
        %280 = vxpose.xlu0.b32.cont [10/16] 0.0, 128
        %281 = vxpose.xlu0.b32.cont [11/16] 0.0, 128
        %282 = vxpose.xlu0.b32.cont [12/16] 0.0, 128
        %283 = vxpose.xlu0.b32.cont [13/16] 0.0, 128
        %284 = vxpose.xlu0.b32.cont [14/16] 0.0, 128
        %285 = vxpose.xlu0.b32.cont [15/16] 0.0, 128
        %286 = vxpose.xlu0.b32.end [16/16] 0.0, 128
        %v287 = vpop.trf.xlu0
        %v288 = vpop.trf.xlu0
        %v289 = vpop.trf.xlu0
        %v290 = vpop.trf.xlu0
        %v291 = vpop.trf.xlu0
        %v292 = vpop.trf.xlu0
        %v293 = vpop.trf.xlu0
        %v294 = vpop.trf.xlu0
        %v295 = vpop.trf.xlu0
        %v296 = vpop.trf.xlu0
        %v297 = vpop.trf.xlu0
        %v298 = vpop.trf.xlu0
        %v299 = vpop.trf.xlu0
        %v300 = vpop.trf.xlu0
        %v301 = vpop.trf.xlu0
        %v302 = vpop.trf.xlu0
        %s303 = scalar_lea.vmem %s208, 32 [#allocation8]
        %v304 = vld [vmem:[%s303] sm:$0xff]
        %v305 = vld [vmem:[%s303 + $0x8] sm:$0xff]
        %306 = vxpose.xlu0.b32.start [1/16] %v304, 128
        %307 = vxpose.xlu0.b32.cont [2/16] %v305, 128
        %308 = vxpose.xlu0.b32.cont [3/16] 0.0, 128
        %309 = vxpose.xlu0.b32.cont [4/16] 0.0, 128
        %310 = vxpose.xlu0.b32.cont [5/16] 0.0, 128
        %311 = vxpose.xlu0.b32.cont [6/16] 0.0, 128
        %312 = vxpose.xlu0.b32.cont [7/16] 0.0, 128
        %313 = vxpose.xlu0.b32.cont [8/16] 0.0, 128
        %314 = vxpose.xlu0.b32.cont [9/16] 0.0, 128
        %315 = vxpose.xlu0.b32.cont [10/16] 0.0, 128
        %316 = vxpose.xlu0.b32.cont [11/16] 0.0, 128
        %317 = vxpose.xlu0.b32.cont [12/16] 0.0, 128
        %318 = vxpose.xlu0.b32.cont [13/16] 0.0, 128
        %319 = vxpose.xlu0.b32.cont [14/16] 0.0, 128
        %320 = vxpose.xlu0.b32.cont [15/16] 0.0, 128
        %321 = vxpose.xlu0.b32.end [16/16] 0.0, 128
        %v322 = vpop.trf.xlu0
        %v323 = vpop.trf.xlu0
        %v324 = vpop.trf.xlu0
        %v325 = vpop.trf.xlu0
        %v326 = vpop.trf.xlu0
        %v327 = vpop.trf.xlu0
        %v328 = vpop.trf.xlu0
        %v329 = vpop.trf.xlu0
        %v330 = vpop.trf.xlu0
        %v331 = vpop.trf.xlu0
        %v332 = vpop.trf.xlu0
        %v333 = vpop.trf.xlu0
        %v334 = vpop.trf.xlu0
        %v335 = vpop.trf.xlu0
        %v336 = vpop.trf.xlu0
        %v337 = vpop.trf.xlu0
        %s338 = scalar_lea.vmem %s208, 48 [#allocation8]
        %v339 = vld [vmem:[%s338] sm:$0xff]
        %v340 = vld [vmem:[%s338 + $0x8] sm:$0xff]
        %341 = vxpose.xlu0.b32.start [1/16] %v339, 128
        %342 = vxpose.xlu0.b32.cont [2/16] %v340, 128
        %343 = vxpose.xlu0.b32.cont [3/16] 0.0, 128
        %344 = vxpose.xlu0.b32.cont [4/16] 0.0, 128
        %345 = vxpose.xlu0.b32.cont [5/16] 0.0, 128
        %346 = vxpose.xlu0.b32.cont [6/16] 0.0, 128
        %347 = vxpose.xlu0.b32.cont [7/16] 0.0, 128
        %348 = vxpose.xlu0.b32.cont [8/16] 0.0, 128
        %349 = vxpose.xlu0.b32.cont [9/16] 0.0, 128
        %350 = vxpose.xlu0.b32.cont [10/16] 0.0, 128
        %351 = vxpose.xlu0.b32.cont [11/16] 0.0, 128
        %352 = vxpose.xlu0.b32.cont [12/16] 0.0, 128
        %353 = vxpose.xlu0.b32.cont [13/16] 0.0, 128
        %354 = vxpose.xlu0.b32.cont [14/16] 0.0, 128
        %355 = vxpose.xlu0.b32.cont [15/16] 0.0, 128
        %356 = vxpose.xlu0.b32.end [16/16] 0.0, 128
        %v357 = vpop.trf.xlu0
        %v358 = vpop.trf.xlu0
        %v359 = vpop.trf.xlu0
        %v360 = vpop.trf.xlu0
        %v361 = vpop.trf.xlu0
        %v362 = vpop.trf.xlu0
        %v363 = vpop.trf.xlu0
        %v364 = vpop.trf.xlu0
        %v365 = vpop.trf.xlu0
        %v366 = vpop.trf.xlu0
        %v367 = vpop.trf.xlu0
        %v368 = vpop.trf.xlu0
        %v369 = vpop.trf.xlu0
        %v370 = vpop.trf.xlu0
        %v371 = vpop.trf.xlu0
        %v372 = vpop.trf.xlu0
        %s373 = sld [smem:[#allocation2]]
        %v374 = vstv %s373
        %v375 = vmul.f32 %v252, %v374
        %v376 = vmul.f32 %v253, %v374
        %s377 = sld [smem:[#allocation2 + $0x1]]
        %v378 = vstv %s377
        %v379 = vmul.f32 %v287, %v378
        %v380 = vmul.f32 %v288, %v378
        %v381 = vadd.f32 %v375, %v379
        %v382 = vadd.f32 %v376, %v380
        %s383 = sld [smem:[#allocation2 + $0x2]]
        %v384 = vstv %s383
        %v385 = vmul.f32 %v322, %v384
        %v386 = vmul.f32 %v323, %v384
        %v387 = vadd.f32 %v381, %v385
        %v388 = vadd.f32 %v382, %v386
        %s389 = sld [smem:[#allocation2 + $0x3]]
        %v390 = vstv %s389
        %v391 = vmul.f32 %v357, %v390
        %v392 = vmul.f32 %v358, %v390
        %v393 = vadd.f32 %v387, %v391
        %v394 = vadd.f32 %v388, %v392
        %s395 = sld [smem:[#allocation7]]
        %v396 = vstv %s395
        %v397 = vadd.f32 %v393, %v396
        %v398 = vadd.f32 %v394, %v396
        %vm399 = vcmp.ge.f32.partialorder %v397, 0.0
        %vm400 = vcmp.ge.f32.partialorder %v398, 0.0
        %v401 = vmul.f32 %v397, 0.01
        %v402 = vmul.f32 %v398, 0.01
        %v403 = vsel %vm399, %v397, %v401
        %v404 = vsel %vm400, %v398, %v402
        %s405 = sld [smem:[#allocation2 + $0x4]]
        %v406 = vstv %s405
        %v407 = vmul.f32 %v252, %v406
        %v408 = vmul.f32 %v253, %v406
        %s409 = sld [smem:[#allocation2 + $0x5]]
        %v410 = vstv %s409
        %v411 = vmul.f32 %v287, %v410
        %v412 = vmul.f32 %v288, %v410
        %v413 = vadd.f32 %v407, %v411
        %v414 = vadd.f32 %v408, %v412
        %s415 = sld [smem:[#allocation2 + $0x6]]
        %v416 = vstv %s415
        %v417 = vmul.f32 %v322, %v416
        %v418 = vmul.f32 %v323, %v416
        %v419 = vadd.f32 %v413, %v417
        %v420 = vadd.f32 %v414, %v418
        %s421 = sld [smem:[#allocation2 + $0x7]]
        %v422 = vstv %s421
        %v423 = vmul.f32 %v357, %v422
        %v424 = vmul.f32 %v358, %v422
        %v425 = vadd.f32 %v419, %v423
        %v426 = vadd.f32 %v420, %v424
        %s427 = sld [smem:[#allocation7 + $0x1]]
        %v428 = vstv %s427
        %v429 = vadd.f32 %v425, %v428
        %v430 = vadd.f32 %v426, %v428
        %vm431 = vcmp.ge.f32.partialorder %v429, 0.0
        %vm432 = vcmp.ge.f32.partialorder %v430, 0.0
        %v433 = vmul.f32 %v429, 0.01
        %v434 = vmul.f32 %v430, 0.01
        %v435 = vsel %vm431, %v429, %v433
        %v436 = vsel %vm432, %v430, %v434
        %v439 = vcombine.high %v403, %v403
        %v441 = vunpack.c.l.s4 1966171168
        %v442 = vunpack.c.0.s8 %v441
        %v443 = vlaneseq
        %v444 = vshrl.u32 %v443, 7
        %v445 = vsub.s32 %v442, %v444
        %v446 = vrot.slane %v403, %v445
        %v448 = vunpack.c.l.s4 1966171168
        %v449 = vunpack.c.0.s8 %v448
        %v450 = vlaneseq
        %v451 = vshrl.u32 %v450, 7
        %v452 = vsub.s32 %v449, %v451
        %v453 = vrot.slane %v439, %v452
        %v454 = vcombine.high %v446, %v446
        %v455 = vcombine.high %v453, %v453
        %v457 = vunpack.c.l.s4 1966171168
        %v458 = vunpack.c.0.s8 %v457
        %v459 = vlaneseq
        %v460 = vshrl.u32 %v459, 7
        %v461 = vsub.s32 %v458, %v460
        %v462 = vrot.slane %v446, %v461
        %v464 = vunpack.c.l.s4 1966171168
        %v465 = vunpack.c.0.s8 %v464
        %v466 = vlaneseq
        %v467 = vshrl.u32 %v466, 7
        %v468 = vsub.s32 %v465, %v467
        %v469 = vrot.slane %v453, %v468
        %v471 = vunpack.c.l.s4 1966171168
        %v472 = vunpack.c.0.s8 %v471
        %v473 = vlaneseq
        %v474 = vshrl.u32 %v473, 7
        %v475 = vsub.s32 %v472, %v474
        %v476 = vrot.slane %v454, %v475
        %v478 = vunpack.c.l.s4 1966171168
        %v479 = vunpack.c.0.s8 %v478
        %v480 = vlaneseq
        %v481 = vshrl.u32 %v480, 7
        %v482 = vsub.s32 %v479, %v481
        %v483 = vrot.slane %v455, %v482
        %v484 = vcombine.high %v462, %v462
        %v485 = vcombine.high %v469, %v469
        %v486 = vcombine.high %v476, %v476
        %v487 = vcombine.high %v483, %v483
        %v488 = vcombine.high %v404, %v404
        %v490 = vunpack.c.l.s4 1966171168
        %v491 = vunpack.c.0.s8 %v490
        %v492 = vlaneseq
        %v493 = vshrl.u32 %v492, 7
        %v494 = vsub.s32 %v491, %v493
        %v495 = vrot.slane %v404, %v494
        %v497 = vunpack.c.l.s4 1966171168
        %v498 = vunpack.c.0.s8 %v497
        %v499 = vlaneseq
        %v500 = vshrl.u32 %v499, 7
        %v501 = vsub.s32 %v498, %v500
        %v502 = vrot.slane %v488, %v501
        %v503 = vcombine.high %v495, %v495
        %v504 = vcombine.high %v502, %v502
        %v506 = vunpack.c.l.s4 1966171168
        %v507 = vunpack.c.0.s8 %v506
        %v508 = vlaneseq
        %v509 = vshrl.u32 %v508, 7
        %v510 = vsub.s32 %v507, %v509
        %v511 = vrot.slane %v495, %v510
        %v513 = vunpack.c.l.s4 1966171168
        %v514 = vunpack.c.0.s8 %v513
        %v515 = vlaneseq
        %v516 = vshrl.u32 %v515, 7
        %v517 = vsub.s32 %v514, %v516
        %v518 = vrot.slane %v502, %v517
        %v520 = vunpack.c.l.s4 1966171168
        %v521 = vunpack.c.0.s8 %v520
        %v522 = vlaneseq
        %v523 = vshrl.u32 %v522, 7
        %v524 = vsub.s32 %v521, %v523
        %v525 = vrot.slane %v503, %v524
        %v527 = vunpack.c.l.s4 1966171168
        %v528 = vunpack.c.0.s8 %v527
        %v529 = vlaneseq
        %v530 = vshrl.u32 %v529, 7
        %v531 = vsub.s32 %v528, %v530
        %v532 = vrot.slane %v504, %v531
        %v533 = vcombine.high %v511, %v511
        %v534 = vcombine.high %v518, %v518
        %v535 = vcombine.high %v525, %v525
        %v536 = vcombine.high %v532, %v532
        %v555 = vcombine.high %v435, %v435
        %v557 = vunpack.c.l.s4 1966171168
        %v558 = vunpack.c.0.s8 %v557
        %v559 = vlaneseq
        %v560 = vshrl.u32 %v559, 7
        %v561 = vsub.s32 %v558, %v560
        %v562 = vrot.slane %v435, %v561
        %v564 = vunpack.c.l.s4 1966171168
        %v565 = vunpack.c.0.s8 %v564
        %v566 = vlaneseq
        %v567 = vshrl.u32 %v566, 7
        %v568 = vsub.s32 %v565, %v567
        %v569 = vrot.slane %v555, %v568
        %v570 = vcombine.high %v562, %v562
        %v571 = vcombine.high %v569, %v569
        %v573 = vunpack.c.l.s4 1966171168
        %v574 = vunpack.c.0.s8 %v573
        %v575 = vlaneseq
        %v576 = vshrl.u32 %v575, 7
        %v577 = vsub.s32 %v574, %v576
        %v578 = vrot.slane %v562, %v577
        %v580 = vunpack.c.l.s4 1966171168
        %v581 = vunpack.c.0.s8 %v580
        %v582 = vlaneseq
        %v583 = vshrl.u32 %v582, 7
        %v584 = vsub.s32 %v581, %v583
        %v585 = vrot.slane %v569, %v584
        %v587 = vunpack.c.l.s4 1966171168
        %v588 = vunpack.c.0.s8 %v587
        %v589 = vlaneseq
        %v590 = vshrl.u32 %v589, 7
        %v591 = vsub.s32 %v588, %v590
        %v592 = vrot.slane %v570, %v591
        %v594 = vunpack.c.l.s4 1966171168
        %v595 = vunpack.c.0.s8 %v594
        %v596 = vlaneseq
        %v597 = vshrl.u32 %v596, 7
        %v598 = vsub.s32 %v595, %v597
        %v599 = vrot.slane %v571, %v598
        %v600 = vcombine.high %v578, %v578
        %v601 = vcombine.high %v585, %v585
        %v602 = vcombine.high %v592, %v592
        %v603 = vcombine.high %v599, %v599
        %v604 = vcombine.high %v436, %v436
        %v606 = vunpack.c.l.s4 1966171168
        %v607 = vunpack.c.0.s8 %v606
        %v608 = vlaneseq
        %v609 = vshrl.u32 %v608, 7
        %v610 = vsub.s32 %v607, %v609
        %v611 = vrot.slane %v436, %v610
        %v613 = vunpack.c.l.s4 1966171168
        %v614 = vunpack.c.0.s8 %v613
        %v615 = vlaneseq
        %v616 = vshrl.u32 %v615, 7
        %v617 = vsub.s32 %v614, %v616
        %v618 = vrot.slane %v604, %v617
        %v619 = vcombine.high %v611, %v611
        %v620 = vcombine.high %v618, %v618
        %v622 = vunpack.c.l.s4 1966171168
        %v623 = vunpack.c.0.s8 %v622
        %v624 = vlaneseq
        %v625 = vshrl.u32 %v624, 7
        %v626 = vsub.s32 %v623, %v625
        %v627 = vrot.slane %v611, %v626
        %v629 = vunpack.c.l.s4 1966171168
        %v630 = vunpack.c.0.s8 %v629
        %v631 = vlaneseq
        %v632 = vshrl.u32 %v631, 7
        %v633 = vsub.s32 %v630, %v632
        %v634 = vrot.slane %v618, %v633
        %v636 = vunpack.c.l.s4 1966171168
        %v637 = vunpack.c.0.s8 %v636
        %v638 = vlaneseq
        %v639 = vshrl.u32 %v638, 7
        %v640 = vsub.s32 %v637, %v639
        %v641 = vrot.slane %v619, %v640
        %v643 = vunpack.c.l.s4 1966171168
        %v644 = vunpack.c.0.s8 %v643
        %v645 = vlaneseq
        %v646 = vshrl.u32 %v645, 7
        %v647 = vsub.s32 %v644, %v646
        %v648 = vrot.slane %v620, %v647
        %v649 = vcombine.high %v627, %v627
        %v650 = vcombine.high %v634, %v634
        %v651 = vcombine.high %v641, %v641
        %v652 = vcombine.high %v648, %v648
        %v653 = vlaneseq
        %v654 = vshrl.u32 %v653, 7
        %v655 = vsub.s32 0, %v654
        %v656 = vrot.slane %v578, %v655
        %v657 = vlaneseq
        %v658 = vshrl.u32 %v657, 7
        %v659 = vsub.s32 0, %v658
        %v660 = vrot.slane %v592, %v659
        %v661 = vlaneseq
        %v662 = vshrl.u32 %v661, 7
        %v663 = vsub.s32 0, %v662
        %v664 = vrot.slane %v600, %v663
        %v665 = vlaneseq
        %v666 = vshrl.u32 %v665, 7
        %v667 = vsub.s32 0, %v666
        %v668 = vrot.slane %v602, %v667
        %v669 = vlaneseq
        %v670 = vshrl.u32 %v669, 7
        %v671 = vsub.s32 0, %v670
        %v672 = vrot.slane %v585, %v671
        %v673 = vlaneseq
        %v674 = vshrl.u32 %v673, 7
        %v675 = vsub.s32 0, %v674
        %v676 = vrot.slane %v599, %v675
        %v677 = vlaneseq
        %v678 = vshrl.u32 %v677, 7
        %v679 = vsub.s32 0, %v678
        %v680 = vrot.slane %v601, %v679
        %v681 = vlaneseq
        %v682 = vshrl.u32 %v681, 7
        %v683 = vsub.s32 0, %v682
        %v684 = vrot.slane %v603, %v683
        %v685 = vlaneseq
        %v686 = vshrl.u32 %v685, 7
        %v687 = vsub.s32 0, %v686
        %v688 = vrot.slane %v627, %v687
        %v689 = vlaneseq
        %v690 = vshrl.u32 %v689, 7
        %v691 = vsub.s32 0, %v690
        %v692 = vrot.slane %v641, %v691
        %v693 = vlaneseq
        %v694 = vshrl.u32 %v693, 7
        %v695 = vsub.s32 0, %v694
        %v696 = vrot.slane %v649, %v695
        %v697 = vlaneseq
        %v698 = vshrl.u32 %v697, 7
        %v699 = vsub.s32 0, %v698
        %v700 = vrot.slane %v651, %v699
        %v701 = vlaneseq
        %v702 = vshrl.u32 %v701, 7
        %v703 = vsub.s32 0, %v702
        %v704 = vrot.slane %v634, %v703
        %v705 = vlaneseq
        %v706 = vshrl.u32 %v705, 7
        %v707 = vsub.s32 0, %v706
        %v708 = vrot.slane %v648, %v707
        %v709 = vlaneseq
        %v710 = vshrl.u32 %v709, 7
        %v711 = vsub.s32 0, %v710
        %v712 = vrot.slane %v650, %v711
        %v713 = vlaneseq
        %v714 = vshrl.u32 %v713, 7
        %v715 = vsub.s32 0, %v714
        %v716 = vrot.slane %v652, %v715
        %vm733 = vcmask 1040384
        %v734 = vsel %vm733, %v462, %v656
        %v735 = vsel %vm733, %v476, %v660
        %v736 = vsel %vm733, %v484, %v664
        %v737 = vsel %vm733, %v486, %v668
        %v738 = vsel %vm733, %v469, %v672
        %v739 = vsel %vm733, %v483, %v676
        %v740 = vsel %vm733, %v485, %v680
        %v741 = vsel %vm733, %v487, %v684
        %v742 = vsel %vm733, %v511, %v688
        %v743 = vsel %vm733, %v525, %v692
        %v744 = vsel %vm733, %v533, %v696
        %v745 = vsel %vm733, %v535, %v700
        %v746 = vsel %vm733, %v518, %v704
        %v747 = vsel %vm733, %v532, %v708
        %v748 = vsel %vm733, %v534, %v712
        %v749 = vsel %vm733, %v536, %v716
        %v766 = vcombine.low %v734, %v735
        %v767 = vcombine.low %v736, %v737
        %v769 = vunpack.c.l.s4 1983009808
        %v770 = vunpack.c.0.s8 %v769
        %v771 = vlaneseq
        %v772 = vshrl.u32 %v771, 7
        %v773 = vsub.s32 %v770, %v772
        %v774 = vrot.slane %v766, %v773
        %v776 = vunpack.c.l.s4 1983009808
        %v777 = vunpack.c.0.s8 %v776
        %v778 = vlaneseq
        %v779 = vshrl.u32 %v778, 7
        %v780 = vsub.s32 %v777, %v779
        %v781 = vrot.slane %v767, %v780
        %v782 = vcombine.low %v774, %v781
        %v783 = vcombine.low %v738, %v739
        %v784 = vcombine.low %v740, %v741
        %v786 = vunpack.c.l.s4 1983009808
        %v787 = vunpack.c.0.s8 %v786
        %v788 = vlaneseq
        %v789 = vshrl.u32 %v788, 7
        %v790 = vsub.s32 %v787, %v789
        %v791 = vrot.slane %v783, %v790
        %v793 = vunpack.c.l.s4 1983009808
        %v794 = vunpack.c.0.s8 %v793
        %v795 = vlaneseq
        %v796 = vshrl.u32 %v795, 7
        %v797 = vsub.s32 %v794, %v796
        %v798 = vrot.slane %v784, %v797
        %v799 = vcombine.low %v791, %v798
        %v800 = vcombine.low %v742, %v743
        %v801 = vcombine.low %v744, %v745
        %v803 = vunpack.c.l.s4 1983009808
        %v804 = vunpack.c.0.s8 %v803
        %v805 = vlaneseq
        %v806 = vshrl.u32 %v805, 7
        %v807 = vsub.s32 %v804, %v806
        %v808 = vrot.slane %v800, %v807
        %v810 = vunpack.c.l.s4 1983009808
        %v811 = vunpack.c.0.s8 %v810
        %v812 = vlaneseq
        %v813 = vshrl.u32 %v812, 7
        %v814 = vsub.s32 %v811, %v813
        %v815 = vrot.slane %v801, %v814
        %v816 = vcombine.low %v808, %v815
        %v817 = vcombine.low %v746, %v747
        %v818 = vcombine.low %v748, %v749
        %v820 = vunpack.c.l.s4 1983009808
        %v821 = vunpack.c.0.s8 %v820
        %v822 = vlaneseq
        %v823 = vshrl.u32 %v822, 7
        %v824 = vsub.s32 %v821, %v823
        %v825 = vrot.slane %v817, %v824
        %v827 = vunpack.c.l.s4 1983009808
        %v828 = vunpack.c.0.s8 %v827
        %v829 = vlaneseq
        %v830 = vshrl.u32 %v829, 7
        %v831 = vsub.s32 %v828, %v830
        %v832 = vrot.slane %v818, %v831
        %v833 = vcombine.low %v825, %v832
        %838 = vxpose.xlu0.b32.start [1/16] %v782, 128
        %839 = vxpose.xlu0.b32.cont [2/16] %v799, 128
        %840 = vxpose.xlu0.b32.cont [3/16] %v816, 128
        %841 = vxpose.xlu0.b32.cont [4/16] %v833, 128
        %842 = vxpose.xlu0.b32.cont [5/16] 0.0, 128
        %843 = vxpose.xlu0.b32.cont [6/16] 0.0, 128
        %844 = vxpose.xlu0.b32.cont [7/16] 0.0, 128
        %845 = vxpose.xlu0.b32.cont [8/16] 0.0, 128
        %846 = vxpose.xlu0.b32.cont [9/16] 0.0, 128
        %847 = vxpose.xlu0.b32.cont [10/16] 0.0, 128
        %848 = vxpose.xlu0.b32.cont [11/16] 0.0, 128
        %849 = vxpose.xlu0.b32.cont [12/16] 0.0, 128
        %850 = vxpose.xlu0.b32.cont [13/16] 0.0, 128
        %851 = vxpose.xlu0.b32.cont [14/16] 0.0, 128
        %852 = vxpose.xlu0.b32.cont [15/16] 0.0, 128
        %853 = vxpose.xlu0.b32.end [16/16] 0.0, 128
        %v854 = vpop.trf.xlu0
        %v855 = vpop.trf.xlu0
        %v856 = vpop.trf.xlu0
        %v857 = vpop.trf.xlu0
        %v858 = vpop.trf.xlu0
        %v859 = vpop.trf.xlu0
        %v860 = vpop.trf.xlu0
        %v861 = vpop.trf.xlu0
        %v862 = vpop.trf.xlu0
        %v863 = vpop.trf.xlu0
        %v864 = vpop.trf.xlu0
        %v865 = vpop.trf.xlu0
        %v866 = vpop.trf.xlu0
        %v867 = vpop.trf.xlu0
        %v868 = vpop.trf.xlu0
        %v869 = vpop.trf.xlu0
        %s870 = sld [smem:[#allocation2 + $0x8]]
        %v871 = vstv %s870
        %v872 = vmul.f32 %v252, %v871
        %v873 = vmul.f32 %v253, %v871
        %s874 = sld [smem:[#allocation2 + $0x9]]
        %v875 = vstv %s874
        %v876 = vmul.f32 %v287, %v875
        %v877 = vmul.f32 %v288, %v875
        %v878 = vadd.f32 %v872, %v876
        %v879 = vadd.f32 %v873, %v877
        %s880 = sld [smem:[#allocation2 + $0xa]]
        %v881 = vstv %s880
        %v882 = vmul.f32 %v322, %v881
        %v883 = vmul.f32 %v323, %v881
        %v884 = vadd.f32 %v878, %v882
        %v885 = vadd.f32 %v879, %v883
        %s886 = sld [smem:[#allocation2 + $0xb]]
        %v887 = vstv %s886
        %v888 = vmul.f32 %v357, %v887
        %v889 = vmul.f32 %v358, %v887
        %v890 = vadd.f32 %v884, %v888
        %v891 = vadd.f32 %v885, %v889
        %s892 = sld [smem:[#allocation7 + $0x2]]
        %v893 = vstv %s892
        %v894 = vadd.f32 %v890, %v893
        %v895 = vadd.f32 %v891, %v893
        %vm896 = vcmp.ge.f32.partialorder %v894, 0.0
        %vm897 = vcmp.ge.f32.partialorder %v895, 0.0
        %v898 = vmul.f32 %v894, 0.01
        %v899 = vmul.f32 %v895, 0.01
        %v900 = vsel %vm896, %v894, %v898
        %v901 = vsel %vm897, %v895, %v899
        %s902 = sld [smem:[#allocation2 + $0xc]]
        %v903 = vstv %s902
        %v904 = vmul.f32 %v252, %v903
        %v905 = vmul.f32 %v253, %v903
        %s906 = sld [smem:[#allocation2 + $0xd]]
        %v907 = vstv %s906
        %v908 = vmul.f32 %v287, %v907
        %v909 = vmul.f32 %v288, %v907
        %v910 = vadd.f32 %v904, %v908
        %v911 = vadd.f32 %v905, %v909
        %s912 = sld [smem:[#allocation2 + $0xe]]
        %v913 = vstv %s912
        %v914 = vmul.f32 %v322, %v913
        %v915 = vmul.f32 %v323, %v913
        %v916 = vadd.f32 %v910, %v914
        %v917 = vadd.f32 %v911, %v915
        %s918 = sld [smem:[#allocation2 + $0xf]]
        %v919 = vstv %s918
        %v920 = vmul.f32 %v357, %v919
        %v921 = vmul.f32 %v358, %v919
        %v922 = vadd.f32 %v916, %v920
        %v923 = vadd.f32 %v917, %v921
        %s924 = sld [smem:[#allocation7 + $0x3]]
        %v925 = vstv %s924
        %v926 = vadd.f32 %v922, %v925
        %v927 = vadd.f32 %v923, %v925
        %vm928 = vcmp.ge.f32.partialorder %v926, 0.0
        %vm929 = vcmp.ge.f32.partialorder %v927, 0.0
        %v930 = vmul.f32 %v926, 0.01
        %v931 = vmul.f32 %v927, 0.01
        %v932 = vsel %vm928, %v926, %v930
        %v933 = vsel %vm929, %v927, %v931
        %v936 = vcombine.high %v900, %v900
        %v938 = vunpack.c.l.s4 1966171168
        %v939 = vunpack.c.0.s8 %v938
        %v940 = vlaneseq
        %v941 = vshrl.u32 %v940, 7
        %v942 = vsub.s32 %v939, %v941
        %v943 = vrot.slane %v900, %v942
        %v945 = vunpack.c.l.s4 1966171168
        %v946 = vunpack.c.0.s8 %v945
        %v947 = vlaneseq
        %v948 = vshrl.u32 %v947, 7
        %v949 = vsub.s32 %v946, %v948
        %v950 = vrot.slane %v936, %v949
        %v951 = vcombine.high %v943, %v943
        %v952 = vcombine.high %v950, %v950
        %v954 = vunpack.c.l.s4 1966171168
        %v955 = vunpack.c.0.s8 %v954
        %v956 = vlaneseq
        %v957 = vshrl.u32 %v956, 7
        %v958 = vsub.s32 %v955, %v957
        %v959 = vrot.slane %v943, %v958
        %v961 = vunpack.c.l.s4 1966171168
        %v962 = vunpack.c.0.s8 %v961
        %v963 = vlaneseq
        %v964 = vshrl.u32 %v963, 7
        %v965 = vsub.s32 %v962, %v964
        %v966 = vrot.slane %v950, %v965
        %v968 = vunpack.c.l.s4 1966171168
        %v969 = vunpack.c.0.s8 %v968
        %v970 = vlaneseq
        %v971 = vshrl.u32 %v970, 7
        %v972 = vsub.s32 %v969, %v971
        %v973 = vrot.slane %v951, %v972
        %v975 = vunpack.c.l.s4 1966171168
        %v976 = vunpack.c.0.s8 %v975
        %v977 = vlaneseq
        %v978 = vshrl.u32 %v977, 7
        %v979 = vsub.s32 %v976, %v978
        %v980 = vrot.slane %v952, %v979
        %v981 = vcombine.high %v959, %v959
        %v982 = vcombine.high %v966, %v966
        %v983 = vcombine.high %v973, %v973
        %v984 = vcombine.high %v980, %v980
        %v985 = vcombine.high %v901, %v901
        %v987 = vunpack.c.l.s4 1966171168
        %v988 = vunpack.c.0.s8 %v987
        %v989 = vlaneseq
        %v990 = vshrl.u32 %v989, 7
        %v991 = vsub.s32 %v988, %v990
        %v992 = vrot.slane %v901, %v991
        %v994 = vunpack.c.l.s4 1966171168
        %v995 = vunpack.c.0.s8 %v994
        %v996 = vlaneseq
        %v997 = vshrl.u32 %v996, 7
        %v998 = vsub.s32 %v995, %v997
        %v999 = vrot.slane %v985, %v998
        %v1000 = vcombine.high %v992, %v992
        %v1001 = vcombine.high %v999, %v999
        %v1003 = vunpack.c.l.s4 1966171168
        %v1004 = vunpack.c.0.s8 %v1003
        %v1005 = vlaneseq
        %v1006 = vshrl.u32 %v1005, 7
        %v1007 = vsub.s32 %v1004, %v1006
        %v1008 = vrot.slane %v992, %v1007
        %v1010 = vunpack.c.l.s4 1966171168
        %v1011 = vunpack.c.0.s8 %v1010
        %v1012 = vlaneseq
        %v1013 = vshrl.u32 %v1012, 7
        %v1014 = vsub.s32 %v1011, %v1013
        %v1015 = vrot.slane %v999, %v1014
        %v1017 = vunpack.c.l.s4 1966171168
        %v1018 = vunpack.c.0.s8 %v1017
        %v1019 = vlaneseq
        %v1020 = vshrl.u32 %v1019, 7
        %v1021 = vsub.s32 %v1018, %v1020
        %v1022 = vrot.slane %v1000, %v1021
        %v1024 = vunpack.c.l.s4 1966171168
        %v1025 = vunpack.c.0.s8 %v1024
        %v1026 = vlaneseq
        %v1027 = vshrl.u32 %v1026, 7
        %v1028 = vsub.s32 %v1025, %v1027
        %v1029 = vrot.slane %v1001, %v1028
        %v1030 = vcombine.high %v1008, %v1008
        %v1031 = vcombine.high %v1015, %v1015
        %v1032 = vcombine.high %v1022, %v1022
        %v1033 = vcombine.high %v1029, %v1029
        %v1052 = vcombine.high %v932, %v932
        %v1054 = vunpack.c.l.s4 1966171168
        %v1055 = vunpack.c.0.s8 %v1054
        %v1056 = vlaneseq
        %v1057 = vshrl.u32 %v1056, 7
        %v1058 = vsub.s32 %v1055, %v1057
        %v1059 = vrot.slane %v932, %v1058
        %v1061 = vunpack.c.l.s4 1966171168
        %v1062 = vunpack.c.0.s8 %v1061
        %v1063 = vlaneseq
        %v1064 = vshrl.u32 %v1063, 7
        %v1065 = vsub.s32 %v1062, %v1064
        %v1066 = vrot.slane %v1052, %v1065
        %v1067 = vcombine.high %v1059, %v1059
        %v1068 = vcombine.high %v1066, %v1066
        %v1070 = vunpack.c.l.s4 1966171168
        %v1071 = vunpack.c.0.s8 %v1070
        %v1072 = vlaneseq
        %v1073 = vshrl.u32 %v1072, 7
        %v1074 = vsub.s32 %v1071, %v1073
        %v1075 = vrot.slane %v1059, %v1074
        %v1077 = vunpack.c.l.s4 1966171168
        %v1078 = vunpack.c.0.s8 %v1077
        %v1079 = vlaneseq
        %v1080 = vshrl.u32 %v1079, 7
        %v1081 = vsub.s32 %v1078, %v1080
        %v1082 = vrot.slane %v1066, %v1081
        %v1084 = vunpack.c.l.s4 1966171168
        %v1085 = vunpack.c.0.s8 %v1084
        %v1086 = vlaneseq
        %v1087 = vshrl.u32 %v1086, 7
        %v1088 = vsub.s32 %v1085, %v1087
        %v1089 = vrot.slane %v1067, %v1088
        %v1091 = vunpack.c.l.s4 1966171168
        %v1092 = vunpack.c.0.s8 %v1091
        %v1093 = vlaneseq
        %v1094 = vshrl.u32 %v1093, 7
        %v1095 = vsub.s32 %v1092, %v1094
        %v1096 = vrot.slane %v1068, %v1095
        %v1097 = vcombine.high %v1075, %v1075
        %v1098 = vcombine.high %v1082, %v1082
        %v1099 = vcombine.high %v1089, %v1089
        %v1100 = vcombine.high %v1096, %v1096
        %v1101 = vcombine.high %v933, %v933
        %v1103 = vunpack.c.l.s4 1966171168
        %v1104 = vunpack.c.0.s8 %v1103
        %v1105 = vlaneseq
        %v1106 = vshrl.u32 %v1105, 7
        %v1107 = vsub.s32 %v1104, %v1106
        %v1108 = vrot.slane %v933, %v1107
        %v1110 = vunpack.c.l.s4 1966171168
        %v1111 = vunpack.c.0.s8 %v1110
        %v1112 = vlaneseq
        %v1113 = vshrl.u32 %v1112, 7
        %v1114 = vsub.s32 %v1111, %v1113
        %v1115 = vrot.slane %v1101, %v1114
        %v1116 = vcombine.high %v1108, %v1108
        %v1117 = vcombine.high %v1115, %v1115
        %v1119 = vunpack.c.l.s4 1966171168
        %v1120 = vunpack.c.0.s8 %v1119
        %v1121 = vlaneseq
        %v1122 = vshrl.u32 %v1121, 7
        %v1123 = vsub.s32 %v1120, %v1122
        %v1124 = vrot.slane %v1108, %v1123
        %v1126 = vunpack.c.l.s4 1966171168
        %v1127 = vunpack.c.0.s8 %v1126
        %v1128 = vlaneseq
        %v1129 = vshrl.u32 %v1128, 7
        %v1130 = vsub.s32 %v1127, %v1129
        %v1131 = vrot.slane %v1115, %v1130
        %v1133 = vunpack.c.l.s4 1966171168
        %v1134 = vunpack.c.0.s8 %v1133
        %v1135 = vlaneseq
        %v1136 = vshrl.u32 %v1135, 7
        %v1137 = vsub.s32 %v1134, %v1136
        %v1138 = vrot.slane %v1116, %v1137
        %v1140 = vunpack.c.l.s4 1966171168
        %v1141 = vunpack.c.0.s8 %v1140
        %v1142 = vlaneseq
        %v1143 = vshrl.u32 %v1142, 7
        %v1144 = vsub.s32 %v1141, %v1143
        %v1145 = vrot.slane %v1117, %v1144
        %v1146 = vcombine.high %v1124, %v1124
        %v1147 = vcombine.high %v1131, %v1131
        %v1148 = vcombine.high %v1138, %v1138
        %v1149 = vcombine.high %v1145, %v1145
        %v1150 = vlaneseq
        %v1151 = vshrl.u32 %v1150, 7
        %v1152 = vsub.s32 0, %v1151
        %v1153 = vrot.slane %v1075, %v1152
        %v1154 = vlaneseq
        %v1155 = vshrl.u32 %v1154, 7
        %v1156 = vsub.s32 0, %v1155
        %v1157 = vrot.slane %v1089, %v1156
        %v1158 = vlaneseq
        %v1159 = vshrl.u32 %v1158, 7
        %v1160 = vsub.s32 0, %v1159
        %v1161 = vrot.slane %v1097, %v1160
        %v1162 = vlaneseq
        %v1163 = vshrl.u32 %v1162, 7
        %v1164 = vsub.s32 0, %v1163
        %v1165 = vrot.slane %v1099, %v1164
        %v1166 = vlaneseq
        %v1167 = vshrl.u32 %v1166, 7
        %v1168 = vsub.s32 0, %v1167
        %v1169 = vrot.slane %v1082, %v1168
        %v1170 = vlaneseq
        %v1171 = vshrl.u32 %v1170, 7
        %v1172 = vsub.s32 0, %v1171
        %v1173 = vrot.slane %v1096, %v1172
        %v1174 = vlaneseq
        %v1175 = vshrl.u32 %v1174, 7
        %v1176 = vsub.s32 0, %v1175
        %v1177 = vrot.slane %v1098, %v1176
        %v1178 = vlaneseq
        %v1179 = vshrl.u32 %v1178, 7
        %v1180 = vsub.s32 0, %v1179
        %v1181 = vrot.slane %v1100, %v1180
        %v1182 = vlaneseq
        %v1183 = vshrl.u32 %v1182, 7
        %v1184 = vsub.s32 0, %v1183
        %v1185 = vrot.slane %v1124, %v1184
        %v1186 = vlaneseq
        %v1187 = vshrl.u32 %v1186, 7
        %v1188 = vsub.s32 0, %v1187
        %v1189 = vrot.slane %v1138, %v1188
        %v1190 = vlaneseq
        %v1191 = vshrl.u32 %v1190, 7
        %v1192 = vsub.s32 0, %v1191
        %v1193 = vrot.slane %v1146, %v1192
        %v1194 = vlaneseq
        %v1195 = vshrl.u32 %v1194, 7
        %v1196 = vsub.s32 0, %v1195
        %v1197 = vrot.slane %v1148, %v1196
        %v1198 = vlaneseq
        %v1199 = vshrl.u32 %v1198, 7
        %v1200 = vsub.s32 0, %v1199
        %v1201 = vrot.slane %v1131, %v1200
        %v1202 = vlaneseq
        %v1203 = vshrl.u32 %v1202, 7
        %v1204 = vsub.s32 0, %v1203
        %v1205 = vrot.slane %v1145, %v1204
        %v1206 = vlaneseq
        %v1207 = vshrl.u32 %v1206, 7
        %v1208 = vsub.s32 0, %v1207
        %v1209 = vrot.slane %v1147, %v1208
        %v1210 = vlaneseq
        %v1211 = vshrl.u32 %v1210, 7
        %v1212 = vsub.s32 0, %v1211
        %v1213 = vrot.slane %v1149, %v1212
        %v1230 = vsel %vm733, %v959, %v1153
        %v1231 = vsel %vm733, %v973, %v1157
        %v1232 = vsel %vm733, %v981, %v1161
        %v1233 = vsel %vm733, %v983, %v1165
        %v1234 = vsel %vm733, %v966, %v1169
        %v1235 = vsel %vm733, %v980, %v1173
        %v1236 = vsel %vm733, %v982, %v1177
        %v1237 = vsel %vm733, %v984, %v1181
        %v1238 = vsel %vm733, %v1008, %v1185
        %v1239 = vsel %vm733, %v1022, %v1189
        %v1240 = vsel %vm733, %v1030, %v1193
        %v1241 = vsel %vm733, %v1032, %v1197
        %v1242 = vsel %vm733, %v1015, %v1201
        %v1243 = vsel %vm733, %v1029, %v1205
        %v1244 = vsel %vm733, %v1031, %v1209
        %v1245 = vsel %vm733, %v1033, %v1213
        %v1262 = vcombine.low %v1230, %v1231
        %v1263 = vcombine.low %v1232, %v1233
        %v1265 = vunpack.c.l.s4 1983009808
        %v1266 = vunpack.c.0.s8 %v1265
        %v1267 = vlaneseq
        %v1268 = vshrl.u32 %v1267, 7
        %v1269 = vsub.s32 %v1266, %v1268
        %v1270 = vrot.slane %v1262, %v1269
        %v1272 = vunpack.c.l.s4 1983009808
        %v1273 = vunpack.c.0.s8 %v1272
        %v1274 = vlaneseq
        %v1275 = vshrl.u32 %v1274, 7
        %v1276 = vsub.s32 %v1273, %v1275
        %v1277 = vrot.slane %v1263, %v1276
        %v1278 = vcombine.low %v1270, %v1277
        %v1279 = vcombine.low %v1234, %v1235
        %v1280 = vcombine.low %v1236, %v1237
        %v1282 = vunpack.c.l.s4 1983009808
        %v1283 = vunpack.c.0.s8 %v1282
        %v1284 = vlaneseq
        %v1285 = vshrl.u32 %v1284, 7
        %v1286 = vsub.s32 %v1283, %v1285
        %v1287 = vrot.slane %v1279, %v1286
        %v1289 = vunpack.c.l.s4 1983009808
        %v1290 = vunpack.c.0.s8 %v1289
        %v1291 = vlaneseq
        %v1292 = vshrl.u32 %v1291, 7
        %v1293 = vsub.s32 %v1290, %v1292
        %v1294 = vrot.slane %v1280, %v1293
        %v1295 = vcombine.low %v1287, %v1294
        %v1296 = vcombine.low %v1238, %v1239
        %v1297 = vcombine.low %v1240, %v1241
        %v1299 = vunpack.c.l.s4 1983009808
        %v1300 = vunpack.c.0.s8 %v1299
        %v1301 = vlaneseq
        %v1302 = vshrl.u32 %v1301, 7
        %v1303 = vsub.s32 %v1300, %v1302
        %v1304 = vrot.slane %v1296, %v1303
        %v1306 = vunpack.c.l.s4 1983009808
        %v1307 = vunpack.c.0.s8 %v1306
        %v1308 = vlaneseq
        %v1309 = vshrl.u32 %v1308, 7
        %v1310 = vsub.s32 %v1307, %v1309
        %v1311 = vrot.slane %v1297, %v1310
        %v1312 = vcombine.low %v1304, %v1311
        %v1313 = vcombine.low %v1242, %v1243
        %v1314 = vcombine.low %v1244, %v1245
        %v1316 = vunpack.c.l.s4 1983009808
        %v1317 = vunpack.c.0.s8 %v1316
        %v1318 = vlaneseq
        %v1319 = vshrl.u32 %v1318, 7
        %v1320 = vsub.s32 %v1317, %v1319
        %v1321 = vrot.slane %v1313, %v1320
        %v1323 = vunpack.c.l.s4 1983009808
        %v1324 = vunpack.c.0.s8 %v1323
        %v1325 = vlaneseq
        %v1326 = vshrl.u32 %v1325, 7
        %v1327 = vsub.s32 %v1324, %v1326
        %v1328 = vrot.slane %v1314, %v1327
        %v1329 = vcombine.low %v1321, %v1328
        %1334 = vxpose.xlu0.b32.start [1/16] %v1278, 128
        %1335 = vxpose.xlu0.b32.cont [2/16] %v1295, 128
        %1336 = vxpose.xlu0.b32.cont [3/16] %v1312, 128
        %1337 = vxpose.xlu0.b32.cont [4/16] %v1329, 128
        %1338 = vxpose.xlu0.b32.cont [5/16] 0.0, 128
        %1339 = vxpose.xlu0.b32.cont [6/16] 0.0, 128
        %1340 = vxpose.xlu0.b32.cont [7/16] 0.0, 128
        %1341 = vxpose.xlu0.b32.cont [8/16] 0.0, 128
        %1342 = vxpose.xlu0.b32.cont [9/16] 0.0, 128
        %1343 = vxpose.xlu0.b32.cont [10/16] 0.0, 128
        %1344 = vxpose.xlu0.b32.cont [11/16] 0.0, 128
        %1345 = vxpose.xlu0.b32.cont [12/16] 0.0, 128
        %1346 = vxpose.xlu0.b32.cont [13/16] 0.0, 128
        %1347 = vxpose.xlu0.b32.cont [14/16] 0.0, 128
        %1348 = vxpose.xlu0.b32.cont [15/16] 0.0, 128
        %1349 = vxpose.xlu0.b32.end [16/16] 0.0, 128
        %v1350 = vpop.trf.xlu0
        %v1351 = vpop.trf.xlu0
        %v1352 = vpop.trf.xlu0
        %v1353 = vpop.trf.xlu0
        %v1354 = vpop.trf.xlu0
        %v1355 = vpop.trf.xlu0
        %v1356 = vpop.trf.xlu0
        %v1357 = vpop.trf.xlu0
        %v1358 = vpop.trf.xlu0
        %v1359 = vpop.trf.xlu0
        %v1360 = vpop.trf.xlu0
        %v1361 = vpop.trf.xlu0
        %v1362 = vpop.trf.xlu0
        %v1363 = vpop.trf.xlu0
        %v1364 = vpop.trf.xlu0
        %v1365 = vpop.trf.xlu0
        %1368 = vrot.lane.b32.xlu0 %v1350, 32
        %v1369 = vpop.permute.xlu0 %1368
        %1370 = vrot.lane.b32.xlu0 %v1351, 32
        %v1371 = vpop.permute.xlu0 %1370
        %vm1374 = vcmask 261120
        %v1375 = vsel %vm1374, %v854, %v1369
        %v1376 = vsel %vm1374, %v855, %v1371
        %vm1377 = vcmask 523264
        %1378 = vst.msk [vmem:[%s231] sm:$0xff] %vm1377, %v1375
        %1379 = vst.msk [vmem:[%s231 + $0x8] sm:$0xff] %vm1377, %v1376
        %s1380 = sld [smem:[#allocation2 + $0x10]]
        %v1381 = vstv %s1380
        %v1382 = vmul.f32 %v252, %v1381
        %v1383 = vmul.f32 %v253, %v1381
        %s1384 = sld [smem:[#allocation2 + $0x11]]
        %v1385 = vstv %s1384
        %v1386 = vmul.f32 %v287, %v1385
        %v1387 = vmul.f32 %v288, %v1385
        %v1388 = vadd.f32 %v1382, %v1386
        %v1389 = vadd.f32 %v1383, %v1387
        %s1390 = sld [smem:[#allocation2 + $0x12]]
        %v1391 = vstv %s1390
        %v1392 = vmul.f32 %v322, %v1391
        %v1393 = vmul.f32 %v323, %v1391
        %v1394 = vadd.f32 %v1388, %v1392
        %v1395 = vadd.f32 %v1389, %v1393
        %s1396 = sld [smem:[#allocation2 + $0x13]]
        %v1397 = vstv %s1396
        %v1398 = vmul.f32 %v357, %v1397
        %v1399 = vmul.f32 %v358, %v1397
        %v1400 = vadd.f32 %v1394, %v1398
        %v1401 = vadd.f32 %v1395, %v1399
        %s1402 = sld [smem:[#allocation7 + $0x4]]
        %v1403 = vstv %s1402
        %v1404 = vadd.f32 %v1400, %v1403
        %v1405 = vadd.f32 %v1401, %v1403
        %vm1406 = vcmp.ge.f32.partialorder %v1404, 0.0
        %vm1407 = vcmp.ge.f32.partialorder %v1405, 0.0
        %v1408 = vmul.f32 %v1404, 0.01
        %v1409 = vmul.f32 %v1405, 0.01
        %v1410 = vsel %vm1406, %v1404, %v1408
        %v1411 = vsel %vm1407, %v1405, %v1409
        %s1412 = sld [smem:[#allocation2 + $0x14]]
        %v1413 = vstv %s1412
        %v1414 = vmul.f32 %v252, %v1413
        %v1415 = vmul.f32 %v253, %v1413
        %s1416 = sld [smem:[#allocation2 + $0x15]]
        %v1417 = vstv %s1416
        %v1418 = vmul.f32 %v287, %v1417
        %v1419 = vmul.f32 %v288, %v1417
        %v1420 = vadd.f32 %v1414, %v1418
        %v1421 = vadd.f32 %v1415, %v1419
        %s1422 = sld [smem:[#allocation2 + $0x16]]
        %v1423 = vstv %s1422
        %v1424 = vmul.f32 %v322, %v1423
        %v1425 = vmul.f32 %v323, %v1423
        %v1426 = vadd.f32 %v1420, %v1424
        %v1427 = vadd.f32 %v1421, %v1425
        %s1428 = sld [smem:[#allocation2 + $0x17]]
        %v1429 = vstv %s1428
        %v1430 = vmul.f32 %v357, %v1429
        %v1431 = vmul.f32 %v358, %v1429
        %v1432 = vadd.f32 %v1426, %v1430
        %v1433 = vadd.f32 %v1427, %v1431
        %s1434 = sld [smem:[#allocation7 + $0x5]]
        %v1435 = vstv %s1434
        %v1436 = vadd.f32 %v1432, %v1435
        %v1437 = vadd.f32 %v1433, %v1435
        %vm1438 = vcmp.ge.f32.partialorder %v1436, 0.0
        %vm1439 = vcmp.ge.f32.partialorder %v1437, 0.0
        %v1440 = vmul.f32 %v1436, 0.01
        %v1441 = vmul.f32 %v1437, 0.01
        %v1442 = vsel %vm1438, %v1436, %v1440
        %v1443 = vsel %vm1439, %v1437, %v1441
        %v1446 = vcombine.high %v1410, %v1410
        %v1448 = vunpack.c.l.s4 1966171168
        %v1449 = vunpack.c.0.s8 %v1448
        %v1450 = vlaneseq
        %v1451 = vshrl.u32 %v1450, 7
        %v1452 = vsub.s32 %v1449, %v1451
        %v1453 = vrot.slane %v1410, %v1452
        %v1455 = vunpack.c.l.s4 1966171168
        %v1456 = vunpack.c.0.s8 %v1455
        %v1457 = vlaneseq
        %v1458 = vshrl.u32 %v1457, 7
        %v1459 = vsub.s32 %v1456, %v1458
        %v1460 = vrot.slane %v1446, %v1459
        %v1461 = vcombine.high %v1453, %v1453
        %v1462 = vcombine.high %v1460, %v1460
        %v1464 = vunpack.c.l.s4 1966171168
        %v1465 = vunpack.c.0.s8 %v1464
        %v1466 = vlaneseq
        %v1467 = vshrl.u32 %v1466, 7
        %v1468 = vsub.s32 %v1465, %v1467
        %v1469 = vrot.slane %v1453, %v1468
        %v1471 = vunpack.c.l.s4 1966171168
        %v1472 = vunpack.c.0.s8 %v1471
        %v1473 = vlaneseq
        %v1474 = vshrl.u32 %v1473, 7
        %v1475 = vsub.s32 %v1472, %v1474
        %v1476 = vrot.slane %v1460, %v1475
        %v1478 = vunpack.c.l.s4 1966171168
        %v1479 = vunpack.c.0.s8 %v1478
        %v1480 = vlaneseq
        %v1481 = vshrl.u32 %v1480, 7
        %v1482 = vsub.s32 %v1479, %v1481
        %v1483 = vrot.slane %v1461, %v1482
        %v1485 = vunpack.c.l.s4 1966171168
        %v1486 = vunpack.c.0.s8 %v1485
        %v1487 = vlaneseq
        %v1488 = vshrl.u32 %v1487, 7
        %v1489 = vsub.s32 %v1486, %v1488
        %v1490 = vrot.slane %v1462, %v1489
        %v1491 = vcombine.high %v1469, %v1469
        %v1492 = vcombine.high %v1476, %v1476
        %v1493 = vcombine.high %v1483, %v1483
        %v1494 = vcombine.high %v1490, %v1490
        %v1495 = vcombine.high %v1411, %v1411
        %v1497 = vunpack.c.l.s4 1966171168
        %v1498 = vunpack.c.0.s8 %v1497
        %v1499 = vlaneseq
        %v1500 = vshrl.u32 %v1499, 7
        %v1501 = vsub.s32 %v1498, %v1500
        %v1502 = vrot.slane %v1411, %v1501
        %v1504 = vunpack.c.l.s4 1966171168
        %v1505 = vunpack.c.0.s8 %v1504
        %v1506 = vlaneseq
        %v1507 = vshrl.u32 %v1506, 7
        %v1508 = vsub.s32 %v1505, %v1507
        %v1509 = vrot.slane %v1495, %v1508
        %v1510 = vcombine.high %v1502, %v1502
        %v1511 = vcombine.high %v1509, %v1509
        %v1513 = vunpack.c.l.s4 1966171168
        %v1514 = vunpack.c.0.s8 %v1513
        %v1515 = vlaneseq
        %v1516 = vshrl.u32 %v1515, 7
        %v1517 = vsub.s32 %v1514, %v1516
        %v1518 = vrot.slane %v1502, %v1517
        %v1520 = vunpack.c.l.s4 1966171168
        %v1521 = vunpack.c.0.s8 %v1520
        %v1522 = vlaneseq
        %v1523 = vshrl.u32 %v1522, 7
        %v1524 = vsub.s32 %v1521, %v1523
        %v1525 = vrot.slane %v1509, %v1524
        %v1527 = vunpack.c.l.s4 1966171168
        %v1528 = vunpack.c.0.s8 %v1527
        %v1529 = vlaneseq
        %v1530 = vshrl.u32 %v1529, 7
        %v1531 = vsub.s32 %v1528, %v1530
        %v1532 = vrot.slane %v1510, %v1531
        %v1534 = vunpack.c.l.s4 1966171168
        %v1535 = vunpack.c.0.s8 %v1534
        %v1536 = vlaneseq
        %v1537 = vshrl.u32 %v1536, 7
        %v1538 = vsub.s32 %v1535, %v1537
        %v1539 = vrot.slane %v1511, %v1538
        %v1540 = vcombine.high %v1518, %v1518
        %v1541 = vcombine.high %v1525, %v1525
        %v1542 = vcombine.high %v1532, %v1532
        %v1543 = vcombine.high %v1539, %v1539
        %v1562 = vcombine.high %v1442, %v1442
        %v1564 = vunpack.c.l.s4 1966171168
        %v1565 = vunpack.c.0.s8 %v1564
        %v1566 = vlaneseq
        %v1567 = vshrl.u32 %v1566, 7
        %v1568 = vsub.s32 %v1565, %v1567
        %v1569 = vrot.slane %v1442, %v1568
        %v1571 = vunpack.c.l.s4 1966171168
        %v1572 = vunpack.c.0.s8 %v1571
        %v1573 = vlaneseq
        %v1574 = vshrl.u32 %v1573, 7
        %v1575 = vsub.s32 %v1572, %v1574
        %v1576 = vrot.slane %v1562, %v1575
        %v1577 = vcombine.high %v1569, %v1569
        %v1578 = vcombine.high %v1576, %v1576
        %v1580 = vunpack.c.l.s4 1966171168
        %v1581 = vunpack.c.0.s8 %v1580
        %v1582 = vlaneseq
        %v1583 = vshrl.u32 %v1582, 7
        %v1584 = vsub.s32 %v1581, %v1583
        %v1585 = vrot.slane %v1569, %v1584
        %v1587 = vunpack.c.l.s4 1966171168
        %v1588 = vunpack.c.0.s8 %v1587
        %v1589 = vlaneseq
        %v1590 = vshrl.u32 %v1589, 7
        %v1591 = vsub.s32 %v1588, %v1590
        %v1592 = vrot.slane %v1576, %v1591
        %v1594 = vunpack.c.l.s4 1966171168
        %v1595 = vunpack.c.0.s8 %v1594
        %v1596 = vlaneseq
        %v1597 = vshrl.u32 %v1596, 7
        %v1598 = vsub.s32 %v1595, %v1597
        %v1599 = vrot.slane %v1577, %v1598
        %v1601 = vunpack.c.l.s4 1966171168
        %v1602 = vunpack.c.0.s8 %v1601
        %v1603 = vlaneseq
        %v1604 = vshrl.u32 %v1603, 7
        %v1605 = vsub.s32 %v1602, %v1604
        %v1606 = vrot.slane %v1578, %v1605
        %v1607 = vcombine.high %v1585, %v1585
        %v1608 = vcombine.high %v1592, %v1592
        %v1609 = vcombine.high %v1599, %v1599
        %v1610 = vcombine.high %v1606, %v1606
        %v1611 = vcombine.high %v1443, %v1443
        %v1613 = vunpack.c.l.s4 1966171168
        %v1614 = vunpack.c.0.s8 %v1613
        %v1615 = vlaneseq
        %v1616 = vshrl.u32 %v1615, 7
        %v1617 = vsub.s32 %v1614, %v1616
        %v1618 = vrot.slane %v1443, %v1617
        %v1620 = vunpack.c.l.s4 1966171168
        %v1621 = vunpack.c.0.s8 %v1620
        %v1622 = vlaneseq
        %v1623 = vshrl.u32 %v1622, 7
        %v1624 = vsub.s32 %v1621, %v1623
        %v1625 = vrot.slane %v1611, %v1624
        %v1626 = vcombine.high %v1618, %v1618
        %v1627 = vcombine.high %v1625, %v1625
        %v1629 = vunpack.c.l.s4 1966171168
        %v1630 = vunpack.c.0.s8 %v1629
        %v1631 = vlaneseq
        %v1632 = vshrl.u32 %v1631, 7
        %v1633 = vsub.s32 %v1630, %v1632
        %v1634 = vrot.slane %v1618, %v1633
        %v1636 = vunpack.c.l.s4 1966171168
        %v1637 = vunpack.c.0.s8 %v1636
        %v1638 = vlaneseq
        %v1639 = vshrl.u32 %v1638, 7
        %v1640 = vsub.s32 %v1637, %v1639
        %v1641 = vrot.slane %v1625, %v1640
        %v1643 = vunpack.c.l.s4 1966171168
        %v1644 = vunpack.c.0.s8 %v1643
        %v1645 = vlaneseq
        %v1646 = vshrl.u32 %v1645, 7
        %v1647 = vsub.s32 %v1644, %v1646
        %v1648 = vrot.slane %v1626, %v1647
        %v1650 = vunpack.c.l.s4 1966171168
        %v1651 = vunpack.c.0.s8 %v1650
        %v1652 = vlaneseq
        %v1653 = vshrl.u32 %v1652, 7
        %v1654 = vsub.s32 %v1651, %v1653
        %v1655 = vrot.slane %v1627, %v1654
        %v1656 = vcombine.high %v1634, %v1634
        %v1657 = vcombine.high %v1641, %v1641
        %v1658 = vcombine.high %v1648, %v1648
        %v1659 = vcombine.high %v1655, %v1655
        %v1660 = vlaneseq
        %v1661 = vshrl.u32 %v1660, 7
        %v1662 = vsub.s32 0, %v1661
        %v1663 = vrot.slane %v1585, %v1662
        %v1664 = vlaneseq
        %v1665 = vshrl.u32 %v1664, 7
        %v1666 = vsub.s32 0, %v1665
        %v1667 = vrot.slane %v1599, %v1666
        %v1668 = vlaneseq
        %v1669 = vshrl.u32 %v1668, 7
        %v1670 = vsub.s32 0, %v1669
        %v1671 = vrot.slane %v1607, %v1670
        %v1672 = vlaneseq
        %v1673 = vshrl.u32 %v1672, 7
        %v1674 = vsub.s32 0, %v1673
        %v1675 = vrot.slane %v1609, %v1674
        %v1676 = vlaneseq
        %v1677 = vshrl.u32 %v1676, 7
        %v1678 = vsub.s32 0, %v1677
        %v1679 = vrot.slane %v1592, %v1678
        %v1680 = vlaneseq
        %v1681 = vshrl.u32 %v1680, 7
        %v1682 = vsub.s32 0, %v1681
        %v1683 = vrot.slane %v1606, %v1682
        %v1684 = vlaneseq
        %v1685 = vshrl.u32 %v1684, 7
        %v1686 = vsub.s32 0, %v1685
        %v1687 = vrot.slane %v1608, %v1686
        %v1688 = vlaneseq
        %v1689 = vshrl.u32 %v1688, 7
        %v1690 = vsub.s32 0, %v1689
        %v1691 = vrot.slane %v1610, %v1690
        %v1692 = vlaneseq
        %v1693 = vshrl.u32 %v1692, 7
        %v1694 = vsub.s32 0, %v1693
        %v1695 = vrot.slane %v1634, %v1694
        %v1696 = vlaneseq
        %v1697 = vshrl.u32 %v1696, 7
        %v1698 = vsub.s32 0, %v1697
        %v1699 = vrot.slane %v1648, %v1698
        %v1700 = vlaneseq
        %v1701 = vshrl.u32 %v1700, 7
        %v1702 = vsub.s32 0, %v1701
        %v1703 = vrot.slane %v1656, %v1702
        %v1704 = vlaneseq
        %v1705 = vshrl.u32 %v1704, 7
        %v1706 = vsub.s32 0, %v1705
        %v1707 = vrot.slane %v1658, %v1706
        %v1708 = vlaneseq
        %v1709 = vshrl.u32 %v1708, 7
        %v1710 = vsub.s32 0, %v1709
        %v1711 = vrot.slane %v1641, %v1710
        %v1712 = vlaneseq
        %v1713 = vshrl.u32 %v1712, 7
        %v1714 = vsub.s32 0, %v1713
        %v1715 = vrot.slane %v1655, %v1714
        %v1716 = vlaneseq
        %v1717 = vshrl.u32 %v1716, 7
        %v1718 = vsub.s32 0, %v1717
        %v1719 = vrot.slane %v1657, %v1718
        %v1720 = vlaneseq
        %v1721 = vshrl.u32 %v1720, 7
        %v1722 = vsub.s32 0, %v1721
        %v1723 = vrot.slane %v1659, %v1722
        %v1740 = vsel %vm733, %v1469, %v1663
        %v1741 = vsel %vm733, %v1483, %v1667
        %v1742 = vsel %vm733, %v1491, %v1671
        %v1743 = vsel %vm733, %v1493, %v1675
        %v1744 = vsel %vm733, %v1476, %v1679
        %v1745 = vsel %vm733, %v1490, %v1683
        %v1746 = vsel %vm733, %v1492, %v1687
        %v1747 = vsel %vm733, %v1494, %v1691
        %v1748 = vsel %vm733, %v1518, %v1695
        %v1749 = vsel %vm733, %v1532, %v1699
        %v1750 = vsel %vm733, %v1540, %v1703
        %v1751 = vsel %vm733, %v1542, %v1707
        %v1752 = vsel %vm733, %v1525, %v1711
        %v1753 = vsel %vm733, %v1539, %v1715
        %v1754 = vsel %vm733, %v1541, %v1719
        %v1755 = vsel %vm733, %v1543, %v1723
        %v1772 = vcombine.low %v1740, %v1741
        %v1773 = vcombine.low %v1742, %v1743
        %v1775 = vunpack.c.l.s4 1983009808
        %v1776 = vunpack.c.0.s8 %v1775
        %v1777 = vlaneseq
        %v1778 = vshrl.u32 %v1777, 7
        %v1779 = vsub.s32 %v1776, %v1778
        %v1780 = vrot.slane %v1772, %v1779
        %v1782 = vunpack.c.l.s4 1983009808
        %v1783 = vunpack.c.0.s8 %v1782
        %v1784 = vlaneseq
        %v1785 = vshrl.u32 %v1784, 7
        %v1786 = vsub.s32 %v1783, %v1785
        %v1787 = vrot.slane %v1773, %v1786
        %v1788 = vcombine.low %v1780, %v1787
        %v1789 = vcombine.low %v1744, %v1745
        %v1790 = vcombine.low %v1746, %v1747
        %v1792 = vunpack.c.l.s4 1983009808
        %v1793 = vunpack.c.0.s8 %v1792
        %v1794 = vlaneseq
        %v1795 = vshrl.u32 %v1794, 7
        %v1796 = vsub.s32 %v1793, %v1795
        %v1797 = vrot.slane %v1789, %v1796
        %v1799 = vunpack.c.l.s4 1983009808
        %v1800 = vunpack.c.0.s8 %v1799
        %v1801 = vlaneseq
        %v1802 = vshrl.u32 %v1801, 7
        %v1803 = vsub.s32 %v1800, %v1802
        %v1804 = vrot.slane %v1790, %v1803
        %v1805 = vcombine.low %v1797, %v1804
        %v1806 = vcombine.low %v1748, %v1749
        %v1807 = vcombine.low %v1750, %v1751
        %v1809 = vunpack.c.l.s4 1983009808
        %v1810 = vunpack.c.0.s8 %v1809
        %v1811 = vlaneseq
        %v1812 = vshrl.u32 %v1811, 7
        %v1813 = vsub.s32 %v1810, %v1812
        %v1814 = vrot.slane %v1806, %v1813
        %v1816 = vunpack.c.l.s4 1983009808
        %v1817 = vunpack.c.0.s8 %v1816
        %v1818 = vlaneseq
        %v1819 = vshrl.u32 %v1818, 7
        %v1820 = vsub.s32 %v1817, %v1819
        %v1821 = vrot.slane %v1807, %v1820
        %v1822 = vcombine.low %v1814, %v1821
        %v1823 = vcombine.low %v1752, %v1753
        %v1824 = vcombine.low %v1754, %v1755
        %v1826 = vunpack.c.l.s4 1983009808
        %v1827 = vunpack.c.0.s8 %v1826
        %v1828 = vlaneseq
        %v1829 = vshrl.u32 %v1828, 7
        %v1830 = vsub.s32 %v1827, %v1829
        %v1831 = vrot.slane %v1823, %v1830
        %v1833 = vunpack.c.l.s4 1983009808
        %v1834 = vunpack.c.0.s8 %v1833
        %v1835 = vlaneseq
        %v1836 = vshrl.u32 %v1835, 7
        %v1837 = vsub.s32 %v1834, %v1836
        %v1838 = vrot.slane %v1824, %v1837
        %v1839 = vcombine.low %v1831, %v1838
        %1844 = vxpose.xlu0.b32.start [1/16] %v1788, 128
        %1845 = vxpose.xlu0.b32.cont [2/16] %v1805, 128
        %1846 = vxpose.xlu0.b32.cont [3/16] %v1822, 128
        %1847 = vxpose.xlu0.b32.cont [4/16] %v1839, 128
        %1848 = vxpose.xlu0.b32.cont [5/16] 0.0, 128
        %1849 = vxpose.xlu0.b32.cont [6/16] 0.0, 128
        %1850 = vxpose.xlu0.b32.cont [7/16] 0.0, 128
        %1851 = vxpose.xlu0.b32.cont [8/16] 0.0, 128
        %1852 = vxpose.xlu0.b32.cont [9/16] 0.0, 128
        %1853 = vxpose.xlu0.b32.cont [10/16] 0.0, 128
        %1854 = vxpose.xlu0.b32.cont [11/16] 0.0, 128
        %1855 = vxpose.xlu0.b32.cont [12/16] 0.0, 128
        %1856 = vxpose.xlu0.b32.cont [13/16] 0.0, 128
        %1857 = vxpose.xlu0.b32.cont [14/16] 0.0, 128
        %1858 = vxpose.xlu0.b32.cont [15/16] 0.0, 128
        %1859 = vxpose.xlu0.b32.end [16/16] 0.0, 128
        %v1860 = vpop.trf.xlu0
        %v1861 = vpop.trf.xlu0
        %v1862 = vpop.trf.xlu0
        %v1863 = vpop.trf.xlu0
        %v1864 = vpop.trf.xlu0
        %v1865 = vpop.trf.xlu0
        %v1866 = vpop.trf.xlu0
        %v1867 = vpop.trf.xlu0
        %v1868 = vpop.trf.xlu0
        %v1869 = vpop.trf.xlu0
        %v1870 = vpop.trf.xlu0
        %v1871 = vpop.trf.xlu0
        %v1872 = vpop.trf.xlu0
        %v1873 = vpop.trf.xlu0
        %v1874 = vpop.trf.xlu0
        %v1875 = vpop.trf.xlu0
        %s1876 = sld [smem:[#allocation2 + $0x18]]
        %v1877 = vstv %s1876
        %v1878 = vmul.f32 %v252, %v1877
        %v1879 = vmul.f32 %v253, %v1877
        %s1880 = sld [smem:[#allocation2 + $0x19]]
        %v1881 = vstv %s1880
        %v1882 = vmul.f32 %v287, %v1881
        %v1883 = vmul.f32 %v288, %v1881
        %v1884 = vadd.f32 %v1878, %v1882
        %v1885 = vadd.f32 %v1879, %v1883
        %s1886 = sld [smem:[#allocation2 + $0x1a]]
        %v1887 = vstv %s1886
        %v1888 = vmul.f32 %v322, %v1887
        %v1889 = vmul.f32 %v323, %v1887
        %v1890 = vadd.f32 %v1884, %v1888
        %v1891 = vadd.f32 %v1885, %v1889
        %s1892 = sld [smem:[#allocation2 + $0x1b]]
        %v1893 = vstv %s1892
        %v1894 = vmul.f32 %v357, %v1893
        %v1895 = vmul.f32 %v358, %v1893
        %v1896 = vadd.f32 %v1890, %v1894
        %v1897 = vadd.f32 %v1891, %v1895
        %s1898 = sld [smem:[#allocation7 + $0x6]]
        %v1899 = vstv %s1898
        %v1900 = vadd.f32 %v1896, %v1899
        %v1901 = vadd.f32 %v1897, %v1899
        %vm1902 = vcmp.ge.f32.partialorder %v1900, 0.0
        %vm1903 = vcmp.ge.f32.partialorder %v1901, 0.0
        %v1904 = vmul.f32 %v1900, 0.01
        %v1905 = vmul.f32 %v1901, 0.01
        %v1906 = vsel %vm1902, %v1900, %v1904
        %v1907 = vsel %vm1903, %v1901, %v1905
        %s1908 = sld [smem:[#allocation2 + $0x1c]]
        %v1909 = vstv %s1908
        %v1910 = vmul.f32 %v252, %v1909
        %v1911 = vmul.f32 %v253, %v1909
        %s1912 = sld [smem:[#allocation2 + $0x1d]]
        %v1913 = vstv %s1912
        %v1914 = vmul.f32 %v287, %v1913
        %v1915 = vmul.f32 %v288, %v1913
        %v1916 = vadd.f32 %v1910, %v1914
        %v1917 = vadd.f32 %v1911, %v1915
        %s1918 = sld [smem:[#allocation2 + $0x1e]]
        %v1919 = vstv %s1918
        %v1920 = vmul.f32 %v322, %v1919
        %v1921 = vmul.f32 %v323, %v1919
        %v1922 = vadd.f32 %v1916, %v1920
        %v1923 = vadd.f32 %v1917, %v1921
        %s1924 = sld [smem:[#allocation2 + $0x1f]]
        %v1925 = vstv %s1924
        %v1926 = vmul.f32 %v357, %v1925
        %v1927 = vmul.f32 %v358, %v1925
        %v1928 = vadd.f32 %v1922, %v1926
        %v1929 = vadd.f32 %v1923, %v1927
        %s1930 = sld [smem:[#allocation7 + $0x7]]
        %v1931 = vstv %s1930
        %v1932 = vadd.f32 %v1928, %v1931
        %v1933 = vadd.f32 %v1929, %v1931
        %vm1934 = vcmp.ge.f32.partialorder %v1932, 0.0
        %vm1935 = vcmp.ge.f32.partialorder %v1933, 0.0
        %v1936 = vmul.f32 %v1932, 0.01
        %v1937 = vmul.f32 %v1933, 0.01
        %v1938 = vsel %vm1934, %v1932, %v1936
        %v1939 = vsel %vm1935, %v1933, %v1937
        %v1942 = vcombine.high %v1906, %v1906
        %v1944 = vunpack.c.l.s4 1966171168
        %v1945 = vunpack.c.0.s8 %v1944
        %v1946 = vlaneseq
        %v1947 = vshrl.u32 %v1946, 7
        %v1948 = vsub.s32 %v1945, %v1947
        %v1949 = vrot.slane %v1906, %v1948
        %v1951 = vunpack.c.l.s4 1966171168
        %v1952 = vunpack.c.0.s8 %v1951
        %v1953 = vlaneseq
        %v1954 = vshrl.u32 %v1953, 7
        %v1955 = vsub.s32 %v1952, %v1954
        %v1956 = vrot.slane %v1942, %v1955
        %v1957 = vcombine.high %v1949, %v1949
        %v1958 = vcombine.high %v1956, %v1956
        %v1960 = vunpack.c.l.s4 1966171168
        %v1961 = vunpack.c.0.s8 %v1960
        %v1962 = vlaneseq
        %v1963 = vshrl.u32 %v1962, 7
        %v1964 = vsub.s32 %v1961, %v1963
        %v1965 = vrot.slane %v1949, %v1964
        %v1967 = vunpack.c.l.s4 1966171168
        %v1968 = vunpack.c.0.s8 %v1967
        %v1969 = vlaneseq
        %v1970 = vshrl.u32 %v1969, 7
        %v1971 = vsub.s32 %v1968, %v1970
        %v1972 = vrot.slane %v1956, %v1971
        %v1974 = vunpack.c.l.s4 1966171168
        %v1975 = vunpack.c.0.s8 %v1974
        %v1976 = vlaneseq
        %v1977 = vshrl.u32 %v1976, 7
        %v1978 = vsub.s32 %v1975, %v1977
        %v1979 = vrot.slane %v1957, %v1978
        %v1981 = vunpack.c.l.s4 1966171168
        %v1982 = vunpack.c.0.s8 %v1981
        %v1983 = vlaneseq
        %v1984 = vshrl.u32 %v1983, 7
        %v1985 = vsub.s32 %v1982, %v1984
        %v1986 = vrot.slane %v1958, %v1985
        %v1987 = vcombine.high %v1965, %v1965
        %v1988 = vcombine.high %v1972, %v1972
        %v1989 = vcombine.high %v1979, %v1979
        %v1990 = vcombine.high %v1986, %v1986
        %v1991 = vcombine.high %v1907, %v1907
        %v1993 = vunpack.c.l.s4 1966171168
        %v1994 = vunpack.c.0.s8 %v1993
        %v1995 = vlaneseq
        %v1996 = vshrl.u32 %v1995, 7
        %v1997 = vsub.s32 %v1994, %v1996
        %v1998 = vrot.slane %v1907, %v1997
        %v2000 = vunpack.c.l.s4 1966171168
        %v2001 = vunpack.c.0.s8 %v2000
        %v2002 = vlaneseq
        %v2003 = vshrl.u32 %v2002, 7
        %v2004 = vsub.s32 %v2001, %v2003
        %v2005 = vrot.slane %v1991, %v2004
        %v2006 = vcombine.high %v1998, %v1998
        %v2007 = vcombine.high %v2005, %v2005
        %v2009 = vunpack.c.l.s4 1966171168
        %v2010 = vunpack.c.0.s8 %v2009
        %v2011 = vlaneseq
        %v2012 = vshrl.u32 %v2011, 7
        %v2013 = vsub.s32 %v2010, %v2012
        %v2014 = vrot.slane %v1998, %v2013
        %v2016 = vunpack.c.l.s4 1966171168
        %v2017 = vunpack.c.0.s8 %v2016
        %v2018 = vlaneseq
        %v2019 = vshrl.u32 %v2018, 7
        %v2020 = vsub.s32 %v2017, %v2019
        %v2021 = vrot.slane %v2005, %v2020
        %v2023 = vunpack.c.l.s4 1966171168
        %v2024 = vunpack.c.0.s8 %v2023
        %v2025 = vlaneseq
        %v2026 = vshrl.u32 %v2025, 7
        %v2027 = vsub.s32 %v2024, %v2026
        %v2028 = vrot.slane %v2006, %v2027
        %v2030 = vunpack.c.l.s4 1966171168
        %v2031 = vunpack.c.0.s8 %v2030
        %v2032 = vlaneseq
        %v2033 = vshrl.u32 %v2032, 7
        %v2034 = vsub.s32 %v2031, %v2033
        %v2035 = vrot.slane %v2007, %v2034
        %v2036 = vcombine.high %v2014, %v2014
        %v2037 = vcombine.high %v2021, %v2021
        %v2038 = vcombine.high %v2028, %v2028
        %v2039 = vcombine.high %v2035, %v2035
        %v2058 = vcombine.high %v1938, %v1938
        %v2060 = vunpack.c.l.s4 1966171168
        %v2061 = vunpack.c.0.s8 %v2060
        %v2062 = vlaneseq
        %v2063 = vshrl.u32 %v2062, 7
        %v2064 = vsub.s32 %v2061, %v2063
        %v2065 = vrot.slane %v1938, %v2064
        %v2067 = vunpack.c.l.s4 1966171168
        %v2068 = vunpack.c.0.s8 %v2067
        %v2069 = vlaneseq
        %v2070 = vshrl.u32 %v2069, 7
        %v2071 = vsub.s32 %v2068, %v2070
        %v2072 = vrot.slane %v2058, %v2071
        %v2073 = vcombine.high %v2065, %v2065
        %v2074 = vcombine.high %v2072, %v2072
        %v2076 = vunpack.c.l.s4 1966171168
        %v2077 = vunpack.c.0.s8 %v2076
        %v2078 = vlaneseq
        %v2079 = vshrl.u32 %v2078, 7
        %v2080 = vsub.s32 %v2077, %v2079
        %v2081 = vrot.slane %v2065, %v2080
        %v2083 = vunpack.c.l.s4 1966171168
        %v2084 = vunpack.c.0.s8 %v2083
        %v2085 = vlaneseq
        %v2086 = vshrl.u32 %v2085, 7
        %v2087 = vsub.s32 %v2084, %v2086
        %v2088 = vrot.slane %v2072, %v2087
        %v2090 = vunpack.c.l.s4 1966171168
        %v2091 = vunpack.c.0.s8 %v2090
        %v2092 = vlaneseq
        %v2093 = vshrl.u32 %v2092, 7
        %v2094 = vsub.s32 %v2091, %v2093
        %v2095 = vrot.slane %v2073, %v2094
        %v2097 = vunpack.c.l.s4 1966171168
        %v2098 = vunpack.c.0.s8 %v2097
        %v2099 = vlaneseq
        %v2100 = vshrl.u32 %v2099, 7
        %v2101 = vsub.s32 %v2098, %v2100
        %v2102 = vrot.slane %v2074, %v2101
        %v2103 = vcombine.high %v2081, %v2081
        %v2104 = vcombine.high %v2088, %v2088
        %v2105 = vcombine.high %v2095, %v2095
        %v2106 = vcombine.high %v2102, %v2102
        %v2107 = vcombine.high %v1939, %v1939
        %v2109 = vunpack.c.l.s4 1966171168
        %v2110 = vunpack.c.0.s8 %v2109
        %v2111 = vlaneseq
        %v2112 = vshrl.u32 %v2111, 7
        %v2113 = vsub.s32 %v2110, %v2112
        %v2114 = vrot.slane %v1939, %v2113
        %v2116 = vunpack.c.l.s4 1966171168
        %v2117 = vunpack.c.0.s8 %v2116
        %v2118 = vlaneseq
        %v2119 = vshrl.u32 %v2118, 7
        %v2120 = vsub.s32 %v2117, %v2119
        %v2121 = vrot.slane %v2107, %v2120
        %v2122 = vcombine.high %v2114, %v2114
        %v2123 = vcombine.high %v2121, %v2121
        %v2125 = vunpack.c.l.s4 1966171168
        %v2126 = vunpack.c.0.s8 %v2125
        %v2127 = vlaneseq
        %v2128 = vshrl.u32 %v2127, 7
        %v2129 = vsub.s32 %v2126, %v2128
        %v2130 = vrot.slane %v2114, %v2129
        %v2132 = vunpack.c.l.s4 1966171168
        %v2133 = vunpack.c.0.s8 %v2132
        %v2134 = vlaneseq
        %v2135 = vshrl.u32 %v2134, 7
        %v2136 = vsub.s32 %v2133, %v2135
        %v2137 = vrot.slane %v2121, %v2136
        %v2139 = vunpack.c.l.s4 1966171168
        %v2140 = vunpack.c.0.s8 %v2139
        %v2141 = vlaneseq
        %v2142 = vshrl.u32 %v2141, 7
        %v2143 = vsub.s32 %v2140, %v2142
        %v2144 = vrot.slane %v2122, %v2143
        %v2146 = vunpack.c.l.s4 1966171168
        %v2147 = vunpack.c.0.s8 %v2146
        %v2148 = vlaneseq
        %v2149 = vshrl.u32 %v2148, 7
        %v2150 = vsub.s32 %v2147, %v2149
        %v2151 = vrot.slane %v2123, %v2150
        %v2152 = vcombine.high %v2130, %v2130
        %v2153 = vcombine.high %v2137, %v2137
        %v2154 = vcombine.high %v2144, %v2144
        %v2155 = vcombine.high %v2151, %v2151
        %v2156 = vlaneseq
        %v2157 = vshrl.u32 %v2156, 7
        %v2158 = vsub.s32 0, %v2157
        %v2159 = vrot.slane %v2081, %v2158
        %v2160 = vlaneseq
        %v2161 = vshrl.u32 %v2160, 7
        %v2162 = vsub.s32 0, %v2161
        %v2163 = vrot.slane %v2095, %v2162
        %v2164 = vlaneseq
        %v2165 = vshrl.u32 %v2164, 7
        %v2166 = vsub.s32 0, %v2165
        %v2167 = vrot.slane %v2103, %v2166
        %v2168 = vlaneseq
        %v2169 = vshrl.u32 %v2168, 7
        %v2170 = vsub.s32 0, %v2169
        %v2171 = vrot.slane %v2105, %v2170
        %v2172 = vlaneseq
        %v2173 = vshrl.u32 %v2172, 7
        %v2174 = vsub.s32 0, %v2173
        %v2175 = vrot.slane %v2088, %v2174
        %v2176 = vlaneseq
        %v2177 = vshrl.u32 %v2176, 7
        %v2178 = vsub.s32 0, %v2177
        %v2179 = vrot.slane %v2102, %v2178
        %v2180 = vlaneseq
        %v2181 = vshrl.u32 %v2180, 7
        %v2182 = vsub.s32 0, %v2181
        %v2183 = vrot.slane %v2104, %v2182
        %v2184 = vlaneseq
        %v2185 = vshrl.u32 %v2184, 7
        %v2186 = vsub.s32 0, %v2185
        %v2187 = vrot.slane %v2106, %v2186
        %v2188 = vlaneseq
        %v2189 = vshrl.u32 %v2188, 7
        %v2190 = vsub.s32 0, %v2189
        %v2191 = vrot.slane %v2130, %v2190
        %v2192 = vlaneseq
        %v2193 = vshrl.u32 %v2192, 7
        %v2194 = vsub.s32 0, %v2193
        %v2195 = vrot.slane %v2144, %v2194
        %v2196 = vlaneseq
        %v2197 = vshrl.u32 %v2196, 7
        %v2198 = vsub.s32 0, %v2197
        %v2199 = vrot.slane %v2152, %v2198
        %v2200 = vlaneseq
        %v2201 = vshrl.u32 %v2200, 7
        %v2202 = vsub.s32 0, %v2201
        %v2203 = vrot.slane %v2154, %v2202
        %v2204 = vlaneseq
        %v2205 = vshrl.u32 %v2204, 7
        %v2206 = vsub.s32 0, %v2205
        %v2207 = vrot.slane %v2137, %v2206
        %v2208 = vlaneseq
        %v2209 = vshrl.u32 %v2208, 7
        %v2210 = vsub.s32 0, %v2209
        %v2211 = vrot.slane %v2151, %v2210
        %v2212 = vlaneseq
        %v2213 = vshrl.u32 %v2212, 7
        %v2214 = vsub.s32 0, %v2213
        %v2215 = vrot.slane %v2153, %v2214
        %v2216 = vlaneseq
        %v2217 = vshrl.u32 %v2216, 7
        %v2218 = vsub.s32 0, %v2217
        %v2219 = vrot.slane %v2155, %v2218
        %v2236 = vsel %vm733, %v1965, %v2159
        %v2237 = vsel %vm733, %v1979, %v2163
        %v2238 = vsel %vm733, %v1987, %v2167
        %v2239 = vsel %vm733, %v1989, %v2171
        %v2240 = vsel %vm733, %v1972, %v2175
        %v2241 = vsel %vm733, %v1986, %v2179
        %v2242 = vsel %vm733, %v1988, %v2183
        %v2243 = vsel %vm733, %v1990, %v2187
        %v2244 = vsel %vm733, %v2014, %v2191
        %v2245 = vsel %vm733, %v2028, %v2195
        %v2246 = vsel %vm733, %v2036, %v2199
        %v2247 = vsel %vm733, %v2038, %v2203
        %v2248 = vsel %vm733, %v2021, %v2207
        %v2249 = vsel %vm733, %v2035, %v2211
        %v2250 = vsel %vm733, %v2037, %v2215
        %v2251 = vsel %vm733, %v2039, %v2219
        %v2268 = vcombine.low %v2236, %v2237
        %v2269 = vcombine.low %v2238, %v2239
        %v2271 = vunpack.c.l.s4 1983009808
        %v2272 = vunpack.c.0.s8 %v2271
        %v2273 = vlaneseq
        %v2274 = vshrl.u32 %v2273, 7
        %v2275 = vsub.s32 %v2272, %v2274
        %v2276 = vrot.slane %v2268, %v2275
        %v2278 = vunpack.c.l.s4 1983009808
        %v2279 = vunpack.c.0.s8 %v2278
        %v2280 = vlaneseq
        %v2281 = vshrl.u32 %v2280, 7
        %v2282 = vsub.s32 %v2279, %v2281
        %v2283 = vrot.slane %v2269, %v2282
        %v2284 = vcombine.low %v2276, %v2283
        %v2285 = vcombine.low %v2240, %v2241
        %v2286 = vcombine.low %v2242, %v2243
        %v2288 = vunpack.c.l.s4 1983009808
        %v2289 = vunpack.c.0.s8 %v2288
        %v2290 = vlaneseq
        %v2291 = vshrl.u32 %v2290, 7
        %v2292 = vsub.s32 %v2289, %v2291
        %v2293 = vrot.slane %v2285, %v2292
        %v2295 = vunpack.c.l.s4 1983009808
        %v2296 = vunpack.c.0.s8 %v2295
        %v2297 = vlaneseq
        %v2298 = vshrl.u32 %v2297, 7
        %v2299 = vsub.s32 %v2296, %v2298
        %v2300 = vrot.slane %v2286, %v2299
        %v2301 = vcombine.low %v2293, %v2300
        %v2302 = vcombine.low %v2244, %v2245
        %v2303 = vcombine.low %v2246, %v2247
        %v2305 = vunpack.c.l.s4 1983009808
        %v2306 = vunpack.c.0.s8 %v2305
        %v2307 = vlaneseq
        %v2308 = vshrl.u32 %v2307, 7
        %v2309 = vsub.s32 %v2306, %v2308
        %v2310 = vrot.slane %v2302, %v2309
        %v2312 = vunpack.c.l.s4 1983009808
        %v2313 = vunpack.c.0.s8 %v2312
        %v2314 = vlaneseq
        %v2315 = vshrl.u32 %v2314, 7
        %v2316 = vsub.s32 %v2313, %v2315
        %v2317 = vrot.slane %v2303, %v2316
        %v2318 = vcombine.low %v2310, %v2317
        %v2319 = vcombine.low %v2248, %v2249
        %v2320 = vcombine.low %v2250, %v2251
        %v2322 = vunpack.c.l.s4 1983009808
        %v2323 = vunpack.c.0.s8 %v2322
        %v2324 = vlaneseq
        %v2325 = vshrl.u32 %v2324, 7
        %v2326 = vsub.s32 %v2323, %v2325
        %v2327 = vrot.slane %v2319, %v2326
        %v2329 = vunpack.c.l.s4 1983009808
        %v2330 = vunpack.c.0.s8 %v2329
        %v2331 = vlaneseq
        %v2332 = vshrl.u32 %v2331, 7
        %v2333 = vsub.s32 %v2330, %v2332
        %v2334 = vrot.slane %v2320, %v2333
        %v2335 = vcombine.low %v2327, %v2334
        %2340 = vxpose.xlu0.b32.start [1/16] %v2284, 128
        %2341 = vxpose.xlu0.b32.cont [2/16] %v2301, 128
        %2342 = vxpose.xlu0.b32.cont [3/16] %v2318, 128
        %2343 = vxpose.xlu0.b32.cont [4/16] %v2335, 128
        %2344 = vxpose.xlu0.b32.cont [5/16] 0.0, 128
        %2345 = vxpose.xlu0.b32.cont [6/16] 0.0, 128
        %2346 = vxpose.xlu0.b32.cont [7/16] 0.0, 128
        %2347 = vxpose.xlu0.b32.cont [8/16] 0.0, 128
        %2348 = vxpose.xlu0.b32.cont [9/16] 0.0, 128
        %2349 = vxpose.xlu0.b32.cont [10/16] 0.0, 128
        %2350 = vxpose.xlu0.b32.cont [11/16] 0.0, 128
        %2351 = vxpose.xlu0.b32.cont [12/16] 0.0, 128
        %2352 = vxpose.xlu0.b32.cont [13/16] 0.0, 128
        %2353 = vxpose.xlu0.b32.cont [14/16] 0.0, 128
        %2354 = vxpose.xlu0.b32.cont [15/16] 0.0, 128
        %2355 = vxpose.xlu0.b32.end [16/16] 0.0, 128
        %v2356 = vpop.trf.xlu0
        %v2357 = vpop.trf.xlu0
        %v2358 = vpop.trf.xlu0
        %v2359 = vpop.trf.xlu0
        %v2360 = vpop.trf.xlu0
        %v2361 = vpop.trf.xlu0
        %v2362 = vpop.trf.xlu0
        %v2363 = vpop.trf.xlu0
        %v2364 = vpop.trf.xlu0
        %v2365 = vpop.trf.xlu0
        %v2366 = vpop.trf.xlu0
        %v2367 = vpop.trf.xlu0
        %v2368 = vpop.trf.xlu0
        %v2369 = vpop.trf.xlu0
        %v2370 = vpop.trf.xlu0
        %v2371 = vpop.trf.xlu0
        %2374 = vrot.lane.b32.xlu0 %v2356, 32
        %v2375 = vpop.permute.xlu0 %2374
        %2376 = vrot.lane.b32.xlu0 %v2357, 32
        %v2377 = vpop.permute.xlu0 %2376
        %v2380 = vsel %vm1374, %v1860, %v2375
        %v2381 = vsel %vm1374, %v1861, %v2377
        %s2382 = scalar_lea.vmem %s231, 16 [#allocation9]
        %2383 = vst.msk [vmem:[%s2382] sm:$0xff] %vm1377, %v2380
        %2384 = vst.msk [vmem:[%s2382 + $0x8] sm:$0xff] %vm1377, %v2381
        %s2385 = sld [smem:[#allocation2 + $0x20]]
        %v2386 = vstv %s2385
        %v2387 = vmul.f32 %v252, %v2386
        %v2388 = vmul.f32 %v253, %v2386
        %s2389 = sld [smem:[#allocation2 + $0x21]]
        %v2390 = vstv %s2389
        %v2391 = vmul.f32 %v287, %v2390
        %v2392 = vmul.f32 %v288, %v2390
        %v2393 = vadd.f32 %v2387, %v2391
        %v2394 = vadd.f32 %v2388, %v2392
        %s2395 = sld [smem:[#allocation2 + $0x22]]
        %v2396 = vstv %s2395
        %v2397 = vmul.f32 %v322, %v2396
        %v2398 = vmul.f32 %v323, %v2396
        %v2399 = vadd.f32 %v2393, %v2397
        %v2400 = vadd.f32 %v2394, %v2398
        %s2401 = sld [smem:[#allocation2 + $0x23]]
        %v2402 = vstv %s2401
        %v2403 = vmul.f32 %v357, %v2402
        %v2404 = vmul.f32 %v358, %v2402
        %v2405 = vadd.f32 %v2399, %v2403
        %v2406 = vadd.f32 %v2400, %v2404
        %s2407 = sld [smem:[#allocation7 + $0x8]]
        %v2408 = vstv %s2407
        %v2409 = vadd.f32 %v2405, %v2408
        %v2410 = vadd.f32 %v2406, %v2408
        %vm2411 = vcmp.ge.f32.partialorder %v2409, 0.0
        %vm2412 = vcmp.ge.f32.partialorder %v2410, 0.0
        %v2413 = vmul.f32 %v2409, 0.01
        %v2414 = vmul.f32 %v2410, 0.01
        %v2415 = vsel %vm2411, %v2409, %v2413
        %v2416 = vsel %vm2412, %v2410, %v2414
        %s2417 = sld [smem:[#allocation2 + $0x24]]
        %v2418 = vstv %s2417
        %v2419 = vmul.f32 %v252, %v2418
        %v2420 = vmul.f32 %v253, %v2418
        %s2421 = sld [smem:[#allocation2 + $0x25]]
        %v2422 = vstv %s2421
        %v2423 = vmul.f32 %v287, %v2422
        %v2424 = vmul.f32 %v288, %v2422
        %v2425 = vadd.f32 %v2419, %v2423
        %v2426 = vadd.f32 %v2420, %v2424
        %s2427 = sld [smem:[#allocation2 + $0x26]]
        %v2428 = vstv %s2427
        %v2429 = vmul.f32 %v322, %v2428
        %v2430 = vmul.f32 %v323, %v2428
        %v2431 = vadd.f32 %v2425, %v2429
        %v2432 = vadd.f32 %v2426, %v2430
        %s2433 = sld [smem:[#allocation2 + $0x27]]
        %v2434 = vstv %s2433
        %v2435 = vmul.f32 %v357, %v2434
        %v2436 = vmul.f32 %v358, %v2434
        %v2437 = vadd.f32 %v2431, %v2435
        %v2438 = vadd.f32 %v2432, %v2436
        %s2439 = sld [smem:[#allocation7 + $0x9]]
        %v2440 = vstv %s2439
        %v2441 = vadd.f32 %v2437, %v2440
        %v2442 = vadd.f32 %v2438, %v2440
        %vm2443 = vcmp.ge.f32.partialorder %v2441, 0.0
        %vm2444 = vcmp.ge.f32.partialorder %v2442, 0.0
        %v2445 = vmul.f32 %v2441, 0.01
        %v2446 = vmul.f32 %v2442, 0.01
        %v2447 = vsel %vm2443, %v2441, %v2445
        %v2448 = vsel %vm2444, %v2442, %v2446
        %v2451 = vcombine.high %v2415, %v2415
        %v2453 = vunpack.c.l.s4 1966171168
        %v2454 = vunpack.c.0.s8 %v2453
        %v2455 = vlaneseq
        %v2456 = vshrl.u32 %v2455, 7
        %v2457 = vsub.s32 %v2454, %v2456
        %v2458 = vrot.slane %v2415, %v2457
        %v2460 = vunpack.c.l.s4 1966171168
        %v2461 = vunpack.c.0.s8 %v2460
        %v2462 = vlaneseq
        %v2463 = vshrl.u32 %v2462, 7
        %v2464 = vsub.s32 %v2461, %v2463
        %v2465 = vrot.slane %v2451, %v2464
        %v2466 = vcombine.high %v2458, %v2458
        %v2467 = vcombine.high %v2465, %v2465
        %v2469 = vunpack.c.l.s4 1966171168
        %v2470 = vunpack.c.0.s8 %v2469
        %v2471 = vlaneseq
        %v2472 = vshrl.u32 %v2471, 7
        %v2473 = vsub.s32 %v2470, %v2472
        %v2474 = vrot.slane %v2458, %v2473
        %v2476 = vunpack.c.l.s4 1966171168
        %v2477 = vunpack.c.0.s8 %v2476
        %v2478 = vlaneseq
        %v2479 = vshrl.u32 %v2478, 7
        %v2480 = vsub.s32 %v2477, %v2479
        %v2481 = vrot.slane %v2465, %v2480
        %v2483 = vunpack.c.l.s4 1966171168
        %v2484 = vunpack.c.0.s8 %v2483
        %v2485 = vlaneseq
        %v2486 = vshrl.u32 %v2485, 7
        %v2487 = vsub.s32 %v2484, %v2486
        %v2488 = vrot.slane %v2466, %v2487
        %v2490 = vunpack.c.l.s4 1966171168
        %v2491 = vunpack.c.0.s8 %v2490
        %v2492 = vlaneseq
        %v2493 = vshrl.u32 %v2492, 7
        %v2494 = vsub.s32 %v2491, %v2493
        %v2495 = vrot.slane %v2467, %v2494
        %v2496 = vcombine.high %v2474, %v2474
        %v2497 = vcombine.high %v2481, %v2481
        %v2498 = vcombine.high %v2488, %v2488
        %v2499 = vcombine.high %v2495, %v2495
        %v2500 = vcombine.high %v2416, %v2416
        %v2502 = vunpack.c.l.s4 1966171168
        %v2503 = vunpack.c.0.s8 %v2502
        %v2504 = vlaneseq
        %v2505 = vshrl.u32 %v2504, 7
        %v2506 = vsub.s32 %v2503, %v2505
        %v2507 = vrot.slane %v2416, %v2506
        %v2509 = vunpack.c.l.s4 1966171168
        %v2510 = vunpack.c.0.s8 %v2509
        %v2511 = vlaneseq
        %v2512 = vshrl.u32 %v2511, 7
        %v2513 = vsub.s32 %v2510, %v2512
        %v2514 = vrot.slane %v2500, %v2513
        %v2515 = vcombine.high %v2507, %v2507
        %v2516 = vcombine.high %v2514, %v2514
        %v2518 = vunpack.c.l.s4 1966171168
        %v2519 = vunpack.c.0.s8 %v2518
        %v2520 = vlaneseq
        %v2521 = vshrl.u32 %v2520, 7
        %v2522 = vsub.s32 %v2519, %v2521
        %v2523 = vrot.slane %v2507, %v2522
        %v2525 = vunpack.c.l.s4 1966171168
        %v2526 = vunpack.c.0.s8 %v2525
        %v2527 = vlaneseq
        %v2528 = vshrl.u32 %v2527, 7
        %v2529 = vsub.s32 %v2526, %v2528
        %v2530 = vrot.slane %v2514, %v2529
        %v2532 = vunpack.c.l.s4 1966171168
        %v2533 = vunpack.c.0.s8 %v2532
        %v2534 = vlaneseq
        %v2535 = vshrl.u32 %v2534, 7
        %v2536 = vsub.s32 %v2533, %v2535
        %v2537 = vrot.slane %v2515, %v2536
        %v2539 = vunpack.c.l.s4 1966171168
        %v2540 = vunpack.c.0.s8 %v2539
        %v2541 = vlaneseq
        %v2542 = vshrl.u32 %v2541, 7
        %v2543 = vsub.s32 %v2540, %v2542
        %v2544 = vrot.slane %v2516, %v2543
        %v2545 = vcombine.high %v2523, %v2523
        %v2546 = vcombine.high %v2530, %v2530
        %v2547 = vcombine.high %v2537, %v2537
        %v2548 = vcombine.high %v2544, %v2544
        %v2567 = vcombine.high %v2447, %v2447
        %v2569 = vunpack.c.l.s4 1966171168
        %v2570 = vunpack.c.0.s8 %v2569
        %v2571 = vlaneseq
        %v2572 = vshrl.u32 %v2571, 7
        %v2573 = vsub.s32 %v2570, %v2572
        %v2574 = vrot.slane %v2447, %v2573
        %v2576 = vunpack.c.l.s4 1966171168
        %v2577 = vunpack.c.0.s8 %v2576
        %v2578 = vlaneseq
        %v2579 = vshrl.u32 %v2578, 7
        %v2580 = vsub.s32 %v2577, %v2579
        %v2581 = vrot.slane %v2567, %v2580
        %v2582 = vcombine.high %v2574, %v2574
        %v2583 = vcombine.high %v2581, %v2581
        %v2585 = vunpack.c.l.s4 1966171168
        %v2586 = vunpack.c.0.s8 %v2585
        %v2587 = vlaneseq
        %v2588 = vshrl.u32 %v2587, 7
        %v2589 = vsub.s32 %v2586, %v2588
        %v2590 = vrot.slane %v2574, %v2589
        %v2592 = vunpack.c.l.s4 1966171168
        %v2593 = vunpack.c.0.s8 %v2592
        %v2594 = vlaneseq
        %v2595 = vshrl.u32 %v2594, 7
        %v2596 = vsub.s32 %v2593, %v2595
        %v2597 = vrot.slane %v2581, %v2596
        %v2599 = vunpack.c.l.s4 1966171168
        %v2600 = vunpack.c.0.s8 %v2599
        %v2601 = vlaneseq
        %v2602 = vshrl.u32 %v2601, 7
        %v2603 = vsub.s32 %v2600, %v2602
        %v2604 = vrot.slane %v2582, %v2603
        %v2606 = vunpack.c.l.s4 1966171168
        %v2607 = vunpack.c.0.s8 %v2606
        %v2608 = vlaneseq
        %v2609 = vshrl.u32 %v2608, 7
        %v2610 = vsub.s32 %v2607, %v2609
        %v2611 = vrot.slane %v2583, %v2610
        %v2612 = vcombine.high %v2590, %v2590
        %v2613 = vcombine.high %v2597, %v2597
        %v2614 = vcombine.high %v2604, %v2604
        %v2615 = vcombine.high %v2611, %v2611
        %v2616 = vcombine.high %v2448, %v2448
        %v2618 = vunpack.c.l.s4 1966171168
        %v2619 = vunpack.c.0.s8 %v2618
        %v2620 = vlaneseq
        %v2621 = vshrl.u32 %v2620, 7
        %v2622 = vsub.s32 %v2619, %v2621
        %v2623 = vrot.slane %v2448, %v2622
        %v2625 = vunpack.c.l.s4 1966171168
        %v2626 = vunpack.c.0.s8 %v2625
        %v2627 = vlaneseq
        %v2628 = vshrl.u32 %v2627, 7
        %v2629 = vsub.s32 %v2626, %v2628
        %v2630 = vrot.slane %v2616, %v2629
        %v2631 = vcombine.high %v2623, %v2623
        %v2632 = vcombine.high %v2630, %v2630
        %v2634 = vunpack.c.l.s4 1966171168
        %v2635 = vunpack.c.0.s8 %v2634
        %v2636 = vlaneseq
        %v2637 = vshrl.u32 %v2636, 7
        %v2638 = vsub.s32 %v2635, %v2637
        %v2639 = vrot.slane %v2623, %v2638
        %v2641 = vunpack.c.l.s4 1966171168
        %v2642 = vunpack.c.0.s8 %v2641
        %v2643 = vlaneseq
        %v2644 = vshrl.u32 %v2643, 7
        %v2645 = vsub.s32 %v2642, %v2644
        %v2646 = vrot.slane %v2630, %v2645
        %v2648 = vunpack.c.l.s4 1966171168
        %v2649 = vunpack.c.0.s8 %v2648
        %v2650 = vlaneseq
        %v2651 = vshrl.u32 %v2650, 7
        %v2652 = vsub.s32 %v2649, %v2651
        %v2653 = vrot.slane %v2631, %v2652
        %v2655 = vunpack.c.l.s4 1966171168
        %v2656 = vunpack.c.0.s8 %v2655
        %v2657 = vlaneseq
        %v2658 = vshrl.u32 %v2657, 7
        %v2659 = vsub.s32 %v2656, %v2658
        %v2660 = vrot.slane %v2632, %v2659
        %v2661 = vcombine.high %v2639, %v2639
        %v2662 = vcombine.high %v2646, %v2646
        %v2663 = vcombine.high %v2653, %v2653
        %v2664 = vcombine.high %v2660, %v2660
        %v2665 = vlaneseq
        %v2666 = vshrl.u32 %v2665, 7
        %v2667 = vsub.s32 0, %v2666
        %v2668 = vrot.slane %v2590, %v2667
        %v2669 = vlaneseq
        %v2670 = vshrl.u32 %v2669, 7
        %v2671 = vsub.s32 0, %v2670
        %v2672 = vrot.slane %v2604, %v2671
        %v2673 = vlaneseq
        %v2674 = vshrl.u32 %v2673, 7
        %v2675 = vsub.s32 0, %v2674
        %v2676 = vrot.slane %v2612, %v2675
        %v2677 = vlaneseq
        %v2678 = vshrl.u32 %v2677, 7
        %v2679 = vsub.s32 0, %v2678
        %v2680 = vrot.slane %v2614, %v2679
        %v2681 = vlaneseq
        %v2682 = vshrl.u32 %v2681, 7
        %v2683 = vsub.s32 0, %v2682
        %v2684 = vrot.slane %v2597, %v2683
        %v2685 = vlaneseq
        %v2686 = vshrl.u32 %v2685, 7
        %v2687 = vsub.s32 0, %v2686
        %v2688 = vrot.slane %v2611, %v2687
        %v2689 = vlaneseq
        %v2690 = vshrl.u32 %v2689, 7
        %v2691 = vsub.s32 0, %v2690
        %v2692 = vrot.slane %v2613, %v2691
        %v2693 = vlaneseq
        %v2694 = vshrl.u32 %v2693, 7
        %v2695 = vsub.s32 0, %v2694
        %v2696 = vrot.slane %v2615, %v2695
        %v2697 = vlaneseq
        %v2698 = vshrl.u32 %v2697, 7
        %v2699 = vsub.s32 0, %v2698
        %v2700 = vrot.slane %v2639, %v2699
        %v2701 = vlaneseq
        %v2702 = vshrl.u32 %v2701, 7
        %v2703 = vsub.s32 0, %v2702
        %v2704 = vrot.slane %v2653, %v2703
        %v2705 = vlaneseq
        %v2706 = vshrl.u32 %v2705, 7
        %v2707 = vsub.s32 0, %v2706
        %v2708 = vrot.slane %v2661, %v2707
        %v2709 = vlaneseq
        %v2710 = vshrl.u32 %v2709, 7
        %v2711 = vsub.s32 0, %v2710
        %v2712 = vrot.slane %v2663, %v2711
        %v2713 = vlaneseq
        %v2714 = vshrl.u32 %v2713, 7
        %v2715 = vsub.s32 0, %v2714
        %v2716 = vrot.slane %v2646, %v2715
        %v2717 = vlaneseq
        %v2718 = vshrl.u32 %v2717, 7
        %v2719 = vsub.s32 0, %v2718
        %v2720 = vrot.slane %v2660, %v2719
        %v2721 = vlaneseq
        %v2722 = vshrl.u32 %v2721, 7
        %v2723 = vsub.s32 0, %v2722
        %v2724 = vrot.slane %v2662, %v2723
        %v2725 = vlaneseq
        %v2726 = vshrl.u32 %v2725, 7
        %v2727 = vsub.s32 0, %v2726
        %v2728 = vrot.slane %v2664, %v2727
        %v2745 = vsel %vm733, %v2474, %v2668
        %v2746 = vsel %vm733, %v2488, %v2672
        %v2747 = vsel %vm733, %v2496, %v2676
        %v2748 = vsel %vm733, %v2498, %v2680
        %v2749 = vsel %vm733, %v2481, %v2684
        %v2750 = vsel %vm733, %v2495, %v2688
        %v2751 = vsel %vm733, %v2497, %v2692
        %v2752 = vsel %vm733, %v2499, %v2696
        %v2753 = vsel %vm733, %v2523, %v2700
        %v2754 = vsel %vm733, %v2537, %v2704
        %v2755 = vsel %vm733, %v2545, %v2708
        %v2756 = vsel %vm733, %v2547, %v2712
        %v2757 = vsel %vm733, %v2530, %v2716
        %v2758 = vsel %vm733, %v2544, %v2720
        %v2759 = vsel %vm733, %v2546, %v2724
        %v2760 = vsel %vm733, %v2548, %v2728
        %v2777 = vcombine.low %v2745, %v2746
        %v2778 = vcombine.low %v2747, %v2748
        %v2780 = vunpack.c.l.s4 1983009808
        %v2781 = vunpack.c.0.s8 %v2780
        %v2782 = vlaneseq
        %v2783 = vshrl.u32 %v2782, 7
        %v2784 = vsub.s32 %v2781, %v2783
        %v2785 = vrot.slane %v2777, %v2784
        %v2787 = vunpack.c.l.s4 1983009808
        %v2788 = vunpack.c.0.s8 %v2787
        %v2789 = vlaneseq
        %v2790 = vshrl.u32 %v2789, 7
        %v2791 = vsub.s32 %v2788, %v2790
        %v2792 = vrot.slane %v2778, %v2791
        %v2793 = vcombine.low %v2785, %v2792
        %v2794 = vcombine.low %v2749, %v2750
        %v2795 = vcombine.low %v2751, %v2752
        %v2797 = vunpack.c.l.s4 1983009808
        %v2798 = vunpack.c.0.s8 %v2797
        %v2799 = vlaneseq
        %v2800 = vshrl.u32 %v2799, 7
        %v2801 = vsub.s32 %v2798, %v2800
        %v2802 = vrot.slane %v2794, %v2801
        %v2804 = vunpack.c.l.s4 1983009808
        %v2805 = vunpack.c.0.s8 %v2804
        %v2806 = vlaneseq
        %v2807 = vshrl.u32 %v2806, 7
        %v2808 = vsub.s32 %v2805, %v2807
        %v2809 = vrot.slane %v2795, %v2808
        %v2810 = vcombine.low %v2802, %v2809
        %v2811 = vcombine.low %v2753, %v2754
        %v2812 = vcombine.low %v2755, %v2756
        %v2814 = vunpack.c.l.s4 1983009808
        %v2815 = vunpack.c.0.s8 %v2814
        %v2816 = vlaneseq
        %v2817 = vshrl.u32 %v2816, 7
        %v2818 = vsub.s32 %v2815, %v2817
        %v2819 = vrot.slane %v2811, %v2818
        %v2821 = vunpack.c.l.s4 1983009808
        %v2822 = vunpack.c.0.s8 %v2821
        %v2823 = vlaneseq
        %v2824 = vshrl.u32 %v2823, 7
        %v2825 = vsub.s32 %v2822, %v2824
        %v2826 = vrot.slane %v2812, %v2825
        %v2827 = vcombine.low %v2819, %v2826
        %v2828 = vcombine.low %v2757, %v2758
        %v2829 = vcombine.low %v2759, %v2760
        %v2831 = vunpack.c.l.s4 1983009808
        %v2832 = vunpack.c.0.s8 %v2831
        %v2833 = vlaneseq
        %v2834 = vshrl.u32 %v2833, 7
        %v2835 = vsub.s32 %v2832, %v2834
        %v2836 = vrot.slane %v2828, %v2835
        %v2838 = vunpack.c.l.s4 1983009808
        %v2839 = vunpack.c.0.s8 %v2838
        %v2840 = vlaneseq
        %v2841 = vshrl.u32 %v2840, 7
        %v2842 = vsub.s32 %v2839, %v2841
        %v2843 = vrot.slane %v2829, %v2842
        %v2844 = vcombine.low %v2836, %v2843
        %2849 = vxpose.xlu0.b32.start [1/16] %v2793, 128
        %2850 = vxpose.xlu0.b32.cont [2/16] %v2810, 128
        %2851 = vxpose.xlu0.b32.cont [3/16] %v2827, 128
        %2852 = vxpose.xlu0.b32.cont [4/16] %v2844, 128
        %2853 = vxpose.xlu0.b32.cont [5/16] 0.0, 128
        %2854 = vxpose.xlu0.b32.cont [6/16] 0.0, 128
        %2855 = vxpose.xlu0.b32.cont [7/16] 0.0, 128
        %2856 = vxpose.xlu0.b32.cont [8/16] 0.0, 128
        %2857 = vxpose.xlu0.b32.cont [9/16] 0.0, 128
        %2858 = vxpose.xlu0.b32.cont [10/16] 0.0, 128
        %2859 = vxpose.xlu0.b32.cont [11/16] 0.0, 128
        %2860 = vxpose.xlu0.b32.cont [12/16] 0.0, 128
        %2861 = vxpose.xlu0.b32.cont [13/16] 0.0, 128
        %2862 = vxpose.xlu0.b32.cont [14/16] 0.0, 128
        %2863 = vxpose.xlu0.b32.cont [15/16] 0.0, 128
        %2864 = vxpose.xlu0.b32.end [16/16] 0.0, 128
        %v2865 = vpop.trf.xlu0
        %v2866 = vpop.trf.xlu0
        %v2867 = vpop.trf.xlu0
        %v2868 = vpop.trf.xlu0
        %v2869 = vpop.trf.xlu0
        %v2870 = vpop.trf.xlu0
        %v2871 = vpop.trf.xlu0
        %v2872 = vpop.trf.xlu0
        %v2873 = vpop.trf.xlu0
        %v2874 = vpop.trf.xlu0
        %v2875 = vpop.trf.xlu0
        %v2876 = vpop.trf.xlu0
        %v2877 = vpop.trf.xlu0
        %v2878 = vpop.trf.xlu0
        %v2879 = vpop.trf.xlu0
        %v2880 = vpop.trf.xlu0
        %s2881 = sld [smem:[#allocation2 + $0x28]]
        %v2882 = vstv %s2881
        %v2883 = vmul.f32 %v252, %v2882
        %v2884 = vmul.f32 %v253, %v2882
        %s2885 = sld [smem:[#allocation2 + $0x29]]
        %v2886 = vstv %s2885
        %v2887 = vmul.f32 %v287, %v2886
        %v2888 = vmul.f32 %v288, %v2886
        %v2889 = vadd.f32 %v2883, %v2887
        %v2890 = vadd.f32 %v2884, %v2888
        %s2891 = sld [smem:[#allocation2 + $0x2a]]
        %v2892 = vstv %s2891
        %v2893 = vmul.f32 %v322, %v2892
        %v2894 = vmul.f32 %v323, %v2892
        %v2895 = vadd.f32 %v2889, %v2893
        %v2896 = vadd.f32 %v2890, %v2894
        %s2897 = sld [smem:[#allocation2 + $0x2b]]
        %v2898 = vstv %s2897
        %v2899 = vmul.f32 %v357, %v2898
        %v2900 = vmul.f32 %v358, %v2898
        %v2901 = vadd.f32 %v2895, %v2899
        %v2902 = vadd.f32 %v2896, %v2900
        %s2903 = sld [smem:[#allocation7 + $0xa]]
        %v2904 = vstv %s2903
        %v2905 = vadd.f32 %v2901, %v2904
        %v2906 = vadd.f32 %v2902, %v2904
        %vm2907 = vcmp.ge.f32.partialorder %v2905, 0.0
        %vm2908 = vcmp.ge.f32.partialorder %v2906, 0.0
        %v2909 = vmul.f32 %v2905, 0.01
        %v2910 = vmul.f32 %v2906, 0.01
        %v2911 = vsel %vm2907, %v2905, %v2909
        %v2912 = vsel %vm2908, %v2906, %v2910
        %s2913 = sld [smem:[#allocation2 + $0x2c]]
        %v2914 = vstv %s2913
        %v2915 = vmul.f32 %v252, %v2914
        %v2916 = vmul.f32 %v253, %v2914
        %s2917 = sld [smem:[#allocation2 + $0x2d]]
        %v2918 = vstv %s2917
        %v2919 = vmul.f32 %v287, %v2918
        %v2920 = vmul.f32 %v288, %v2918
        %v2921 = vadd.f32 %v2915, %v2919
        %v2922 = vadd.f32 %v2916, %v2920
        %s2923 = sld [smem:[#allocation2 + $0x2e]]
        %v2924 = vstv %s2923
        %v2925 = vmul.f32 %v322, %v2924
        %v2926 = vmul.f32 %v323, %v2924
        %v2927 = vadd.f32 %v2921, %v2925
        %v2928 = vadd.f32 %v2922, %v2926
        %s2929 = sld [smem:[#allocation2 + $0x2f]]
        %v2930 = vstv %s2929
        %v2931 = vmul.f32 %v357, %v2930
        %v2932 = vmul.f32 %v358, %v2930
        %v2933 = vadd.f32 %v2927, %v2931
        %v2934 = vadd.f32 %v2928, %v2932
        %s2935 = sld [smem:[#allocation7 + $0xb]]
        %v2936 = vstv %s2935
        %v2937 = vadd.f32 %v2933, %v2936
        %v2938 = vadd.f32 %v2934, %v2936
        %vm2939 = vcmp.ge.f32.partialorder %v2937, 0.0
        %vm2940 = vcmp.ge.f32.partialorder %v2938, 0.0
        %v2941 = vmul.f32 %v2937, 0.01
        %v2942 = vmul.f32 %v2938, 0.01
        %v2943 = vsel %vm2939, %v2937, %v2941
        %v2944 = vsel %vm2940, %v2938, %v2942
        %v2947 = vcombine.high %v2911, %v2911
        %v2949 = vunpack.c.l.s4 1966171168
        %v2950 = vunpack.c.0.s8 %v2949
        %v2951 = vlaneseq
        %v2952 = vshrl.u32 %v2951, 7
        %v2953 = vsub.s32 %v2950, %v2952
        %v2954 = vrot.slane %v2911, %v2953
        %v2956 = vunpack.c.l.s4 1966171168
        %v2957 = vunpack.c.0.s8 %v2956
        %v2958 = vlaneseq
        %v2959 = vshrl.u32 %v2958, 7
        %v2960 = vsub.s32 %v2957, %v2959
        %v2961 = vrot.slane %v2947, %v2960
        %v2962 = vcombine.high %v2954, %v2954
        %v2963 = vcombine.high %v2961, %v2961
        %v2965 = vunpack.c.l.s4 1966171168
        %v2966 = vunpack.c.0.s8 %v2965
        %v2967 = vlaneseq
        %v2968 = vshrl.u32 %v2967, 7
        %v2969 = vsub.s32 %v2966, %v2968
        %v2970 = vrot.slane %v2954, %v2969
        %v2972 = vunpack.c.l.s4 1966171168
        %v2973 = vunpack.c.0.s8 %v2972
        %v2974 = vlaneseq
        %v2975 = vshrl.u32 %v2974, 7
        %v2976 = vsub.s32 %v2973, %v2975
        %v2977 = vrot.slane %v2961, %v2976
        %v2979 = vunpack.c.l.s4 1966171168
        %v2980 = vunpack.c.0.s8 %v2979
        %v2981 = vlaneseq
        %v2982 = vshrl.u32 %v2981, 7
        %v2983 = vsub.s32 %v2980, %v2982
        %v2984 = vrot.slane %v2962, %v2983
        %v2986 = vunpack.c.l.s4 1966171168
        %v2987 = vunpack.c.0.s8 %v2986
        %v2988 = vlaneseq
        %v2989 = vshrl.u32 %v2988, 7
        %v2990 = vsub.s32 %v2987, %v2989
        %v2991 = vrot.slane %v2963, %v2990
        %v2992 = vcombine.high %v2970, %v2970
        %v2993 = vcombine.high %v2977, %v2977
        %v2994 = vcombine.high %v2984, %v2984
        %v2995 = vcombine.high %v2991, %v2991
        %v2996 = vcombine.high %v2912, %v2912
        %v2998 = vunpack.c.l.s4 1966171168
        %v2999 = vunpack.c.0.s8 %v2998
        %v3000 = vlaneseq
        %v3001 = vshrl.u32 %v3000, 7
        %v3002 = vsub.s32 %v2999, %v3001
        %v3003 = vrot.slane %v2912, %v3002
        %v3005 = vunpack.c.l.s4 1966171168
        %v3006 = vunpack.c.0.s8 %v3005
        %v3007 = vlaneseq
        %v3008 = vshrl.u32 %v3007, 7
        %v3009 = vsub.s32 %v3006, %v3008
        %v3010 = vrot.slane %v2996, %v3009
        %v3011 = vcombine.high %v3003, %v3003
        %v3012 = vcombine.high %v3010, %v3010
        %v3014 = vunpack.c.l.s4 1966171168
        %v3015 = vunpack.c.0.s8 %v3014
        %v3016 = vlaneseq
        %v3017 = vshrl.u32 %v3016, 7
        %v3018 = vsub.s32 %v3015, %v3017
        %v3019 = vrot.slane %v3003, %v3018
        %v3021 = vunpack.c.l.s4 1966171168
        %v3022 = vunpack.c.0.s8 %v3021
        %v3023 = vlaneseq
        %v3024 = vshrl.u32 %v3023, 7
        %v3025 = vsub.s32 %v3022, %v3024
        %v3026 = vrot.slane %v3010, %v3025
        %v3028 = vunpack.c.l.s4 1966171168
        %v3029 = vunpack.c.0.s8 %v3028
        %v3030 = vlaneseq
        %v3031 = vshrl.u32 %v3030, 7
        %v3032 = vsub.s32 %v3029, %v3031
        %v3033 = vrot.slane %v3011, %v3032
        %v3035 = vunpack.c.l.s4 1966171168
        %v3036 = vunpack.c.0.s8 %v3035
        %v3037 = vlaneseq
        %v3038 = vshrl.u32 %v3037, 7
        %v3039 = vsub.s32 %v3036, %v3038
        %v3040 = vrot.slane %v3012, %v3039
        %v3041 = vcombine.high %v3019, %v3019
        %v3042 = vcombine.high %v3026, %v3026
        %v3043 = vcombine.high %v3033, %v3033
        %v3044 = vcombine.high %v3040, %v3040
        %v3063 = vcombine.high %v2943, %v2943
        %v3065 = vunpack.c.l.s4 1966171168
        %v3066 = vunpack.c.0.s8 %v3065
        %v3067 = vlaneseq
        %v3068 = vshrl.u32 %v3067, 7
        %v3069 = vsub.s32 %v3066, %v3068
        %v3070 = vrot.slane %v2943, %v3069
        %v3072 = vunpack.c.l.s4 1966171168
        %v3073 = vunpack.c.0.s8 %v3072
        %v3074 = vlaneseq
        %v3075 = vshrl.u32 %v3074, 7
        %v3076 = vsub.s32 %v3073, %v3075
        %v3077 = vrot.slane %v3063, %v3076
        %v3078 = vcombine.high %v3070, %v3070
        %v3079 = vcombine.high %v3077, %v3077
        %v3081 = vunpack.c.l.s4 1966171168
        %v3082 = vunpack.c.0.s8 %v3081
        %v3083 = vlaneseq
        %v3084 = vshrl.u32 %v3083, 7
        %v3085 = vsub.s32 %v3082, %v3084
        %v3086 = vrot.slane %v3070, %v3085
        %v3088 = vunpack.c.l.s4 1966171168
        %v3089 = vunpack.c.0.s8 %v3088
        %v3090 = vlaneseq
        %v3091 = vshrl.u32 %v3090, 7
        %v3092 = vsub.s32 %v3089, %v3091
        %v3093 = vrot.slane %v3077, %v3092
        %v3095 = vunpack.c.l.s4 1966171168
        %v3096 = vunpack.c.0.s8 %v3095
        %v3097 = vlaneseq
        %v3098 = vshrl.u32 %v3097, 7
        %v3099 = vsub.s32 %v3096, %v3098
        %v3100 = vrot.slane %v3078, %v3099
        %v3102 = vunpack.c.l.s4 1966171168
        %v3103 = vunpack.c.0.s8 %v3102
        %v3104 = vlaneseq
        %v3105 = vshrl.u32 %v3104, 7
        %v3106 = vsub.s32 %v3103, %v3105
        %v3107 = vrot.slane %v3079, %v3106
        %v3108 = vcombine.high %v3086, %v3086
        %v3109 = vcombine.high %v3093, %v3093
        %v3110 = vcombine.high %v3100, %v3100
        %v3111 = vcombine.high %v3107, %v3107
        %v3112 = vcombine.high %v2944, %v2944
        %v3114 = vunpack.c.l.s4 1966171168
        %v3115 = vunpack.c.0.s8 %v3114
        %v3116 = vlaneseq
        %v3117 = vshrl.u32 %v3116, 7
        %v3118 = vsub.s32 %v3115, %v3117
        %v3119 = vrot.slane %v2944, %v3118
        %v3121 = vunpack.c.l.s4 1966171168
        %v3122 = vunpack.c.0.s8 %v3121
        %v3123 = vlaneseq
        %v3124 = vshrl.u32 %v3123, 7
        %v3125 = vsub.s32 %v3122, %v3124
        %v3126 = vrot.slane %v3112, %v3125
        %v3127 = vcombine.high %v3119, %v3119
        %v3128 = vcombine.high %v3126, %v3126
        %v3130 = vunpack.c.l.s4 1966171168
        %v3131 = vunpack.c.0.s8 %v3130
        %v3132 = vlaneseq
        %v3133 = vshrl.u32 %v3132, 7
        %v3134 = vsub.s32 %v3131, %v3133
        %v3135 = vrot.slane %v3119, %v3134
        %v3137 = vunpack.c.l.s4 1966171168
        %v3138 = vunpack.c.0.s8 %v3137
        %v3139 = vlaneseq
        %v3140 = vshrl.u32 %v3139, 7
        %v3141 = vsub.s32 %v3138, %v3140
        %v3142 = vrot.slane %v3126, %v3141
        %v3144 = vunpack.c.l.s4 1966171168
        %v3145 = vunpack.c.0.s8 %v3144
        %v3146 = vlaneseq
        %v3147 = vshrl.u32 %v3146, 7
        %v3148 = vsub.s32 %v3145, %v3147
        %v3149 = vrot.slane %v3127, %v3148
        %v3151 = vunpack.c.l.s4 1966171168
        %v3152 = vunpack.c.0.s8 %v3151
        %v3153 = vlaneseq
        %v3154 = vshrl.u32 %v3153, 7
        %v3155 = vsub.s32 %v3152, %v3154
        %v3156 = vrot.slane %v3128, %v3155
        %v3157 = vcombine.high %v3135, %v3135
        %v3158 = vcombine.high %v3142, %v3142
        %v3159 = vcombine.high %v3149, %v3149
        %v3160 = vcombine.high %v3156, %v3156
        %v3161 = vlaneseq
        %v3162 = vshrl.u32 %v3161, 7
        %v3163 = vsub.s32 0, %v3162
        %v3164 = vrot.slane %v3086, %v3163
        %v3165 = vlaneseq
        %v3166 = vshrl.u32 %v3165, 7
        %v3167 = vsub.s32 0, %v3166
        %v3168 = vrot.slane %v3100, %v3167
        %v3169 = vlaneseq
        %v3170 = vshrl.u32 %v3169, 7
        %v3171 = vsub.s32 0, %v3170
        %v3172 = vrot.slane %v3108, %v3171
        %v3173 = vlaneseq
        %v3174 = vshrl.u32 %v3173, 7
        %v3175 = vsub.s32 0, %v3174
        %v3176 = vrot.slane %v3110, %v3175
        %v3177 = vlaneseq
        %v3178 = vshrl.u32 %v3177, 7
        %v3179 = vsub.s32 0, %v3178
        %v3180 = vrot.slane %v3093, %v3179
        %v3181 = vlaneseq
        %v3182 = vshrl.u32 %v3181, 7
        %v3183 = vsub.s32 0, %v3182
        %v3184 = vrot.slane %v3107, %v3183
        %v3185 = vlaneseq
        %v3186 = vshrl.u32 %v3185, 7
        %v3187 = vsub.s32 0, %v3186
        %v3188 = vrot.slane %v3109, %v3187
        %v3189 = vlaneseq
        %v3190 = vshrl.u32 %v3189, 7
        %v3191 = vsub.s32 0, %v3190
        %v3192 = vrot.slane %v3111, %v3191
        %v3193 = vlaneseq
        %v3194 = vshrl.u32 %v3193, 7
        %v3195 = vsub.s32 0, %v3194
        %v3196 = vrot.slane %v3135, %v3195
        %v3197 = vlaneseq
        %v3198 = vshrl.u32 %v3197, 7
        %v3199 = vsub.s32 0, %v3198
        %v3200 = vrot.slane %v3149, %v3199
        %v3201 = vlaneseq
        %v3202 = vshrl.u32 %v3201, 7
        %v3203 = vsub.s32 0, %v3202
        %v3204 = vrot.slane %v3157, %v3203
        %v3205 = vlaneseq
        %v3206 = vshrl.u32 %v3205, 7
        %v3207 = vsub.s32 0, %v3206
        %v3208 = vrot.slane %v3159, %v3207
        %v3209 = vlaneseq
        %v3210 = vshrl.u32 %v3209, 7
        %v3211 = vsub.s32 0, %v3210
        %v3212 = vrot.slane %v3142, %v3211
        %v3213 = vlaneseq
        %v3214 = vshrl.u32 %v3213, 7
        %v3215 = vsub.s32 0, %v3214
        %v3216 = vrot.slane %v3156, %v3215
        %v3217 = vlaneseq
        %v3218 = vshrl.u32 %v3217, 7
        %v3219 = vsub.s32 0, %v3218
        %v3220 = vrot.slane %v3158, %v3219
        %v3221 = vlaneseq
        %v3222 = vshrl.u32 %v3221, 7
        %v3223 = vsub.s32 0, %v3222
        %v3224 = vrot.slane %v3160, %v3223
        %v3241 = vsel %vm733, %v2970, %v3164
        %v3242 = vsel %vm733, %v2984, %v3168
        %v3243 = vsel %vm733, %v2992, %v3172
        %v3244 = vsel %vm733, %v2994, %v3176
        %v3245 = vsel %vm733, %v2977, %v3180
        %v3246 = vsel %vm733, %v2991, %v3184
        %v3247 = vsel %vm733, %v2993, %v3188
        %v3248 = vsel %vm733, %v2995, %v3192
        %v3249 = vsel %vm733, %v3019, %v3196
        %v3250 = vsel %vm733, %v3033, %v3200
        %v3251 = vsel %vm733, %v3041, %v3204
        %v3252 = vsel %vm733, %v3043, %v3208
        %v3253 = vsel %vm733, %v3026, %v3212
        %v3254 = vsel %vm733, %v3040, %v3216
        %v3255 = vsel %vm733, %v3042, %v3220
        %v3256 = vsel %vm733, %v3044, %v3224
        %v3273 = vcombine.low %v3241, %v3242
        %v3274 = vcombine.low %v3243, %v3244
        %v3276 = vunpack.c.l.s4 1983009808
        %v3277 = vunpack.c.0.s8 %v3276
        %v3278 = vlaneseq
        %v3279 = vshrl.u32 %v3278, 7
        %v3280 = vsub.s32 %v3277, %v3279
        %v3281 = vrot.slane %v3273, %v3280
        %v3283 = vunpack.c.l.s4 1983009808
        %v3284 = vunpack.c.0.s8 %v3283
        %v3285 = vlaneseq
        %v3286 = vshrl.u32 %v3285, 7
        %v3287 = vsub.s32 %v3284, %v3286
        %v3288 = vrot.slane %v3274, %v3287
        %v3289 = vcombine.low %v3281, %v3288
        %v3290 = vcombine.low %v3245, %v3246
        %v3291 = vcombine.low %v3247, %v3248
        %v3293 = vunpack.c.l.s4 1983009808
        %v3294 = vunpack.c.0.s8 %v3293
        %v3295 = vlaneseq
        %v3296 = vshrl.u32 %v3295, 7
        %v3297 = vsub.s32 %v3294, %v3296
        %v3298 = vrot.slane %v3290, %v3297
        %v3300 = vunpack.c.l.s4 1983009808
        %v3301 = vunpack.c.0.s8 %v3300
        %v3302 = vlaneseq
        %v3303 = vshrl.u32 %v3302, 7
        %v3304 = vsub.s32 %v3301, %v3303
        %v3305 = vrot.slane %v3291, %v3304
        %v3306 = vcombine.low %v3298, %v3305
        %v3307 = vcombine.low %v3249, %v3250
        %v3308 = vcombine.low %v3251, %v3252
        %v3310 = vunpack.c.l.s4 1983009808
        %v3311 = vunpack.c.0.s8 %v3310
        %v3312 = vlaneseq
        %v3313 = vshrl.u32 %v3312, 7
        %v3314 = vsub.s32 %v3311, %v3313
        %v3315 = vrot.slane %v3307, %v3314
        %v3317 = vunpack.c.l.s4 1983009808
        %v3318 = vunpack.c.0.s8 %v3317
        %v3319 = vlaneseq
        %v3320 = vshrl.u32 %v3319, 7
        %v3321 = vsub.s32 %v3318, %v3320
        %v3322 = vrot.slane %v3308, %v3321
        %v3323 = vcombine.low %v3315, %v3322
        %v3324 = vcombine.low %v3253, %v3254
        %v3325 = vcombine.low %v3255, %v3256
        %v3327 = vunpack.c.l.s4 1983009808
        %v3328 = vunpack.c.0.s8 %v3327
        %v3329 = vlaneseq
        %v3330 = vshrl.u32 %v3329, 7
        %v3331 = vsub.s32 %v3328, %v3330
        %v3332 = vrot.slane %v3324, %v3331
        %v3334 = vunpack.c.l.s4 1983009808
        %v3335 = vunpack.c.0.s8 %v3334
        %v3336 = vlaneseq
        %v3337 = vshrl.u32 %v3336, 7
        %v3338 = vsub.s32 %v3335, %v3337
        %v3339 = vrot.slane %v3325, %v3338
        %v3340 = vcombine.low %v3332, %v3339
        %3345 = vxpose.xlu0.b32.start [1/16] %v3289, 128
        %3346 = vxpose.xlu0.b32.cont [2/16] %v3306, 128
        %3347 = vxpose.xlu0.b32.cont [3/16] %v3323, 128
        %3348 = vxpose.xlu0.b32.cont [4/16] %v3340, 128
        %3349 = vxpose.xlu0.b32.cont [5/16] 0.0, 128
        %3350 = vxpose.xlu0.b32.cont [6/16] 0.0, 128
        %3351 = vxpose.xlu0.b32.cont [7/16] 0.0, 128
        %3352 = vxpose.xlu0.b32.cont [8/16] 0.0, 128
        %3353 = vxpose.xlu0.b32.cont [9/16] 0.0, 128
        %3354 = vxpose.xlu0.b32.cont [10/16] 0.0, 128
        %3355 = vxpose.xlu0.b32.cont [11/16] 0.0, 128
        %3356 = vxpose.xlu0.b32.cont [12/16] 0.0, 128
        %3357 = vxpose.xlu0.b32.cont [13/16] 0.0, 128
        %3358 = vxpose.xlu0.b32.cont [14/16] 0.0, 128
        %3359 = vxpose.xlu0.b32.cont [15/16] 0.0, 128
        %3360 = vxpose.xlu0.b32.end [16/16] 0.0, 128
        %v3361 = vpop.trf.xlu0
        %v3362 = vpop.trf.xlu0
        %v3363 = vpop.trf.xlu0
        %v3364 = vpop.trf.xlu0
        %v3365 = vpop.trf.xlu0
        %v3366 = vpop.trf.xlu0
        %v3367 = vpop.trf.xlu0
        %v3368 = vpop.trf.xlu0
        %v3369 = vpop.trf.xlu0
        %v3370 = vpop.trf.xlu0
        %v3371 = vpop.trf.xlu0
        %v3372 = vpop.trf.xlu0
        %v3373 = vpop.trf.xlu0
        %v3374 = vpop.trf.xlu0
        %v3375 = vpop.trf.xlu0
        %v3376 = vpop.trf.xlu0
        %3379 = vrot.lane.b32.xlu0 %v3361, 32
        %v3380 = vpop.permute.xlu0 %3379
        %3381 = vrot.lane.b32.xlu0 %v3362, 32
        %v3382 = vpop.permute.xlu0 %3381
        %v3385 = vsel %vm1374, %v2865, %v3380
        %v3386 = vsel %vm1374, %v2866, %v3382
        %s3387 = scalar_lea.vmem %s231, 32 [#allocation9]
        %3388 = vst.msk [vmem:[%s3387] sm:$0xff] %vm1377, %v3385
        %3389 = vst.msk [vmem:[%s3387 + $0x8] sm:$0xff] %vm1377, %v3386
        %s3390 = sld [smem:[#allocation2 + $0x30]]
        %v3391 = vstv %s3390
        %v3392 = vmul.f32 %v252, %v3391
        %v3393 = vmul.f32 %v253, %v3391
        %s3394 = sld [smem:[#allocation2 + $0x31]]
        %v3395 = vstv %s3394
        %v3396 = vmul.f32 %v287, %v3395
        %v3397 = vmul.f32 %v288, %v3395
        %v3398 = vadd.f32 %v3392, %v3396
        %v3399 = vadd.f32 %v3393, %v3397
        %s3400 = sld [smem:[#allocation2 + $0x32]]
        %v3401 = vstv %s3400
        %v3402 = vmul.f32 %v322, %v3401
        %v3403 = vmul.f32 %v323, %v3401
        %v3404 = vadd.f32 %v3398, %v3402
        %v3405 = vadd.f32 %v3399, %v3403
        %s3406 = sld [smem:[#allocation2 + $0x33]]
        %v3407 = vstv %s3406
        %v3408 = vmul.f32 %v357, %v3407
        %v3409 = vmul.f32 %v358, %v3407
        %v3410 = vadd.f32 %v3404, %v3408
        %v3411 = vadd.f32 %v3405, %v3409
        %s3412 = sld [smem:[#allocation7 + $0xc]]
        %v3413 = vstv %s3412
        %v3414 = vadd.f32 %v3410, %v3413
        %v3415 = vadd.f32 %v3411, %v3413
        %vm3416 = vcmp.ge.f32.partialorder %v3414, 0.0
        %vm3417 = vcmp.ge.f32.partialorder %v3415, 0.0
        %v3418 = vmul.f32 %v3414, 0.01
        %v3419 = vmul.f32 %v3415, 0.01
        %v3420 = vsel %vm3416, %v3414, %v3418
        %v3421 = vsel %vm3417, %v3415, %v3419
        %s3422 = sld [smem:[#allocation2 + $0x34]]
        %v3423 = vstv %s3422
        %v3424 = vmul.f32 %v252, %v3423
        %v3425 = vmul.f32 %v253, %v3423
        %s3426 = sld [smem:[#allocation2 + $0x35]]
        %v3427 = vstv %s3426
        %v3428 = vmul.f32 %v287, %v3427
        %v3429 = vmul.f32 %v288, %v3427
        %v3430 = vadd.f32 %v3424, %v3428
        %v3431 = vadd.f32 %v3425, %v3429
        %s3432 = sld [smem:[#allocation2 + $0x36]]
        %v3433 = vstv %s3432
        %v3434 = vmul.f32 %v322, %v3433
        %v3435 = vmul.f32 %v323, %v3433
        %v3436 = vadd.f32 %v3430, %v3434
        %v3437 = vadd.f32 %v3431, %v3435
        %s3438 = sld [smem:[#allocation2 + $0x37]]
        %v3439 = vstv %s3438
        %v3440 = vmul.f32 %v357, %v3439
        %v3441 = vmul.f32 %v358, %v3439
        %v3442 = vadd.f32 %v3436, %v3440
        %v3443 = vadd.f32 %v3437, %v3441
        %s3444 = sld [smem:[#allocation7 + $0xd]]
        %v3445 = vstv %s3444
        %v3446 = vadd.f32 %v3442, %v3445
        %v3447 = vadd.f32 %v3443, %v3445
        %vm3448 = vcmp.ge.f32.partialorder %v3446, 0.0
        %vm3449 = vcmp.ge.f32.partialorder %v3447, 0.0
        %v3450 = vmul.f32 %v3446, 0.01
        %v3451 = vmul.f32 %v3447, 0.01
        %v3452 = vsel %vm3448, %v3446, %v3450
        %v3453 = vsel %vm3449, %v3447, %v3451
        %v3456 = vcombine.high %v3420, %v3420
        %v3458 = vunpack.c.l.s4 1966171168
        %v3459 = vunpack.c.0.s8 %v3458
        %v3460 = vlaneseq
        %v3461 = vshrl.u32 %v3460, 7
        %v3462 = vsub.s32 %v3459, %v3461
        %v3463 = vrot.slane %v3420, %v3462
        %v3465 = vunpack.c.l.s4 1966171168
        %v3466 = vunpack.c.0.s8 %v3465
        %v3467 = vlaneseq
        %v3468 = vshrl.u32 %v3467, 7
        %v3469 = vsub.s32 %v3466, %v3468
        %v3470 = vrot.slane %v3456, %v3469
        %v3471 = vcombine.high %v3463, %v3463
        %v3472 = vcombine.high %v3470, %v3470
        %v3474 = vunpack.c.l.s4 1966171168
        %v3475 = vunpack.c.0.s8 %v3474
        %v3476 = vlaneseq
        %v3477 = vshrl.u32 %v3476, 7
        %v3478 = vsub.s32 %v3475, %v3477
        %v3479 = vrot.slane %v3463, %v3478
        %v3481 = vunpack.c.l.s4 1966171168
        %v3482 = vunpack.c.0.s8 %v3481
        %v3483 = vlaneseq
        %v3484 = vshrl.u32 %v3483, 7
        %v3485 = vsub.s32 %v3482, %v3484
        %v3486 = vrot.slane %v3470, %v3485
        %v3488 = vunpack.c.l.s4 1966171168
        %v3489 = vunpack.c.0.s8 %v3488
        %v3490 = vlaneseq
        %v3491 = vshrl.u32 %v3490, 7
        %v3492 = vsub.s32 %v3489, %v3491
        %v3493 = vrot.slane %v3471, %v3492
        %v3495 = vunpack.c.l.s4 1966171168
        %v3496 = vunpack.c.0.s8 %v3495
        %v3497 = vlaneseq
        %v3498 = vshrl.u32 %v3497, 7
        %v3499 = vsub.s32 %v3496, %v3498
        %v3500 = vrot.slane %v3472, %v3499
        %v3501 = vcombine.high %v3479, %v3479
        %v3502 = vcombine.high %v3486, %v3486
        %v3503 = vcombine.high %v3493, %v3493
        %v3504 = vcombine.high %v3500, %v3500
        %v3505 = vcombine.high %v3421, %v3421
        %v3507 = vunpack.c.l.s4 1966171168
        %v3508 = vunpack.c.0.s8 %v3507
        %v3509 = vlaneseq
        %v3510 = vshrl.u32 %v3509, 7
        %v3511 = vsub.s32 %v3508, %v3510
        %v3512 = vrot.slane %v3421, %v3511
        %v3514 = vunpack.c.l.s4 1966171168
        %v3515 = vunpack.c.0.s8 %v3514
        %v3516 = vlaneseq
        %v3517 = vshrl.u32 %v3516, 7
        %v3518 = vsub.s32 %v3515, %v3517
        %v3519 = vrot.slane %v3505, %v3518
        %v3520 = vcombine.high %v3512, %v3512
        %v3521 = vcombine.high %v3519, %v3519
        %v3523 = vunpack.c.l.s4 1966171168
        %v3524 = vunpack.c.0.s8 %v3523
        %v3525 = vlaneseq
        %v3526 = vshrl.u32 %v3525, 7
        %v3527 = vsub.s32 %v3524, %v3526
        %v3528 = vrot.slane %v3512, %v3527
        %v3530 = vunpack.c.l.s4 1966171168
        %v3531 = vunpack.c.0.s8 %v3530
        %v3532 = vlaneseq
        %v3533 = vshrl.u32 %v3532, 7
        %v3534 = vsub.s32 %v3531, %v3533
        %v3535 = vrot.slane %v3519, %v3534
        %v3537 = vunpack.c.l.s4 1966171168
        %v3538 = vunpack.c.0.s8 %v3537
        %v3539 = vlaneseq
        %v3540 = vshrl.u32 %v3539, 7
        %v3541 = vsub.s32 %v3538, %v3540
        %v3542 = vrot.slane %v3520, %v3541
        %v3544 = vunpack.c.l.s4 1966171168
        %v3545 = vunpack.c.0.s8 %v3544
        %v3546 = vlaneseq
        %v3547 = vshrl.u32 %v3546, 7
        %v3548 = vsub.s32 %v3545, %v3547
        %v3549 = vrot.slane %v3521, %v3548
        %v3550 = vcombine.high %v3528, %v3528
        %v3551 = vcombine.high %v3535, %v3535
        %v3552 = vcombine.high %v3542, %v3542
        %v3553 = vcombine.high %v3549, %v3549
        %v3572 = vcombine.high %v3452, %v3452
        %v3574 = vunpack.c.l.s4 1966171168
        %v3575 = vunpack.c.0.s8 %v3574
        %v3576 = vlaneseq
        %v3577 = vshrl.u32 %v3576, 7
        %v3578 = vsub.s32 %v3575, %v3577
        %v3579 = vrot.slane %v3452, %v3578
        %v3581 = vunpack.c.l.s4 1966171168
        %v3582 = vunpack.c.0.s8 %v3581
        %v3583 = vlaneseq
        %v3584 = vshrl.u32 %v3583, 7
        %v3585 = vsub.s32 %v3582, %v3584
        %v3586 = vrot.slane %v3572, %v3585
        %v3587 = vcombine.high %v3579, %v3579
        %v3588 = vcombine.high %v3586, %v3586
        %v3590 = vunpack.c.l.s4 1966171168
        %v3591 = vunpack.c.0.s8 %v3590
        %v3592 = vlaneseq
        %v3593 = vshrl.u32 %v3592, 7
        %v3594 = vsub.s32 %v3591, %v3593
        %v3595 = vrot.slane %v3579, %v3594
        %v3597 = vunpack.c.l.s4 1966171168
        %v3598 = vunpack.c.0.s8 %v3597
        %v3599 = vlaneseq
        %v3600 = vshrl.u32 %v3599, 7
        %v3601 = vsub.s32 %v3598, %v3600
        %v3602 = vrot.slane %v3586, %v3601
        %v3604 = vunpack.c.l.s4 1966171168
        %v3605 = vunpack.c.0.s8 %v3604
        %v3606 = vlaneseq
        %v3607 = vshrl.u32 %v3606, 7
        %v3608 = vsub.s32 %v3605, %v3607
        %v3609 = vrot.slane %v3587, %v3608
        %v3611 = vunpack.c.l.s4 1966171168
        %v3612 = vunpack.c.0.s8 %v3611
        %v3613 = vlaneseq
        %v3614 = vshrl.u32 %v3613, 7
        %v3615 = vsub.s32 %v3612, %v3614
        %v3616 = vrot.slane %v3588, %v3615
        %v3617 = vcombine.high %v3595, %v3595
        %v3618 = vcombine.high %v3602, %v3602
        %v3619 = vcombine.high %v3609, %v3609
        %v3620 = vcombine.high %v3616, %v3616
        %v3621 = vcombine.high %v3453, %v3453
        %v3623 = vunpack.c.l.s4 1966171168
        %v3624 = vunpack.c.0.s8 %v3623
        %v3625 = vlaneseq
        %v3626 = vshrl.u32 %v3625, 7
        %v3627 = vsub.s32 %v3624, %v3626
        %v3628 = vrot.slane %v3453, %v3627
        %v3630 = vunpack.c.l.s4 1966171168
        %v3631 = vunpack.c.0.s8 %v3630
        %v3632 = vlaneseq
        %v3633 = vshrl.u32 %v3632, 7
        %v3634 = vsub.s32 %v3631, %v3633
        %v3635 = vrot.slane %v3621, %v3634
        %v3636 = vcombine.high %v3628, %v3628
        %v3637 = vcombine.high %v3635, %v3635
        %v3639 = vunpack.c.l.s4 1966171168
        %v3640 = vunpack.c.0.s8 %v3639
        %v3641 = vlaneseq
        %v3642 = vshrl.u32 %v3641, 7
        %v3643 = vsub.s32 %v3640, %v3642
        %v3644 = vrot.slane %v3628, %v3643
        %v3646 = vunpack.c.l.s4 1966171168
        %v3647 = vunpack.c.0.s8 %v3646
        %v3648 = vlaneseq
        %v3649 = vshrl.u32 %v3648, 7
        %v3650 = vsub.s32 %v3647, %v3649
        %v3651 = vrot.slane %v3635, %v3650
        %v3653 = vunpack.c.l.s4 1966171168
        %v3654 = vunpack.c.0.s8 %v3653
        %v3655 = vlaneseq
        %v3656 = vshrl.u32 %v3655, 7
        %v3657 = vsub.s32 %v3654, %v3656
        %v3658 = vrot.slane %v3636, %v3657
        %v3660 = vunpack.c.l.s4 1966171168
        %v3661 = vunpack.c.0.s8 %v3660
        %v3662 = vlaneseq
        %v3663 = vshrl.u32 %v3662, 7
        %v3664 = vsub.s32 %v3661, %v3663
        %v3665 = vrot.slane %v3637, %v3664
        %v3666 = vcombine.high %v3644, %v3644
        %v3667 = vcombine.high %v3651, %v3651
        %v3668 = vcombine.high %v3658, %v3658
        %v3669 = vcombine.high %v3665, %v3665
        %v3670 = vlaneseq
        %v3671 = vshrl.u32 %v3670, 7
        %v3672 = vsub.s32 0, %v3671
        %v3673 = vrot.slane %v3595, %v3672
        %v3674 = vlaneseq
        %v3675 = vshrl.u32 %v3674, 7
        %v3676 = vsub.s32 0, %v3675
        %v3677 = vrot.slane %v3609, %v3676
        %v3678 = vlaneseq
        %v3679 = vshrl.u32 %v3678, 7
        %v3680 = vsub.s32 0, %v3679
        %v3681 = vrot.slane %v3617, %v3680
        %v3682 = vlaneseq
        %v3683 = vshrl.u32 %v3682, 7
        %v3684 = vsub.s32 0, %v3683
        %v3685 = vrot.slane %v3619, %v3684
        %v3686 = vlaneseq
        %v3687 = vshrl.u32 %v3686, 7
        %v3688 = vsub.s32 0, %v3687
        %v3689 = vrot.slane %v3602, %v3688
        %v3690 = vlaneseq
        %v3691 = vshrl.u32 %v3690, 7
        %v3692 = vsub.s32 0, %v3691
        %v3693 = vrot.slane %v3616, %v3692
        %v3694 = vlaneseq
        %v3695 = vshrl.u32 %v3694, 7
        %v3696 = vsub.s32 0, %v3695
        %v3697 = vrot.slane %v3618, %v3696
        %v3698 = vlaneseq
        %v3699 = vshrl.u32 %v3698, 7
        %v3700 = vsub.s32 0, %v3699
        %v3701 = vrot.slane %v3620, %v3700
        %v3702 = vlaneseq
        %v3703 = vshrl.u32 %v3702, 7
        %v3704 = vsub.s32 0, %v3703
        %v3705 = vrot.slane %v3644, %v3704
        %v3706 = vlaneseq
        %v3707 = vshrl.u32 %v3706, 7
        %v3708 = vsub.s32 0, %v3707
        %v3709 = vrot.slane %v3658, %v3708
        %v3710 = vlaneseq
        %v3711 = vshrl.u32 %v3710, 7
        %v3712 = vsub.s32 0, %v3711
        %v3713 = vrot.slane %v3666, %v3712
        %v3714 = vlaneseq
        %v3715 = vshrl.u32 %v3714, 7
        %v3716 = vsub.s32 0, %v3715
        %v3717 = vrot.slane %v3668, %v3716
        %v3718 = vlaneseq
        %v3719 = vshrl.u32 %v3718, 7
        %v3720 = vsub.s32 0, %v3719
        %v3721 = vrot.slane %v3651, %v3720
        %v3722 = vlaneseq
        %v3723 = vshrl.u32 %v3722, 7
        %v3724 = vsub.s32 0, %v3723
        %v3725 = vrot.slane %v3665, %v3724
        %v3726 = vlaneseq
        %v3727 = vshrl.u32 %v3726, 7
        %v3728 = vsub.s32 0, %v3727
        %v3729 = vrot.slane %v3667, %v3728
        %v3730 = vlaneseq
        %v3731 = vshrl.u32 %v3730, 7
        %v3732 = vsub.s32 0, %v3731
        %v3733 = vrot.slane %v3669, %v3732
        %v3750 = vsel %vm733, %v3479, %v3673
        %v3751 = vsel %vm733, %v3493, %v3677
        %v3752 = vsel %vm733, %v3501, %v3681
        %v3753 = vsel %vm733, %v3503, %v3685
        %v3754 = vsel %vm733, %v3486, %v3689
        %v3755 = vsel %vm733, %v3500, %v3693
        %v3756 = vsel %vm733, %v3502, %v3697
        %v3757 = vsel %vm733, %v3504, %v3701
        %v3758 = vsel %vm733, %v3528, %v3705
        %v3759 = vsel %vm733, %v3542, %v3709
        %v3760 = vsel %vm733, %v3550, %v3713
        %v3761 = vsel %vm733, %v3552, %v3717
        %v3762 = vsel %vm733, %v3535, %v3721
        %v3763 = vsel %vm733, %v3549, %v3725
        %v3764 = vsel %vm733, %v3551, %v3729
        %v3765 = vsel %vm733, %v3553, %v3733
        %v3782 = vcombine.low %v3750, %v3751
        %v3783 = vcombine.low %v3752, %v3753
        %v3785 = vunpack.c.l.s4 1983009808
        %v3786 = vunpack.c.0.s8 %v3785
        %v3787 = vlaneseq
        %v3788 = vshrl.u32 %v3787, 7
        %v3789 = vsub.s32 %v3786, %v3788
        %v3790 = vrot.slane %v3782, %v3789
        %v3792 = vunpack.c.l.s4 1983009808
        %v3793 = vunpack.c.0.s8 %v3792
        %v3794 = vlaneseq
        %v3795 = vshrl.u32 %v3794, 7
        %v3796 = vsub.s32 %v3793, %v3795
        %v3797 = vrot.slane %v3783, %v3796
        %v3798 = vcombine.low %v3790, %v3797
        %v3799 = vcombine.low %v3754, %v3755
        %v3800 = vcombine.low %v3756, %v3757
        %v3802 = vunpack.c.l.s4 1983009808
        %v3803 = vunpack.c.0.s8 %v3802
        %v3804 = vlaneseq
        %v3805 = vshrl.u32 %v3804, 7
        %v3806 = vsub.s32 %v3803, %v3805
        %v3807 = vrot.slane %v3799, %v3806
        %v3809 = vunpack.c.l.s4 1983009808
        %v3810 = vunpack.c.0.s8 %v3809
        %v3811 = vlaneseq
        %v3812 = vshrl.u32 %v3811, 7
        %v3813 = vsub.s32 %v3810, %v3812
        %v3814 = vrot.slane %v3800, %v3813
        %v3815 = vcombine.low %v3807, %v3814
        %v3816 = vcombine.low %v3758, %v3759
        %v3817 = vcombine.low %v3760, %v3761
        %v3819 = vunpack.c.l.s4 1983009808
        %v3820 = vunpack.c.0.s8 %v3819
        %v3821 = vlaneseq
        %v3822 = vshrl.u32 %v3821, 7
        %v3823 = vsub.s32 %v3820, %v3822
        %v3824 = vrot.slane %v3816, %v3823
        %v3826 = vunpack.c.l.s4 1983009808
        %v3827 = vunpack.c.0.s8 %v3826
        %v3828 = vlaneseq
        %v3829 = vshrl.u32 %v3828, 7
        %v3830 = vsub.s32 %v3827, %v3829
        %v3831 = vrot.slane %v3817, %v3830
        %v3832 = vcombine.low %v3824, %v3831
        %v3833 = vcombine.low %v3762, %v3763
        %v3834 = vcombine.low %v3764, %v3765
        %v3836 = vunpack.c.l.s4 1983009808
        %v3837 = vunpack.c.0.s8 %v3836
        %v3838 = vlaneseq
        %v3839 = vshrl.u32 %v3838, 7
        %v3840 = vsub.s32 %v3837, %v3839
        %v3841 = vrot.slane %v3833, %v3840
        %v3843 = vunpack.c.l.s4 1983009808
        %v3844 = vunpack.c.0.s8 %v3843
        %v3845 = vlaneseq
        %v3846 = vshrl.u32 %v3845, 7
        %v3847 = vsub.s32 %v3844, %v3846
        %v3848 = vrot.slane %v3834, %v3847
        %v3849 = vcombine.low %v3841, %v3848
        %3854 = vxpose.xlu0.b32.start [1/16] %v3798, 128
        %3855 = vxpose.xlu0.b32.cont [2/16] %v3815, 128
        %3856 = vxpose.xlu0.b32.cont [3/16] %v3832, 128
        %3857 = vxpose.xlu0.b32.cont [4/16] %v3849, 128
        %3858 = vxpose.xlu0.b32.cont [5/16] 0.0, 128
        %3859 = vxpose.xlu0.b32.cont [6/16] 0.0, 128
        %3860 = vxpose.xlu0.b32.cont [7/16] 0.0, 128
        %3861 = vxpose.xlu0.b32.cont [8/16] 0.0, 128
        %3862 = vxpose.xlu0.b32.cont [9/16] 0.0, 128
        %3863 = vxpose.xlu0.b32.cont [10/16] 0.0, 128
        %3864 = vxpose.xlu0.b32.cont [11/16] 0.0, 128
        %3865 = vxpose.xlu0.b32.cont [12/16] 0.0, 128
        %3866 = vxpose.xlu0.b32.cont [13/16] 0.0, 128
        %3867 = vxpose.xlu0.b32.cont [14/16] 0.0, 128
        %3868 = vxpose.xlu0.b32.cont [15/16] 0.0, 128
        %3869 = vxpose.xlu0.b32.end [16/16] 0.0, 128
        %v3870 = vpop.trf.xlu0
        %v3871 = vpop.trf.xlu0
        %v3872 = vpop.trf.xlu0
        %v3873 = vpop.trf.xlu0
        %v3874 = vpop.trf.xlu0
        %v3875 = vpop.trf.xlu0
        %v3876 = vpop.trf.xlu0
        %v3877 = vpop.trf.xlu0
        %v3878 = vpop.trf.xlu0
        %v3879 = vpop.trf.xlu0
        %v3880 = vpop.trf.xlu0
        %v3881 = vpop.trf.xlu0
        %v3882 = vpop.trf.xlu0
        %v3883 = vpop.trf.xlu0
        %v3884 = vpop.trf.xlu0
        %v3885 = vpop.trf.xlu0
        %s3886 = sld [smem:[#allocation2 + $0x38]]
        %v3887 = vstv %s3886
        %v3888 = vmul.f32 %v252, %v3887
        %v3889 = vmul.f32 %v253, %v3887
        %s3890 = sld [smem:[#allocation2 + $0x39]]
        %v3891 = vstv %s3890
        %v3892 = vmul.f32 %v287, %v3891
        %v3893 = vmul.f32 %v288, %v3891
        %v3894 = vadd.f32 %v3888, %v3892
        %v3895 = vadd.f32 %v3889, %v3893
        %s3896 = sld [smem:[#allocation2 + $0x3a]]
        %v3897 = vstv %s3896
        %v3898 = vmul.f32 %v322, %v3897
        %v3899 = vmul.f32 %v323, %v3897
        %v3900 = vadd.f32 %v3894, %v3898
        %v3901 = vadd.f32 %v3895, %v3899
        %s3902 = sld [smem:[#allocation2 + $0x3b]]
        %v3903 = vstv %s3902
        %v3904 = vmul.f32 %v357, %v3903
        %v3905 = vmul.f32 %v358, %v3903
        %v3906 = vadd.f32 %v3900, %v3904
        %v3907 = vadd.f32 %v3901, %v3905
        %s3908 = sld [smem:[#allocation7 + $0xe]]
        %v3909 = vstv %s3908
        %v3910 = vadd.f32 %v3906, %v3909
        %v3911 = vadd.f32 %v3907, %v3909
        %vm3912 = vcmp.ge.f32.partialorder %v3910, 0.0
        %vm3913 = vcmp.ge.f32.partialorder %v3911, 0.0
        %v3914 = vmul.f32 %v3910, 0.01
        %v3915 = vmul.f32 %v3911, 0.01
        %v3916 = vsel %vm3912, %v3910, %v3914
        %v3917 = vsel %vm3913, %v3911, %v3915
        %s3918 = sld [smem:[#allocation2 + $0x3c]]
        %v3919 = vstv %s3918
        %v3920 = vmul.f32 %v252, %v3919
        %v3921 = vmul.f32 %v253, %v3919
        %s3922 = sld [smem:[#allocation2 + $0x3d]]
        %v3923 = vstv %s3922
        %v3924 = vmul.f32 %v287, %v3923
        %v3925 = vmul.f32 %v288, %v3923
        %v3926 = vadd.f32 %v3920, %v3924
        %v3927 = vadd.f32 %v3921, %v3925
        %s3928 = sld [smem:[#allocation2 + $0x3e]]
        %v3929 = vstv %s3928
        %v3930 = vmul.f32 %v322, %v3929
        %v3931 = vmul.f32 %v323, %v3929
        %v3932 = vadd.f32 %v3926, %v3930
        %v3933 = vadd.f32 %v3927, %v3931
        %s3934 = sld [smem:[#allocation2 + $0x3f]]
        %v3935 = vstv %s3934
        %v3936 = vmul.f32 %v357, %v3935
        %v3937 = vmul.f32 %v358, %v3935
        %v3938 = vadd.f32 %v3932, %v3936
        %v3939 = vadd.f32 %v3933, %v3937
        %s3940 = sld [smem:[#allocation7 + $0xf]]
        %v3941 = vstv %s3940
        %v3942 = vadd.f32 %v3938, %v3941
        %v3943 = vadd.f32 %v3939, %v3941
        %vm3944 = vcmp.ge.f32.partialorder %v3942, 0.0
        %vm3945 = vcmp.ge.f32.partialorder %v3943, 0.0
        %v3946 = vmul.f32 %v3942, 0.01
        %v3947 = vmul.f32 %v3943, 0.01
        %v3948 = vsel %vm3944, %v3942, %v3946
        %v3949 = vsel %vm3945, %v3943, %v3947
        %v3952 = vcombine.high %v3916, %v3916
        %v3954 = vunpack.c.l.s4 1966171168
        %v3955 = vunpack.c.0.s8 %v3954
        %v3956 = vlaneseq
        %v3957 = vshrl.u32 %v3956, 7
        %v3958 = vsub.s32 %v3955, %v3957
        %v3959 = vrot.slane %v3916, %v3958
        %v3961 = vunpack.c.l.s4 1966171168
        %v3962 = vunpack.c.0.s8 %v3961
        %v3963 = vlaneseq
        %v3964 = vshrl.u32 %v3963, 7
        %v3965 = vsub.s32 %v3962, %v3964
        %v3966 = vrot.slane %v3952, %v3965
        %v3967 = vcombine.high %v3959, %v3959
        %v3968 = vcombine.high %v3966, %v3966
        %v3970 = vunpack.c.l.s4 1966171168
        %v3971 = vunpack.c.0.s8 %v3970
        %v3972 = vlaneseq
        %v3973 = vshrl.u32 %v3972, 7
        %v3974 = vsub.s32 %v3971, %v3973
        %v3975 = vrot.slane %v3959, %v3974
        %v3977 = vunpack.c.l.s4 1966171168
        %v3978 = vunpack.c.0.s8 %v3977
        %v3979 = vlaneseq
        %v3980 = vshrl.u32 %v3979, 7
        %v3981 = vsub.s32 %v3978, %v3980
        %v3982 = vrot.slane %v3966, %v3981
        %v3984 = vunpack.c.l.s4 1966171168
        %v3985 = vunpack.c.0.s8 %v3984
        %v3986 = vlaneseq
        %v3987 = vshrl.u32 %v3986, 7
        %v3988 = vsub.s32 %v3985, %v3987
        %v3989 = vrot.slane %v3967, %v3988
        %v3991 = vunpack.c.l.s4 1966171168
        %v3992 = vunpack.c.0.s8 %v3991
        %v3993 = vlaneseq
        %v3994 = vshrl.u32 %v3993, 7
        %v3995 = vsub.s32 %v3992, %v3994
        %v3996 = vrot.slane %v3968, %v3995
        %v3997 = vcombine.high %v3975, %v3975
        %v3998 = vcombine.high %v3982, %v3982
        %v3999 = vcombine.high %v3989, %v3989
        %v4000 = vcombine.high %v3996, %v3996
        %v4001 = vcombine.high %v3917, %v3917
        %v4003 = vunpack.c.l.s4 1966171168
        %v4004 = vunpack.c.0.s8 %v4003
        %v4005 = vlaneseq
        %v4006 = vshrl.u32 %v4005, 7
        %v4007 = vsub.s32 %v4004, %v4006
        %v4008 = vrot.slane %v3917, %v4007
        %v4010 = vunpack.c.l.s4 1966171168
        %v4011 = vunpack.c.0.s8 %v4010
        %v4012 = vlaneseq
        %v4013 = vshrl.u32 %v4012, 7
        %v4014 = vsub.s32 %v4011, %v4013
        %v4015 = vrot.slane %v4001, %v4014
        %v4016 = vcombine.high %v4008, %v4008
        %v4017 = vcombine.high %v4015, %v4015
        %v4019 = vunpack.c.l.s4 1966171168
        %v4020 = vunpack.c.0.s8 %v4019
        %v4021 = vlaneseq
        %v4022 = vshrl.u32 %v4021, 7
        %v4023 = vsub.s32 %v4020, %v4022
        %v4024 = vrot.slane %v4008, %v4023
        %v4026 = vunpack.c.l.s4 1966171168
        %v4027 = vunpack.c.0.s8 %v4026
        %v4028 = vlaneseq
        %v4029 = vshrl.u32 %v4028, 7
        %v4030 = vsub.s32 %v4027, %v4029
        %v4031 = vrot.slane %v4015, %v4030
        %v4033 = vunpack.c.l.s4 1966171168
        %v4034 = vunpack.c.0.s8 %v4033
        %v4035 = vlaneseq
        %v4036 = vshrl.u32 %v4035, 7
        %v4037 = vsub.s32 %v4034, %v4036
        %v4038 = vrot.slane %v4016, %v4037
        %v4040 = vunpack.c.l.s4 1966171168
        %v4041 = vunpack.c.0.s8 %v4040
        %v4042 = vlaneseq
        %v4043 = vshrl.u32 %v4042, 7
        %v4044 = vsub.s32 %v4041, %v4043
        %v4045 = vrot.slane %v4017, %v4044
        %v4046 = vcombine.high %v4024, %v4024
        %v4047 = vcombine.high %v4031, %v4031
        %v4048 = vcombine.high %v4038, %v4038
        %v4049 = vcombine.high %v4045, %v4045
        %v4068 = vcombine.high %v3948, %v3948
        %v4070 = vunpack.c.l.s4 1966171168
        %v4071 = vunpack.c.0.s8 %v4070
        %v4072 = vlaneseq
        %v4073 = vshrl.u32 %v4072, 7
        %v4074 = vsub.s32 %v4071, %v4073
        %v4075 = vrot.slane %v3948, %v4074
        %v4077 = vunpack.c.l.s4 1966171168
        %v4078 = vunpack.c.0.s8 %v4077
        %v4079 = vlaneseq
        %v4080 = vshrl.u32 %v4079, 7
        %v4081 = vsub.s32 %v4078, %v4080
        %v4082 = vrot.slane %v4068, %v4081
        %v4083 = vcombine.high %v4075, %v4075
        %v4084 = vcombine.high %v4082, %v4082
        %v4086 = vunpack.c.l.s4 1966171168
        %v4087 = vunpack.c.0.s8 %v4086
        %v4088 = vlaneseq
        %v4089 = vshrl.u32 %v4088, 7
        %v4090 = vsub.s32 %v4087, %v4089
        %v4091 = vrot.slane %v4075, %v4090
        %v4093 = vunpack.c.l.s4 1966171168
        %v4094 = vunpack.c.0.s8 %v4093
        %v4095 = vlaneseq
        %v4096 = vshrl.u32 %v4095, 7
        %v4097 = vsub.s32 %v4094, %v4096
        %v4098 = vrot.slane %v4082, %v4097
        %v4100 = vunpack.c.l.s4 1966171168
        %v4101 = vunpack.c.0.s8 %v4100
        %v4102 = vlaneseq
        %v4103 = vshrl.u32 %v4102, 7
        %v4104 = vsub.s32 %v4101, %v4103
        %v4105 = vrot.slane %v4083, %v4104
        %v4107 = vunpack.c.l.s4 1966171168
        %v4108 = vunpack.c.0.s8 %v4107
        %v4109 = vlaneseq
        %v4110 = vshrl.u32 %v4109, 7
        %v4111 = vsub.s32 %v4108, %v4110
        %v4112 = vrot.slane %v4084, %v4111
        %v4113 = vcombine.high %v4091, %v4091
        %v4114 = vcombine.high %v4098, %v4098
        %v4115 = vcombine.high %v4105, %v4105
        %v4116 = vcombine.high %v4112, %v4112
        %v4117 = vcombine.high %v3949, %v3949
        %v4119 = vunpack.c.l.s4 1966171168
        %v4120 = vunpack.c.0.s8 %v4119
        %v4121 = vlaneseq
        %v4122 = vshrl.u32 %v4121, 7
        %v4123 = vsub.s32 %v4120, %v4122
        %v4124 = vrot.slane %v3949, %v4123
        %v4126 = vunpack.c.l.s4 1966171168
        %v4127 = vunpack.c.0.s8 %v4126
        %v4128 = vlaneseq
        %v4129 = vshrl.u32 %v4128, 7
        %v4130 = vsub.s32 %v4127, %v4129
        %v4131 = vrot.slane %v4117, %v4130
        %v4132 = vcombine.high %v4124, %v4124
        %v4133 = vcombine.high %v4131, %v4131
        %v4135 = vunpack.c.l.s4 1966171168
        %v4136 = vunpack.c.0.s8 %v4135
        %v4137 = vlaneseq
        %v4138 = vshrl.u32 %v4137, 7
        %v4139 = vsub.s32 %v4136, %v4138
        %v4140 = vrot.slane %v4124, %v4139
        %v4142 = vunpack.c.l.s4 1966171168
        %v4143 = vunpack.c.0.s8 %v4142
        %v4144 = vlaneseq
        %v4145 = vshrl.u32 %v4144, 7
        %v4146 = vsub.s32 %v4143, %v4145
        %v4147 = vrot.slane %v4131, %v4146
        %v4149 = vunpack.c.l.s4 1966171168
        %v4150 = vunpack.c.0.s8 %v4149
        %v4151 = vlaneseq
        %v4152 = vshrl.u32 %v4151, 7
        %v4153 = vsub.s32 %v4150, %v4152
        %v4154 = vrot.slane %v4132, %v4153
        %v4156 = vunpack.c.l.s4 1966171168
        %v4157 = vunpack.c.0.s8 %v4156
        %v4158 = vlaneseq
        %v4159 = vshrl.u32 %v4158, 7
        %v4160 = vsub.s32 %v4157, %v4159
        %v4161 = vrot.slane %v4133, %v4160
        %v4162 = vcombine.high %v4140, %v4140
        %v4163 = vcombine.high %v4147, %v4147
        %v4164 = vcombine.high %v4154, %v4154
        %v4165 = vcombine.high %v4161, %v4161
        %v4166 = vlaneseq
        %v4167 = vshrl.u32 %v4166, 7
        %v4168 = vsub.s32 0, %v4167
        %v4169 = vrot.slane %v4091, %v4168
        %v4170 = vlaneseq
        %v4171 = vshrl.u32 %v4170, 7
        %v4172 = vsub.s32 0, %v4171
        %v4173 = vrot.slane %v4105, %v4172
        %v4174 = vlaneseq
        %v4175 = vshrl.u32 %v4174, 7
        %v4176 = vsub.s32 0, %v4175
        %v4177 = vrot.slane %v4113, %v4176
        %v4178 = vlaneseq
        %v4179 = vshrl.u32 %v4178, 7
        %v4180 = vsub.s32 0, %v4179
        %v4181 = vrot.slane %v4115, %v4180
        %v4182 = vlaneseq
        %v4183 = vshrl.u32 %v4182, 7
        %v4184 = vsub.s32 0, %v4183
        %v4185 = vrot.slane %v4098, %v4184
        %v4186 = vlaneseq
        %v4187 = vshrl.u32 %v4186, 7
        %v4188 = vsub.s32 0, %v4187
        %v4189 = vrot.slane %v4112, %v4188
        %v4190 = vlaneseq
        %v4191 = vshrl.u32 %v4190, 7
        %v4192 = vsub.s32 0, %v4191
        %v4193 = vrot.slane %v4114, %v4192
        %v4194 = vlaneseq
        %v4195 = vshrl.u32 %v4194, 7
        %v4196 = vsub.s32 0, %v4195
        %v4197 = vrot.slane %v4116, %v4196
        %v4198 = vlaneseq
        %v4199 = vshrl.u32 %v4198, 7
        %v4200 = vsub.s32 0, %v4199
        %v4201 = vrot.slane %v4140, %v4200
        %v4202 = vlaneseq
        %v4203 = vshrl.u32 %v4202, 7
        %v4204 = vsub.s32 0, %v4203
        %v4205 = vrot.slane %v4154, %v4204
        %v4206 = vlaneseq
        %v4207 = vshrl.u32 %v4206, 7
        %v4208 = vsub.s32 0, %v4207
        %v4209 = vrot.slane %v4162, %v4208
        %v4210 = vlaneseq
        %v4211 = vshrl.u32 %v4210, 7
        %v4212 = vsub.s32 0, %v4211
        %v4213 = vrot.slane %v4164, %v4212
        %v4214 = vlaneseq
        %v4215 = vshrl.u32 %v4214, 7
        %v4216 = vsub.s32 0, %v4215
        %v4217 = vrot.slane %v4147, %v4216
        %v4218 = vlaneseq
        %v4219 = vshrl.u32 %v4218, 7
        %v4220 = vsub.s32 0, %v4219
        %v4221 = vrot.slane %v4161, %v4220
        %v4222 = vlaneseq
        %v4223 = vshrl.u32 %v4222, 7
        %v4224 = vsub.s32 0, %v4223
        %v4225 = vrot.slane %v4163, %v4224
        %v4226 = vlaneseq
        %v4227 = vshrl.u32 %v4226, 7
        %v4228 = vsub.s32 0, %v4227
        %v4229 = vrot.slane %v4165, %v4228
        %v4246 = vsel %vm733, %v3975, %v4169
        %v4247 = vsel %vm733, %v3989, %v4173
        %v4248 = vsel %vm733, %v3997, %v4177
        %v4249 = vsel %vm733, %v3999, %v4181
        %v4250 = vsel %vm733, %v3982, %v4185
        %v4251 = vsel %vm733, %v3996, %v4189
        %v4252 = vsel %vm733, %v3998, %v4193
        %v4253 = vsel %vm733, %v4000, %v4197
        %v4254 = vsel %vm733, %v4024, %v4201
        %v4255 = vsel %vm733, %v4038, %v4205
        %v4256 = vsel %vm733, %v4046, %v4209
        %v4257 = vsel %vm733, %v4048, %v4213
        %v4258 = vsel %vm733, %v4031, %v4217
        %v4259 = vsel %vm733, %v4045, %v4221
        %v4260 = vsel %vm733, %v4047, %v4225
        %v4261 = vsel %vm733, %v4049, %v4229
        %v4278 = vcombine.low %v4246, %v4247
        %v4279 = vcombine.low %v4248, %v4249
        %v4281 = vunpack.c.l.s4 1983009808
        %v4282 = vunpack.c.0.s8 %v4281
        %v4283 = vlaneseq
        %v4284 = vshrl.u32 %v4283, 7
        %v4285 = vsub.s32 %v4282, %v4284
        %v4286 = vrot.slane %v4278, %v4285
        %v4288 = vunpack.c.l.s4 1983009808
        %v4289 = vunpack.c.0.s8 %v4288
        %v4290 = vlaneseq
        %v4291 = vshrl.u32 %v4290, 7
        %v4292 = vsub.s32 %v4289, %v4291
        %v4293 = vrot.slane %v4279, %v4292
        %v4294 = vcombine.low %v4286, %v4293
        %v4295 = vcombine.low %v4250, %v4251
        %v4296 = vcombine.low %v4252, %v4253
        %v4298 = vunpack.c.l.s4 1983009808
        %v4299 = vunpack.c.0.s8 %v4298
        %v4300 = vlaneseq
        %v4301 = vshrl.u32 %v4300, 7
        %v4302 = vsub.s32 %v4299, %v4301
        %v4303 = vrot.slane %v4295, %v4302
        %v4305 = vunpack.c.l.s4 1983009808
        %v4306 = vunpack.c.0.s8 %v4305
        %v4307 = vlaneseq
        %v4308 = vshrl.u32 %v4307, 7
        %v4309 = vsub.s32 %v4306, %v4308
        %v4310 = vrot.slane %v4296, %v4309
        %v4311 = vcombine.low %v4303, %v4310
        %v4312 = vcombine.low %v4254, %v4255
        %v4313 = vcombine.low %v4256, %v4257
        %v4315 = vunpack.c.l.s4 1983009808
        %v4316 = vunpack.c.0.s8 %v4315
        %v4317 = vlaneseq
        %v4318 = vshrl.u32 %v4317, 7
        %v4319 = vsub.s32 %v4316, %v4318
        %v4320 = vrot.slane %v4312, %v4319
        %v4322 = vunpack.c.l.s4 1983009808
        %v4323 = vunpack.c.0.s8 %v4322
        %v4324 = vlaneseq
        %v4325 = vshrl.u32 %v4324, 7
        %v4326 = vsub.s32 %v4323, %v4325
        %v4327 = vrot.slane %v4313, %v4326
        %v4328 = vcombine.low %v4320, %v4327
        %v4329 = vcombine.low %v4258, %v4259
        %v4330 = vcombine.low %v4260, %v4261
        %v4332 = vunpack.c.l.s4 1983009808
        %v4333 = vunpack.c.0.s8 %v4332
        %v4334 = vlaneseq
        %v4335 = vshrl.u32 %v4334, 7
        %v4336 = vsub.s32 %v4333, %v4335
        %v4337 = vrot.slane %v4329, %v4336
        %v4339 = vunpack.c.l.s4 1983009808
        %v4340 = vunpack.c.0.s8 %v4339
        %v4341 = vlaneseq
        %v4342 = vshrl.u32 %v4341, 7
        %v4343 = vsub.s32 %v4340, %v4342
        %v4344 = vrot.slane %v4330, %v4343
        %v4345 = vcombine.low %v4337, %v4344
        %4350 = vxpose.xlu0.b32.start [1/16] %v4294, 128
        %4351 = vxpose.xlu0.b32.cont [2/16] %v4311, 128
        %4352 = vxpose.xlu0.b32.cont [3/16] %v4328, 128
        %4353 = vxpose.xlu0.b32.cont [4/16] %v4345, 128
        %4354 = vxpose.xlu0.b32.cont [5/16] 0.0, 128
        %4355 = vxpose.xlu0.b32.cont [6/16] 0.0, 128
        %4356 = vxpose.xlu0.b32.cont [7/16] 0.0, 128
        %4357 = vxpose.xlu0.b32.cont [8/16] 0.0, 128
        %4358 = vxpose.xlu0.b32.cont [9/16] 0.0, 128
        %4359 = vxpose.xlu0.b32.cont [10/16] 0.0, 128
        %4360 = vxpose.xlu0.b32.cont [11/16] 0.0, 128
        %4361 = vxpose.xlu0.b32.cont [12/16] 0.0, 128
        %4362 = vxpose.xlu0.b32.cont [13/16] 0.0, 128
        %4363 = vxpose.xlu0.b32.cont [14/16] 0.0, 128
        %4364 = vxpose.xlu0.b32.cont [15/16] 0.0, 128
        %4365 = vxpose.xlu0.b32.end [16/16] 0.0, 128
        %v4366 = vpop.trf.xlu0
        %v4367 = vpop.trf.xlu0
        %v4368 = vpop.trf.xlu0
        %v4369 = vpop.trf.xlu0
        %v4370 = vpop.trf.xlu0
        %v4371 = vpop.trf.xlu0
        %v4372 = vpop.trf.xlu0
        %v4373 = vpop.trf.xlu0
        %v4374 = vpop.trf.xlu0
        %v4375 = vpop.trf.xlu0
        %v4376 = vpop.trf.xlu0
        %v4377 = vpop.trf.xlu0
        %v4378 = vpop.trf.xlu0
        %v4379 = vpop.trf.xlu0
        %v4380 = vpop.trf.xlu0
        %v4381 = vpop.trf.xlu0
        %4384 = vrot.lane.b32.xlu0 %v4366, 32
        %v4385 = vpop.permute.xlu0 %4384
        %4386 = vrot.lane.b32.xlu0 %v4367, 32
        %v4387 = vpop.permute.xlu0 %4386
        %v4390 = vsel %vm1374, %v3870, %v4385
        %v4391 = vsel %vm1374, %v3871, %v4387
        %s4392 = scalar_lea.vmem %s231, 48 [#allocation9]
        %4393 = vst.msk [vmem:[%s4392] sm:$0xff] %vm1377, %v4390
        %4394 = vst.msk [vmem:[%s4392 + $0x8] sm:$0xff] %vm1377, %v4391
        %s4395 = sand.u32 %s114, 1
        %s4396 = scalar_lea.sflag [#allocation4], %s4395
        %s4397 = sand.u32 %s114, 1
        %s4398 = smul.addr %s4397, 64
        %s4399 = scalar_lea.vmem [#allocation9], %s4398
        // Predicated region
        $region45: #{tpu_custom_call.1} parent=31 // pred_check
          %p4400 = pneg %p124
        $region46: #{tpu_custom_call.1} parent=31 // pred_check_branch
          %4402 = sbr.rel (%p4400) target = $region48
        $region47: #{tpu_custom_call.1} parent=31 // pred_region
          %s4403 = smul.u32 2, %s27
          %s4405 = ssub.s32 1024, 1024
          %4406 = vsyncadd %s4396, %s4405
          %s4407 = smul.addr %s26, 8
          %s4408 = sadd.s32 %s4403, %s4407
          %s4409 = smul.addr %s4408, 128
          %s4410 = scalar_lea.hbm %s3, %s4409
          %s4411 = sshll.u32 %s4399, 4
          %s4412 = int_to_ptr.vmem [resolvable:$true] %s4411
          %4417 = dma.vmem_to_hbm [thread:$0]  %s4412, 1024, %s4410, %s4396, 128, 128, 8
        $region48: #{tpu_custom_call.1} parent=31 // pred_fallthru
          _
      $region32: #{tpu_custom_call.1} parent=5 // pred_fallthru
        _
      %p4418 = scmp.le.s32.totalorder 2, %s17
      // Predicated region
      $region49: #{tpu_custom_call.1} parent=5 // pred_check
        %p4419 = pneg %p4418
      $region50: #{tpu_custom_call.1} parent=5 // pred_check_branch
        %4421 = sbr.rel (%p4419) target = $region52
      $region51: #{tpu_custom_call.1} parent=5 // pred_region
        %s4422 = ssub.s32 %s17, 2
        // Predicated region
        $region53: #{tpu_custom_call.1} parent=51 // pred_check
          %p4423 = pneg %p130
        $region54: #{tpu_custom_call.1} parent=51 // pred_check_branch
          %4425 = sbr.rel (%p4423) target = $region56
        $region55: #{tpu_custom_call.1} parent=51 // pred_region
          %s4426 = sand.u32 %s115, 1
          %s4427 = scalar_lea.sflag [#allocation4], %s4426
          %s4428 = sand.u32 %s115, 1
          %s4429 = smul.addr %s4428, 64
          %s4430 = scalar_lea.vmem [#allocation9], %s4429
          %4431 = dma.done %s4427, 1024
        $region56: #{tpu_custom_call.1} parent=51 // pred_fallthru
          _
      $region52: #{tpu_custom_call.1} parent=5 // pred_fallthru
        _
    $region6: #{tpu_custom_call.1} parent=1 // loop_footer
      %s21 = sadd.s32 1, %s17
    $region7: #{tpu_custom_call.1} parent=1 // loop_footer_branch
      %16 = sbr.rel target = $region3
    $region8: #{tpu_custom_call.1} parent=1 // loop_exit
      _
    %4432 = vsyncpa [#allocation3], 1
    %s4433 = scalar_lea.sflag [#allocation3], 1
    %4434 = vsyncpa %s4433, 1
    %4435 = vsyncpa [#allocation4], 1
    %s4436 = scalar_lea.sflag [#allocation4], 1
    %4437 = vsyncpa %s4436, 1
    %4438 = vsyncpa [#allocation5], 1
    %s4439 = scalar_lea.sflag [#allocation5], 1
    %4440 = vsyncpa %s4439, 1
    %4441 = vsyncpa [#allocation6], 1
    %s4442 = scalar_lea.sflag [#allocation6], 1
    %4443 = vsyncpa %s4442, 1

</llo_original>
